<compile_context>
chip_gen: v6e
topology: v6e:2x2x1
jax: 0.10.0
libtpu: 0.0.40
codegen_flags: <defaults>
</compile_context>

<pallas_src>
import functools

import jax
import jax.numpy as jnp
from jax.experimental import pallas as pl
from jax.experimental.pallas import tpu as pltpu


def _round_up(x, m):
    return (x + m - 1) // m * m


def _gru_kernel(gi_ref, whh_ref, bhh_ref, o_ref, h_ref, *, hidden_p, chunk):
    """One grid step == one chunk of `chunk` timesteps of the GRU recurrence.

    gi_ref : (Bp, TT, 3Hp)  precomputed x @ W_ih^T + b_ih for this chunk
    whh_ref: (Hp, 3Hp)      W_hh^T (gate order r, z, n; each gate lane-padded to Hp)
    bhh_ref: (1, 3Hp)       b_hh (gate/lane-padded)
    o_ref  : (Bp, TT, Hp)   output hidden states for this chunk
    h_ref  : (Bp, Hp) f32   VMEM scratch carrying the recurrent state across chunks
    """
    Hp = hidden_p

    @pl.when(pl.program_id(0) == 0)
    def _():
        h_ref[...] = jnp.zeros_like(h_ref)

    # Hoisted loads / broadcasts (done once per chunk, not once per timestep).
    whh = whh_ref[...]                                             # (Hp, 3Hp)
    bhh = jnp.broadcast_to(bhh_ref[...], (h_ref.shape[0], whh.shape[1]))
    h = h_ref[...]                                                 # (Bp, Hp)

    # Statically unrolled recurrence: all slices are static and lane-aligned.
    for t in range(chunk):
        gi_t = gi_ref[:, t, :]                                     # (Bp, 3Hp)
        gh = jnp.dot(h, whh, preferred_element_type=jnp.float32) + bhh
        r = jax.nn.sigmoid(gi_t[:, 0:Hp] + gh[:, 0:Hp])
        z = jax.nn.sigmoid(gi_t[:, Hp:2 * Hp] + gh[:, Hp:2 * Hp])
        n = jnp.tanh(gi_t[:, 2 * Hp:3 * Hp] + r * gh[:, 2 * Hp:3 * Hp])
        h = (1.0 - z) * n + z * h                                  # (Bp, Hp)
        o_ref[:, t, :] = h.astype(o_ref.dtype)

    h_ref[...] = h


def gru_forward(x, w_ih, w_hh, b_ih, b_hh, *, chunk=None):
    """Pallas equivalent of `output, _ = nn.GRU(D, H, 1, batch_first=True)(x)`.

    x    : (B, T, D)
    w_ih : (3H, D)   PyTorch weight_ih_l0
    w_hh : (3H, H)   PyTorch weight_hh_l0
    b_ih : (3H,)     PyTorch bias_ih_l0
    b_hh : (3H,)     PyTorch bias_hh_l0
    returns (B, T, H)
    """
    B, T, D = x.shape
    H = w_hh.shape[1]
    Hp = _round_up(H, 128)   # lane-dense hidden / per-gate width
    Bp = _round_up(B, 8)     # sublane-dense batch rows

    f32 = jnp.float32

    # Pad each gate block of the (3H, ...) weights/biases to Hp so gate g lives
    # in the lane-aligned slab [g*Hp, (g+1)*Hp).  Zero padding keeps padded
    # lanes at exactly 0 throughout the recurrence (no contamination).
    def pad_gate_rows(w):                       # (3H, X) -> (3Hp, X)
        gates = jnp.split(w, 3, axis=0)
        return jnp.concatenate([jnp.pad(g, ((0, Hp - H), (0, 0))) for g in gates], 0)

    def pad_gate_vec(b):                        # (3H,) -> (3Hp,)
        gates = jnp.split(b, 3)
        return jnp.concatenate([jnp.pad(g, (0, Hp - H)) for g in gates])

    w_ih_p = pad_gate_rows(w_ih.astype(f32))                        # (3Hp, D)
    w_hh_p = jnp.pad(pad_gate_rows(w_hh.astype(f32)),
                     ((0, 0), (0, Hp - H)))                         # (3Hp, Hp)
    b_ih_p = pad_gate_vec(b_ih.astype(f32))                         # (3Hp,)
    b_hh_p = pad_gate_vec(b_hh.astype(f32)).reshape(1, 3 * Hp)      # (1, 3Hp)

    # Pad batch with zero rows; rows are independent so padded rows never
    # affect real rows and are sliced off at the end.
    x_p = jnp.pad(x.astype(f32), ((0, Bp - B), (0, 0), (0, 0)))     # (Bp, T, D)

    # (1) Hoisted input projection: one large MXU-friendly matmul for all T
    # timesteps, produced directly in batch-leading layout (no transposes).
    gi = jnp.einsum('btd,gd->btg', x_p, w_ih_p,
                    preferred_element_type=f32) + b_ih_p            # (Bp, T, 3Hp)

    whh_t = jnp.transpose(w_hh_p)                                   # (Hp, 3Hp)

    # (2) Timestep chunk per grid iteration.
    if chunk is None:
        chunk = next((c for c in (32, 16, 8) if T % c == 0), T)
    assert T % chunk == 0

    kernel = functools.partial(_gru_kernel, hidden_p=Hp, chunk=chunk)

    out_p = pl.pallas_call(
        kernel,
        out_shape=jax.ShapeDtypeStruct((Bp, T, Hp), f32),
        grid_spec=pltpu.PrefetchScalarGridSpec(
            num_scalar_prefetch=0,
            grid=(T // chunk,),
            in_specs=[
                pl.BlockSpec((Bp, chunk, 3 * Hp), lambda c: (0, c, 0)),  # gi chunk
                pl.BlockSpec((Hp, 3 * Hp), lambda c: (0, 0)),            # W_hh^T (resident)
                pl.BlockSpec((1, 3 * Hp), lambda c: (0, 0)),             # b_hh  (resident)
            ],
            out_specs=pl.BlockSpec((Bp, chunk, Hp), lambda c: (0, c, 0)),
            scratch_shapes=[pltpu.VMEM((Bp, Hp), jnp.float32)],
        ),
        compiler_params=pltpu.CompilerParams(
            # Recurrence over time -> the (single) grid axis must be sequential.
            dimension_semantics=("arbitrary",),
        ),
    )(gi, whh_t, b_hh_p)

    return out_p[:B, :, :H]                                         # (B, T, H)


def init_gru_params(key, input_dim, hidden_size, n_classes):
    """Deterministic synthetic parameters matching nn.GRU(input_dim, hidden_size, 1)."""
    k1, k2, k3, k4, k5 = jax.random.split(key, 5)
    scale = 1.0 / jnp.sqrt(hidden_size)
    w_ih = jax.random.uniform(k1, (3 * hidden_size, input_dim), jnp.float32, -scale, scale)
    w_hh = jax.random.uniform(k2, (3 * hidden_size, hidden_size), jnp.float32, -scale, scale)
    b_ih = jax.random.uniform(k3, (3 * hidden_size,), jnp.float32, -scale, scale)
    b_hh = jax.random.uniform(k4, (3 * hidden_size,), jnp.float32, -scale, scale)
    # prototypes exist in the module but are unused in forward(); kept for parity.
    prototypes = jax.random.normal(k5, (n_classes, hidden_size), jnp.float32)
    return w_ih, w_hh, b_ih, b_hh, prototypes


def gru_reference(x, w_ih, w_hh, b_ih, b_hh):
    """Pure-JAX reference implementing PyTorch GRU semantics (sanity check)."""
    B, T, D = x.shape
    H = w_hh.shape[1]
    h = jnp.zeros((B, H), jnp.float32)

    def step(h, x_t):
        gi = x_t @ w_ih.T + b_ih
        gh = h @ w_hh.T + b_hh
        r = jax.nn.sigmoid(gi[:, :H] + gh[:, :H])
        z = jax.nn.sigmoid(gi[:, H:2 * H] + gh[:, H:2 * H])
        n = jnp.tanh(gi[:, 2 * H:] + r * gh[:, 2 * H:])
        h_new = (1.0 - z) * n + z * h
        return h_new, h_new

    _, outs = jax.lax.scan(step, h, jnp.transpose(x, (1, 0, 2)))
    return jnp.transpose(outs, (1, 0, 2))


if __name__ == "__main__":
    # Small shapes consistent with GRUNet(input_dim, hidden_size, n_classes):
    B, T, D, H, n_classes = 2, 8, 16, 32, 4

    key = jax.random.PRNGKey(0)
    kx, kp = jax.random.split(key)
    x = jax.random.normal(kx, (B, T, D), jnp.float32)
    w_ih, w_hh, b_ih, b_hh, _prototypes = init_gru_params(kp, D, H, n_classes)

    out = gru_forward(x, w_ih, w_hh, b_ih, b_hh)
    out = jax.block_until_ready(out)

    ref = gru_reference(x, w_ih, w_hh, b_ih, b_hh)
    assert out.shape == (B, T, H)
    max_err = float(jnp.max(jnp.abs(out - ref)))
    assert max_err < 1e-4, f"max abs err {max_err}"

    print("KERNEL_OK")
</pallas_src>

<mosaic_0001>
module attributes {stable_mosaic.version = 11 : i64} {
  func.func @_gru_kernel(%arg0: i32, %arg1: memref<8x8x384xf32, #tpu.memory_space<vmem>>, %arg2: memref<128x384xf32, #tpu.memory_space<vmem>>, %arg3: memref<1x384xf32, #tpu.memory_space<vmem>>, %arg4: memref<8x8x128xf32, #tpu.memory_space<vmem>>, %arg5: memref<8x128xf32, #tpu.memory_space<vmem>>) attributes {dimension_semantics = [#tpu.dimension_semantics<arbitrary>], iteration_bounds = array<i64: 1>, scalar_prefetch = 0 : i64, scratch_operands = 1 : i64, tpu.core_type = #tpu.core_type<tc>, window_params = [{transform_indices = @transform_0, window_bounds = array<i64: 8, 8, 384>}, {pipeline_mode = #tpu.pipeline_mode<synchronous>, transform_indices = @transform_1, window_bounds = array<i64: 128, 384>}, {pipeline_mode = #tpu.pipeline_mode<synchronous>, transform_indices = @transform_2, window_bounds = array<i64: 1, 384>}, {transform_indices = @transform_3, window_bounds = array<i64: 8, 8, 128>}]} {
    %c0_i32 = arith.constant 0 : i32
    %0 = arith.cmpi eq, %arg0, %c0_i32 : i32
    %1 = arith.extui %0 : i1 to i32
    %c0_i32_0 = arith.constant 0 : i32
    %2 = arith.cmpi ne, %1, %c0_i32_0 : i32
    scf.if %2 {
      %cst_80 = arith.constant 0.000000e+00 : f32
      %273 = vector.broadcast %cst_80 : f32 to vector<8x128xf32>
      %c0_81 = arith.constant 0 : index
      %c0_82 = arith.constant 0 : index
      %274 = vector.load %arg5[%c0_81, %c0_82] : memref<8x128xf32, #tpu.memory_space<vmem>>, vector<8x128xf32>
      tpu.vector_store %arg5[%c0_81, %c0_82], %273 {strides = array<i32>} : memref<8x128xf32, #tpu.memory_space<vmem>>, vector<8x128xf32>,
    } else {
    }
    %c0 = arith.constant 0 : index
    %c0_1 = arith.constant 0 : index
    %3 = vector.load %arg2[%c0, %c0_1] : memref<128x384xf32, #tpu.memory_space<vmem>>, vector<128x384xf32>
    %c0_2 = arith.constant 0 : index
    %c0_3 = arith.constant 0 : index
    %4 = vector.load %arg3[%c0_2, %c0_3] : memref<1x384xf32, #tpu.memory_space<vmem>>, vector<1x384xf32>
    %5 = vector.shape_cast %4 : vector<1x384xf32> to vector<1x384xf32>
    %6 = vector.broadcast %5 : vector<1x384xf32> to vector<8x384xf32>
    %c0_4 = arith.constant 0 : index
    %c0_5 = arith.constant 0 : index
    %7 = vector.load %arg5[%c0_4, %c0_5] : memref<8x128xf32, #tpu.memory_space<vmem>>, vector<8x128xf32>
    %c0_6 = arith.constant 0 : index
    %c0_7 = arith.constant 0 : index
    %c0_8 = arith.constant 0 : index
    %8 = vector.load %arg1[%c0_6, %c0_7, %c0_8] : memref<8x8x384xf32, #tpu.memory_space<vmem>>, vector<8x1x384xf32>
    %9 = vector.shape_cast %8 : vector<8x1x384xf32> to vector<8x384xf32>
    %cst = arith.constant dense<0.000000e+00> : vector<8x384xf32>
    %10 = tpu.matmul %7, %3, %cst {dimension_numbers = #tpu.dot_dimension_numbers<[1], [0], [0], [1], [0, 0, 1, 1], [], []>} : vector<8x128xf32>, vector<128x384xf32>, vector<8x384xf32> -> vector<8x384xf32>
    %11 = arith.addf %10, %6 : vector<8x384xf32>
    %12 = vector.extract_strided_slice %9 {offsets = [0, 0], sizes = [8, 128], strides = [1, 1]} : vector<8x384xf32> to vector<8x128xf32>
    %13 = vector.extract_strided_slice %11 {offsets = [0, 0], sizes = [8, 128], strides = [1, 1]} : vector<8x384xf32> to vector<8x128xf32>
    %14 = arith.addf %12, %13 : vector<8x128xf32>
    %15 = arith.negf %14 : vector<8x128xf32>
    %16 = math.exp %15 : vector<8x128xf32>
    %cst_9 = arith.constant 1.000000e+00 : f32
    %17 = vector.broadcast %cst_9 : f32 to vector<8x128xf32>
    %18 = arith.addf %17, %16 : vector<8x128xf32>
    %19 = arith.divf %17, %18 : vector<8x128xf32>
    %20 = vector.extract_strided_slice %9 {offsets = [0, 128], sizes = [8, 128], strides = [1, 1]} : vector<8x384xf32> to vector<8x128xf32>
    %21 = vector.extract_strided_slice %11 {offsets = [0, 128], sizes = [8, 128], strides = [1, 1]} : vector<8x384xf32> to vector<8x128xf32>
    %22 = arith.addf %20, %21 : vector<8x128xf32>
    %23 = arith.negf %22 : vector<8x128xf32>
    %24 = math.exp %23 : vector<8x128xf32>
    %cst_10 = arith.constant 1.000000e+00 : f32
    %25 = vector.broadcast %cst_10 : f32 to vector<8x128xf32>
    %26 = arith.addf %25, %24 : vector<8x128xf32>
    %27 = arith.divf %25, %26 : vector<8x128xf32>
    %28 = vector.extract_strided_slice %9 {offsets = [0, 256], sizes = [8, 128], strides = [1, 1]} : vector<8x384xf32> to vector<8x128xf32>
    %29 = vector.extract_strided_slice %11 {offsets = [0, 256], sizes = [8, 128], strides = [1, 1]} : vector<8x384xf32> to vector<8x128xf32>
    %30 = arith.mulf %19, %29 : vector<8x128xf32>
    %31 = arith.addf %28, %30 : vector<8x128xf32>
    %32 = math.tanh %31 : vector<8x128xf32>
    %cst_11 = arith.constant 1.000000e+00 : f32
    %33 = vector.broadcast %cst_11 : f32 to vector<8x128xf32>
    %34 = arith.subf %33, %27 : vector<8x128xf32>
    %35 = arith.mulf %34, %32 : vector<8x128xf32>
    %36 = arith.mulf %27, %7 : vector<8x128xf32>
    %37 = arith.addf %35, %36 : vector<8x128xf32>
    %c0_12 = arith.constant 0 : index
    %c0_13 = arith.constant 0 : index
    %c0_14 = arith.constant 0 : index
    %38 = vector.load %arg4[%c0_12, %c0_13, %c0_14] : memref<8x8x128xf32, #tpu.memory_space<vmem>>, vector<8x1x128xf32>
    %39 = vector.shape_cast %38 : vector<8x1x128xf32> to vector<8x128xf32>
    %40 = vector.shape_cast %37 : vector<8x128xf32> to vector<8x1x128xf32>
    tpu.vector_store %arg4[%c0_12, %c0_13, %c0_14], %40 {strides = array<i32>} : memref<8x8x128xf32, #tpu.memory_space<vmem>>, vector<8x1x128xf32>,
    %c0_15 = arith.constant 0 : index
    %c1 = arith.constant 1 : index
    %c0_16 = arith.constant 0 : index
    %41 = vector.load %arg1[%c0_15, %c1, %c0_16] : memref<8x8x384xf32, #tpu.memory_space<vmem>>, vector<8x1x384xf32>
    %42 = vector.shape_cast %41 : vector<8x1x384xf32> to vector<8x384xf32>
    %cst_17 = arith.constant dense<0.000000e+00> : vector<8x384xf32>
    %43 = tpu.matmul %37, %3, %cst_17 {dimension_numbers = #tpu.dot_dimension_numbers<[1], [0], [0], [1], [0, 0, 1, 1], [], []>} : vector<8x128xf32>, vector<128x384xf32>, vector<8x384xf32> -> vector<8x384xf32>
    %44 = arith.addf %43, %6 : vector<8x384xf32>
    %45 = vector.extract_strided_slice %42 {offsets = [0, 0], sizes = [8, 128], strides = [1, 1]} : vector<8x384xf32> to vector<8x128xf32>
    %46 = vector.extract_strided_slice %44 {offsets = [0, 0], sizes = [8, 128], strides = [1, 1]} : vector<8x384xf32> to vector<8x128xf32>
    %47 = arith.addf %45, %46 : vector<8x128xf32>
    %48 = arith.negf %47 : vector<8x128xf32>
    %49 = math.exp %48 : vector<8x128xf32>
    %cst_18 = arith.constant 1.000000e+00 : f32
    %50 = vector.broadcast %cst_18 : f32 to vector<8x128xf32>
    %51 = arith.addf %50, %49 : vector<8x128xf32>
    %52 = arith.divf %50, %51 : vector<8x128xf32>
    %53 = vector.extract_strided_slice %42 {offsets = [0, 128], sizes = [8, 128], strides = [1, 1]} : vector<8x384xf32> to vector<8x128xf32>
    %54 = vector.extract_strided_slice %44 {offsets = [0, 128], sizes = [8, 128], strides = [1, 1]} : vector<8x384xf32> to vector<8x128xf32>
    %55 = arith.addf %53, %54 : vector<8x128xf32>
    %56 = arith.negf %55 : vector<8x128xf32>
    %57 = math.exp %56 : vector<8x128xf32>
    %cst_19 = arith.constant 1.000000e+00 : f32
    %58 = vector.broadcast %cst_19 : f32 to vector<8x128xf32>
    %59 = arith.addf %58, %57 : vector<8x128xf32>
    %60 = arith.divf %58, %59 : vector<8x128xf32>
    %61 = vector.extract_strided_slice %42 {offsets = [0, 256], sizes = [8, 128], strides = [1, 1]} : vector<8x384xf32> to vector<8x128xf32>
    %62 = vector.extract_strided_slice %44 {offsets = [0, 256], sizes = [8, 128], strides = [1, 1]} : vector<8x384xf32> to vector<8x128xf32>
    %63 = arith.mulf %52, %62 : vector<8x128xf32>
    %64 = arith.addf %61, %63 : vector<8x128xf32>
    %65 = math.tanh %64 : vector<8x128xf32>
    %cst_20 = arith.constant 1.000000e+00 : f32
    %66 = vector.broadcast %cst_20 : f32 to vector<8x128xf32>
    %67 = arith.subf %66, %60 : vector<8x128xf32>
    %68 = arith.mulf %67, %65 : vector<8x128xf32>
    %69 = arith.mulf %60, %37 : vector<8x128xf32>
    %70 = arith.addf %68, %69 : vector<8x128xf32>
    %c0_21 = arith.constant 0 : index
    %c1_22 = arith.constant 1 : index
    %c0_23 = arith.constant 0 : index
    %71 = vector.load %arg4[%c0_21, %c1_22, %c0_23] : memref<8x8x128xf32, #tpu.memory_space<vmem>>, vector<8x1x128xf32>
    %72 = vector.shape_cast %71 : vector<8x1x128xf32> to vector<8x128xf32>
    %73 = vector.shape_cast %70 : vector<8x128xf32> to vector<8x1x128xf32>
    tpu.vector_store %arg4[%c0_21, %c1_22, %c0_23], %73 {strides = array<i32>} : memref<8x8x128xf32, #tpu.memory_space<vmem>>, vector<8x1x128xf32>,
    %c0_24 = arith.constant 0 : index
    %c2 = arith.constant 2 : index
    %c0_25 = arith.constant 0 : index
    %74 = vector.load %arg1[%c0_24, %c2, %c0_25] : memref<8x8x384xf32, #tpu.memory_space<vmem>>, vector<8x1x384xf32>
    %75 = vector.shape_cast %74 : vector<8x1x384xf32> to vector<8x384xf32>
    %cst_26 = arith.constant dense<0.000000e+00> : vector<8x384xf32>
    %76 = tpu.matmul %70, %3, %cst_26 {dimension_numbers = #tpu.dot_dimension_numbers<[1], [0], [0], [1], [0, 0, 1, 1], [], []>} : vector<8x128xf32>, vector<128x384xf32>, vector<8x384xf32> -> vector<8x384xf32>
    %77 = arith.addf %76, %6 : vector<8x384xf32>
    %78 = vector.extract_strided_slice %75 {offsets = [0, 0], sizes = [8, 128], strides = [1, 1]} : vector<8x384xf32> to vector<8x128xf32>
    %79 = vector.extract_strided_slice %77 {offsets = [0, 0], sizes = [8, 128], strides = [1, 1]} : vector<8x384xf32> to vector<8x128xf32>
    %80 = arith.addf %78, %79 : vector<8x128xf32>
    %81 = arith.negf %80 : vector<8x128xf32>
    %82 = math.exp %81 : vector<8x128xf32>
    %cst_27 = arith.constant 1.000000e+00 : f32
    %83 = vector.broadcast %cst_27 : f32 to vector<8x128xf32>
    %84 = arith.addf %83, %82 : vector<8x128xf32>
    %85 = arith.divf %83, %84 : vector<8x128xf32>
    %86 = vector.extract_strided_slice %75 {offsets = [0, 128], sizes = [8, 128], strides = [1, 1]} : vector<8x384xf32> to vector<8x128xf32>
    %87 = vector.extract_strided_slice %77 {offsets = [0, 128], sizes = [8, 128], strides = [1, 1]} : vector<8x384xf32> to vector<8x128xf32>
    %88 = arith.addf %86, %87 : vector<8x128xf32>
    %89 = arith.negf %88 : vector<8x128xf32>
    %90 = math.exp %89 : vector<8x128xf32>
    %cst_28 = arith.constant 1.000000e+00 : f32
    %91 = vector.broadcast %cst_28 : f32 to vector<8x128xf32>
    %92 = arith.addf %91, %90 : vector<8x128xf32>
    %93 = arith.divf %91, %92 : vector<8x128xf32>
    %94 = vector.extract_strided_slice %75 {offsets = [0, 256], sizes = [8, 128], strides = [1, 1]} : vector<8x384xf32> to vector<8x128xf32>
    %95 = vector.extract_strided_slice %77 {offsets = [0, 256], sizes = [8, 128], strides = [1, 1]} : vector<8x384xf32> to vector<8x128xf32>
    %96 = arith.mulf %85, %95 : vector<8x128xf32>
    %97 = arith.addf %94, %96 : vector<8x128xf32>
    %98 = math.tanh %97 : vector<8x128xf32>
    %cst_29 = arith.constant 1.000000e+00 : f32
    %99 = vector.broadcast %cst_29 : f32 to vector<8x128xf32>
    %100 = arith.subf %99, %93 : vector<8x128xf32>
    %101 = arith.mulf %100, %98 : vector<8x128xf32>
    %102 = arith.mulf %93, %70 : vector<8x128xf32>
    %103 = arith.addf %101, %102 : vector<8x128xf32>
    %c0_30 = arith.constant 0 : index
    %c2_31 = arith.constant 2 : index
    %c0_32 = arith.constant 0 : index
    %104 = vector.load %arg4[%c0_30, %c2_31, %c0_32] : memref<8x8x128xf32, #tpu.memory_space<vmem>>, vector<8x1x128xf32>
    %105 = vector.shape_cast %104 : vector<8x1x128xf32> to vector<8x128xf32>
    %106 = vector.shape_cast %103 : vector<8x128xf32> to vector<8x1x128xf32>
    tpu.vector_store %arg4[%c0_30, %c2_31, %c0_32], %106 {strides = array<i32>} : memref<8x8x128xf32, #tpu.memory_space<vmem>>, vector<8x1x128xf32>,
    %c0_33 = arith.constant 0 : index
    %c3 = arith.constant 3 : index
    %c0_34 = arith.constant 0 : index
    %107 = vector.load %arg1[%c0_33, %c3, %c0_34] : memref<8x8x384xf32, #tpu.memory_space<vmem>>, vector<8x1x384xf32>
    %108 = vector.shape_cast %107 : vector<8x1x384xf32> to vector<8x384xf32>
    %cst_35 = arith.constant dense<0.000000e+00> : vector<8x384xf32>
    %109 = tpu.matmul %103, %3, %cst_35 {dimension_numbers = #tpu.dot_dimension_numbers<[1], [0], [0], [1], [0, 0, 1, 1], [], []>} : vector<8x128xf32>, vector<128x384xf32>, vector<8x384xf32> -> vector<8x384xf32>
    %110 = arith.addf %109, %6 : vector<8x384xf32>
    %111 = vector.extract_strided_slice %108 {offsets = [0, 0], sizes = [8, 128], strides = [1, 1]} : vector<8x384xf32> to vector<8x128xf32>
    %112 = vector.extract_strided_slice %110 {offsets = [0, 0], sizes = [8, 128], strides = [1, 1]} : vector<8x384xf32> to vector<8x128xf32>
    %113 = arith.addf %111, %112 : vector<8x128xf32>
    %114 = arith.negf %113 : vector<8x128xf32>
    %115 = math.exp %114 : vector<8x128xf32>
    %cst_36 = arith.constant 1.000000e+00 : f32
    %116 = vector.broadcast %cst_36 : f32 to vector<8x128xf32>
    %117 = arith.addf %116, %115 : vector<8x128xf32>
    %118 = arith.divf %116, %117 : vector<8x128xf32>
    %119 = vector.extract_strided_slice %108 {offsets = [0, 128], sizes = [8, 128], strides = [1, 1]} : vector<8x384xf32> to vector<8x128xf32>
    %120 = vector.extract_strided_slice %110 {offsets = [0, 128], sizes = [8, 128], strides = [1, 1]} : vector<8x384xf32> to vector<8x128xf32>
    %121 = arith.addf %119, %120 : vector<8x128xf32>
    %122 = arith.negf %121 : vector<8x128xf32>
    %123 = math.exp %122 : vector<8x128xf32>
    %cst_37 = arith.constant 1.000000e+00 : f32
    %124 = vector.broadcast %cst_37 : f32 to vector<8x128xf32>
    %125 = arith.addf %124, %123 : vector<8x128xf32>
    %126 = arith.divf %124, %125 : vector<8x128xf32>
    %127 = vector.extract_strided_slice %108 {offsets = [0, 256], sizes = [8, 128], strides = [1, 1]} : vector<8x384xf32> to vector<8x128xf32>
    %128 = vector.extract_strided_slice %110 {offsets = [0, 256], sizes = [8, 128], strides = [1, 1]} : vector<8x384xf32> to vector<8x128xf32>
    %129 = arith.mulf %118, %128 : vector<8x128xf32>
    %130 = arith.addf %127, %129 : vector<8x128xf32>
    %131 = math.tanh %130 : vector<8x128xf32>
    %cst_38 = arith.constant 1.000000e+00 : f32
    %132 = vector.broadcast %cst_38 : f32 to vector<8x128xf32>
    %133 = arith.subf %132, %126 : vector<8x128xf32>
    %134 = arith.mulf %133, %131 : vector<8x128xf32>
    %135 = arith.mulf %126, %103 : vector<8x128xf32>
    %136 = arith.addf %134, %135 : vector<8x128xf32>
    %c0_39 = arith.constant 0 : index
    %c3_40 = arith.constant 3 : index
    %c0_41 = arith.constant 0 : index
    %137 = vector.load %arg4[%c0_39, %c3_40, %c0_41] : memref<8x8x128xf32, #tpu.memory_space<vmem>>, vector<8x1x128xf32>
    %138 = vector.shape_cast %137 : vector<8x1x128xf32> to vector<8x128xf32>
    %139 = vector.shape_cast %136 : vector<8x128xf32> to vector<8x1x128xf32>
    tpu.vector_store %arg4[%c0_39, %c3_40, %c0_41], %139 {strides = array<i32>} : memref<8x8x128xf32, #tpu.memory_space<vmem>>, vector<8x1x128xf32>,
    %c0_42 = arith.constant 0 : index
    %c4 = arith.constant 4 : index
    %c0_43 = arith.constant 0 : index
    %140 = vector.load %arg1[%c0_42, %c4, %c0_43] : memref<8x8x384xf32, #tpu.memory_space<vmem>>, vector<8x1x384xf32>
    %141 = vector.shape_cast %140 : vector<8x1x384xf32> to vector<8x384xf32>
    %cst_44 = arith.constant dense<0.000000e+00> : vector<8x384xf32>
    %142 = tpu.matmul %136, %3, %cst_44 {dimension_numbers = #tpu.dot_dimension_numbers<[1], [0], [0], [1], [0, 0, 1, 1], [], []>} : vector<8x128xf32>, vector<128x384xf32>, vector<8x384xf32> -> vector<8x384xf32>
    %143 = arith.addf %142, %6 : vector<8x384xf32>
    %144 = vector.extract_strided_slice %141 {offsets = [0, 0], sizes = [8, 128], strides = [1, 1]} : vector<8x384xf32> to vector<8x128xf32>
    %145 = vector.extract_strided_slice %143 {offsets = [0, 0], sizes = [8, 128], strides = [1, 1]} : vector<8x384xf32> to vector<8x128xf32>
    %146 = arith.addf %144, %145 : vector<8x128xf32>
    %147 = arith.negf %146 : vector<8x128xf32>
    %148 = math.exp %147 : vector<8x128xf32>
    %cst_45 = arith.constant 1.000000e+00 : f32
    %149 = vector.broadcast %cst_45 : f32 to vector<8x128xf32>
    %150 = arith.addf %149, %148 : vector<8x128xf32>
    %151 = arith.divf %149, %150 : vector<8x128xf32>
    %152 = vector.extract_strided_slice %141 {offsets = [0, 128], sizes = [8, 128], strides = [1, 1]} : vector<8x384xf32> to vector<8x128xf32>
    %153 = vector.extract_strided_slice %143 {offsets = [0, 128], sizes = [8, 128], strides = [1, 1]} : vector<8x384xf32> to vector<8x128xf32>
    %154 = arith.addf %152, %153 : vector<8x128xf32>
    %155 = arith.negf %154 : vector<8x128xf32>
    %156 = math.exp %155 : vector<8x128xf32>
    %cst_46 = arith.constant 1.000000e+00 : f32
    %157 = vector.broadcast %cst_46 : f32 to vector<8x128xf32>
    %158 = arith.addf %157, %156 : vector<8x128xf32>
    %159 = arith.divf %157, %158 : vector<8x128xf32>
    %160 = vector.extract_strided_slice %141 {offsets = [0, 256], sizes = [8, 128], strides = [1, 1]} : vector<8x384xf32> to vector<8x128xf32>
    %161 = vector.extract_strided_slice %143 {offsets = [0, 256], sizes = [8, 128], strides = [1, 1]} : vector<8x384xf32> to vector<8x128xf32>
    %162 = arith.mulf %151, %161 : vector<8x128xf32>
    %163 = arith.addf %160, %162 : vector<8x128xf32>
    %164 = math.tanh %163 : vector<8x128xf32>
    %cst_47 = arith.constant 1.000000e+00 : f32
    %165 = vector.broadcast %cst_47 : f32 to vector<8x128xf32>
    %166 = arith.subf %165, %159 : vector<8x128xf32>
    %167 = arith.mulf %166, %164 : vector<8x128xf32>
    %168 = arith.mulf %159, %136 : vector<8x128xf32>
    %169 = arith.addf %167, %168 : vector<8x128xf32>
    %c0_48 = arith.constant 0 : index
    %c4_49 = arith.constant 4 : index
    %c0_50 = arith.constant 0 : index
    %170 = vector.load %arg4[%c0_48, %c4_49, %c0_50] : memref<8x8x128xf32, #tpu.memory_space<vmem>>, vector<8x1x128xf32>
    %171 = vector.shape_cast %170 : vector<8x1x128xf32> to vector<8x128xf32>
    %172 = vector.shape_cast %169 : vector<8x128xf32> to vector<8x1x128xf32>
    tpu.vector_store %arg4[%c0_48, %c4_49, %c0_50], %172 {strides = array<i32>} : memref<8x8x128xf32, #tpu.memory_space<vmem>>, vector<8x1x128xf32>,
    %c0_51 = arith.constant 0 : index
    %c5 = arith.constant 5 : index
    %c0_52 = arith.constant 0 : index
    %173 = vector.load %arg1[%c0_51, %c5, %c0_52] : memref<8x8x384xf32, #tpu.memory_space<vmem>>, vector<8x1x384xf32>
    %174 = vector.shape_cast %173 : vector<8x1x384xf32> to vector<8x384xf32>
    %cst_53 = arith.constant dense<0.000000e+00> : vector<8x384xf32>
    %175 = tpu.matmul %169, %3, %cst_53 {dimension_numbers = #tpu.dot_dimension_numbers<[1], [0], [0], [1], [0, 0, 1, 1], [], []>} : vector<8x128xf32>, vector<128x384xf32>, vector<8x384xf32> -> vector<8x384xf32>
    %176 = arith.addf %175, %6 : vector<8x384xf32>
    %177 = vector.extract_strided_slice %174 {offsets = [0, 0], sizes = [8, 128], strides = [1, 1]} : vector<8x384xf32> to vector<8x128xf32>
    %178 = vector.extract_strided_slice %176 {offsets = [0, 0], sizes = [8, 128], strides = [1, 1]} : vector<8x384xf32> to vector<8x128xf32>
    %179 = arith.addf %177, %178 : vector<8x128xf32>
    %180 = arith.negf %179 : vector<8x128xf32>
    %181 = math.exp %180 : vector<8x128xf32>
    %cst_54 = arith.constant 1.000000e+00 : f32
    %182 = vector.broadcast %cst_54 : f32 to vector<8x128xf32>
    %183 = arith.addf %182, %181 : vector<8x128xf32>
    %184 = arith.divf %182, %183 : vector<8x128xf32>
    %185 = vector.extract_strided_slice %174 {offsets = [0, 128], sizes = [8, 128], strides = [1, 1]} : vector<8x384xf32> to vector<8x128xf32>
    %186 = vector.extract_strided_slice %176 {offsets = [0, 128], sizes = [8, 128], strides = [1, 1]} : vector<8x384xf32> to vector<8x128xf32>
    %187 = arith.addf %185, %186 : vector<8x128xf32>
    %188 = arith.negf %187 : vector<8x128xf32>
    %189 = math.exp %188 : vector<8x128xf32>
    %cst_55 = arith.constant 1.000000e+00 : f32
    %190 = vector.broadcast %cst_55 : f32 to vector<8x128xf32>
    %191 = arith.addf %190, %189 : vector<8x128xf32>
    %192 = arith.divf %190, %191 : vector<8x128xf32>
    %193 = vector.extract_strided_slice %174 {offsets = [0, 256], sizes = [8, 128], strides = [1, 1]} : vector<8x384xf32> to vector<8x128xf32>
    %194 = vector.extract_strided_slice %176 {offsets = [0, 256], sizes = [8, 128], strides = [1, 1]} : vector<8x384xf32> to vector<8x128xf32>
    %195 = arith.mulf %184, %194 : vector<8x128xf32>
    %196 = arith.addf %193, %195 : vector<8x128xf32>
    %197 = math.tanh %196 : vector<8x128xf32>
    %cst_56 = arith.constant 1.000000e+00 : f32
    %198 = vector.broadcast %cst_56 : f32 to vector<8x128xf32>
    %199 = arith.subf %198, %192 : vector<8x128xf32>
    %200 = arith.mulf %199, %197 : vector<8x128xf32>
    %201 = arith.mulf %192, %169 : vector<8x128xf32>
    %202 = arith.addf %200, %201 : vector<8x128xf32>
    %c0_57 = arith.constant 0 : index
    %c5_58 = arith.constant 5 : index
    %c0_59 = arith.constant 0 : index
    %203 = vector.load %arg4[%c0_57, %c5_58, %c0_59] : memref<8x8x128xf32, #tpu.memory_space<vmem>>, vector<8x1x128xf32>
    %204 = vector.shape_cast %203 : vector<8x1x128xf32> to vector<8x128xf32>
    %205 = vector.shape_cast %202 : vector<8x128xf32> to vector<8x1x128xf32>
    tpu.vector_store %arg4[%c0_57, %c5_58, %c0_59], %205 {strides = array<i32>} : memref<8x8x128xf32, #tpu.memory_space<vmem>>, vector<8x1x128xf32>,
    %c0_60 = arith.constant 0 : index
    %c6 = arith.constant 6 : index
    %c0_61 = arith.constant 0 : index
    %206 = vector.load %arg1[%c0_60, %c6, %c0_61] : memref<8x8x384xf32, #tpu.memory_space<vmem>>, vector<8x1x384xf32>
    %207 = vector.shape_cast %206 : vector<8x1x384xf32> to vector<8x384xf32>
    %cst_62 = arith.constant dense<0.000000e+00> : vector<8x384xf32>
    %208 = tpu.matmul %202, %3, %cst_62 {dimension_numbers = #tpu.dot_dimension_numbers<[1], [0], [0], [1], [0, 0, 1, 1], [], []>} : vector<8x128xf32>, vector<128x384xf32>, vector<8x384xf32> -> vector<8x384xf32>
    %209 = arith.addf %208, %6 : vector<8x384xf32>
    %210 = vector.extract_strided_slice %207 {offsets = [0, 0], sizes = [8, 128], strides = [1, 1]} : vector<8x384xf32> to vector<8x128xf32>
    %211 = vector.extract_strided_slice %209 {offsets = [0, 0], sizes = [8, 128], strides = [1, 1]} : vector<8x384xf32> to vector<8x128xf32>
    %212 = arith.addf %210, %211 : vector<8x128xf32>
    %213 = arith.negf %212 : vector<8x128xf32>
    %214 = math.exp %213 : vector<8x128xf32>
    %cst_63 = arith.constant 1.000000e+00 : f32
    %215 = vector.broadcast %cst_63 : f32 to vector<8x128xf32>
    %216 = arith.addf %215, %214 : vector<8x128xf32>
    %217 = arith.divf %215, %216 : vector<8x128xf32>
    %218 = vector.extract_strided_slice %207 {offsets = [0, 128], sizes = [8, 128], strides = [1, 1]} : vector<8x384xf32> to vector<8x128xf32>
    %219 = vector.extract_strided_slice %209 {offsets = [0, 128], sizes = [8, 128], strides = [1, 1]} : vector<8x384xf32> to vector<8x128xf32>
    %220 = arith.addf %218, %219 : vector<8x128xf32>
    %221 = arith.negf %220 : vector<8x128xf32>
    %222 = math.exp %221 : vector<8x128xf32>
    %cst_64 = arith.constant 1.000000e+00 : f32
    %223 = vector.broadcast %cst_64 : f32 to vector<8x128xf32>
    %224 = arith.addf %223, %222 : vector<8x128xf32>
    %225 = arith.divf %223, %224 : vector<8x128xf32>
    %226 = vector.extract_strided_slice %207 {offsets = [0, 256], sizes = [8, 128], strides = [1, 1]} : vector<8x384xf32> to vector<8x128xf32>
    %227 = vector.extract_strided_slice %209 {offsets = [0, 256], sizes = [8, 128], strides = [1, 1]} : vector<8x384xf32> to vector<8x128xf32>
    %228 = arith.mulf %217, %227 : vector<8x128xf32>
    %229 = arith.addf %226, %228 : vector<8x128xf32>
    %230 = math.tanh %229 : vector<8x128xf32>
    %cst_65 = arith.constant 1.000000e+00 : f32
    %231 = vector.broadcast %cst_65 : f32 to vector<8x128xf32>
    %232 = arith.subf %231, %225 : vector<8x128xf32>
    %233 = arith.mulf %232, %230 : vector<8x128xf32>
    %234 = arith.mulf %225, %202 : vector<8x128xf32>
    %235 = arith.addf %233, %234 : vector<8x128xf32>
    %c0_66 = arith.constant 0 : index
    %c6_67 = arith.constant 6 : index
    %c0_68 = arith.constant 0 : index
    %236 = vector.load %arg4[%c0_66, %c6_67, %c0_68] : memref<8x8x128xf32, #tpu.memory_space<vmem>>, vector<8x1x128xf32>
    %237 = vector.shape_cast %236 : vector<8x1x128xf32> to vector<8x128xf32>
    %238 = vector.shape_cast %235 : vector<8x128xf32> to vector<8x1x128xf32>
    tpu.vector_store %arg4[%c0_66, %c6_67, %c0_68], %238 {strides = array<i32>} : memref<8x8x128xf32, #tpu.memory_space<vmem>>, vector<8x1x128xf32>,
    %c0_69 = arith.constant 0 : index
    %c7 = arith.constant 7 : index
    %c0_70 = arith.constant 0 : index
    %239 = vector.load %arg1[%c0_69, %c7, %c0_70] : memref<8x8x384xf32, #tpu.memory_space<vmem>>, vector<8x1x384xf32>
    %240 = vector.shape_cast %239 : vector<8x1x384xf32> to vector<8x384xf32>
    %cst_71 = arith.constant dense<0.000000e+00> : vector<8x384xf32>
    %241 = tpu.matmul %235, %3, %cst_71 {dimension_numbers = #tpu.dot_dimension_numbers<[1], [0], [0], [1], [0, 0, 1, 1], [], []>} : vector<8x128xf32>, vector<128x384xf32>, vector<8x384xf32> -> vector<8x384xf32>
    %242 = arith.addf %241, %6 : vector<8x384xf32>
    %243 = vector.extract_strided_slice %240 {offsets = [0, 0], sizes = [8, 128], strides = [1, 1]} : vector<8x384xf32> to vector<8x128xf32>
    %244 = vector.extract_strided_slice %242 {offsets = [0, 0], sizes = [8, 128], strides = [1, 1]} : vector<8x384xf32> to vector<8x128xf32>
    %245 = arith.addf %243, %244 : vector<8x128xf32>
    %246 = arith.negf %245 : vector<8x128xf32>
    %247 = math.exp %246 : vector<8x128xf32>
    %cst_72 = arith.constant 1.000000e+00 : f32
    %248 = vector.broadcast %cst_72 : f32 to vector<8x128xf32>
    %249 = arith.addf %248, %247 : vector<8x128xf32>
    %250 = arith.divf %248, %249 : vector<8x128xf32>
    %251 = vector.extract_strided_slice %240 {offsets = [0, 128], sizes = [8, 128], strides = [1, 1]} : vector<8x384xf32> to vector<8x128xf32>
    %252 = vector.extract_strided_slice %242 {offsets = [0, 128], sizes = [8, 128], strides = [1, 1]} : vector<8x384xf32> to vector<8x128xf32>
    %253 = arith.addf %251, %252 : vector<8x128xf32>
    %254 = arith.negf %253 : vector<8x128xf32>
    %255 = math.exp %254 : vector<8x128xf32>
    %cst_73 = arith.constant 1.000000e+00 : f32
    %256 = vector.broadcast %cst_73 : f32 to vector<8x128xf32>
    %257 = arith.addf %256, %255 : vector<8x128xf32>
    %258 = arith.divf %256, %257 : vector<8x128xf32>
    %259 = vector.extract_strided_slice %240 {offsets = [0, 256], sizes = [8, 128], strides = [1, 1]} : vector<8x384xf32> to vector<8x128xf32>
    %260 = vector.extract_strided_slice %242 {offsets = [0, 256], sizes = [8, 128], strides = [1, 1]} : vector<8x384xf32> to vector<8x128xf32>
    %261 = arith.mulf %250, %260 : vector<8x128xf32>
    %262 = arith.addf %259, %261 : vector<8x128xf32>
    %263 = math.tanh %262 : vector<8x128xf32>
    %cst_74 = arith.constant 1.000000e+00 : f32
    %264 = vector.broadcast %cst_74 : f32 to vector<8x128xf32>
    %265 = arith.subf %264, %258 : vector<8x128xf32>
    %266 = arith.mulf %265, %263 : vector<8x128xf32>
    %267 = arith.mulf %258, %235 : vector<8x128xf32>
    %268 = arith.addf %266, %267 : vector<8x128xf32>
    %c0_75 = arith.constant 0 : index
    %c7_76 = arith.constant 7 : index
    %c0_77 = arith.constant 0 : index
    %269 = vector.load %arg4[%c0_75, %c7_76, %c0_77] : memref<8x8x128xf32, #tpu.memory_space<vmem>>, vector<8x1x128xf32>
    %270 = vector.shape_cast %269 : vector<8x1x128xf32> to vector<8x128xf32>
    %271 = vector.shape_cast %268 : vector<8x128xf32> to vector<8x1x128xf32>
    tpu.vector_store %arg4[%c0_75, %c7_76, %c0_77], %271 {strides = array<i32>} : memref<8x8x128xf32, #tpu.memory_space<vmem>>, vector<8x1x128xf32>,
    %c0_78 = arith.constant 0 : index
    %c0_79 = arith.constant 0 : index
    %272 = vector.load %arg5[%c0_78, %c0_79] : memref<8x128xf32, #tpu.memory_space<vmem>>, vector<8x128xf32>
    tpu.vector_store %arg5[%c0_78, %c0_79], %268 {strides = array<i32>} : memref<8x128xf32, #tpu.memory_space<vmem>>, vector<8x128xf32>,
    return
  }
  func.func @transform_0(%arg0: i32) -> (i32, i32, i32) {
    %c0_i32 = arith.constant 0 : i32
    %c0_i32_0 = arith.constant 0 : i32
    %c0_i32_1 = arith.constant 0 : i32
    return %c0_i32, %arg0, %c0_i32_0 : i32, i32, i32
  }
  func.func @transform_1(%arg0: i32) -> (i32, i32) {
    %c0_i32 = arith.constant 0 : i32
    %c0_i32_0 = arith.constant 0 : i32
    %c0_i32_1 = arith.constant 0 : i32
    return %c0_i32, %c0_i32_0 : i32, i32
  }
  func.func @transform_2(%arg0: i32) -> (i32, i32) {
    %c0_i32 = arith.constant 0 : i32
    %c0_i32_0 = arith.constant 0 : i32
    %c0_i32_1 = arith.constant 0 : i32
    return %c0_i32, %c0_i32_0 : i32, i32
  }
  func.func @transform_3(%arg0: i32) -> (i32, i32, i32) {
    %c0_i32 = arith.constant 0 : i32
    %c0_i32_0 = arith.constant 0 : i32
    %c0_i32_1 = arith.constant 0 : i32
    return %c0_i32, %arg0, %c0_i32_0 : i32, i32, i32
  }
}

</mosaic_0001>

<llo_original>
// kernel: tpu_custom_call.1
$region0: #{tpu_custom_call.1}
  #allocation0 [shape = 'u32[]', space=smem, size = 0x4, offset = 0x4, fixed_abs, tag = 'smem constant byte address 0x4 - core index']
  #allocation1 [shape = 'u32[144,128]{1,0:T(1,128)}', space=vmem, size = 0x12000, scoped, tag = 'internal scratch']
  #allocation2 [shape = 'f32[8,128]{1,0:T(8,128)}', space=vmem, size = 0x1000, scoped, tag = 'scratch operand']
  %s0 = inlined_call_operand.hbm [shape: f32[8,8,384], index: 0, kind: input, shape index: {}]
  %s1 = inlined_call_operand.hbm [shape: f32[128,384], index: 1, kind: input, shape index: {}]
  %s2 = inlined_call_operand.vmem [shape: f32[1,384], index: 2, kind: input, shape index: {}]
  %s3 = inlined_call_operand.hbm [shape: f32[8,8,128], index: 3, kind: output, shape index: {}]
  %s4 = sld [smem:[#allocation0]]
  $region34: #{tpu_custom_call.1} parent=0
    _
  %s6 = ssub.s32 1, %s4
  %s7 = scalar_select 0, %s6, %s4
  $region1: #{tpu_custom_call.1} parent=0
    #allocation3 [shape = 'u8[98304]{0}', space=vmem, size = 0x18000, scoped, tag = 'input window, operand 0, single buffered']
    #allocation4 [shape = 's32[1]{0}', space=sflag, size = 0x4, scoped, tag = 'scoped memory for tpu_custom_call.1']
    #allocation5 [shape = 's32[1]{0}', space=sflag, size = 0x4, scoped, tag = 'scoped memory for tpu_custom_call.1']
    #allocation6 [shape = 'u8[196608]{0}', space=vmem, size = 0x30000, scoped, tag = 'input window, operand 1, single buffered']
    #allocation7 [shape = 's32[1]{0}', space=sflag, size = 0x4, scoped, tag = 'scoped memory for tpu_custom_call.1']
    #allocation8 [shape = 'u8[32768]{0}', space=vmem, size = 0x8000, scoped, tag = 'output window, operand 0, single buffered']
    %8 = vsyncpa [#allocation4], 0
    %9 = vsyncpa [#allocation7], 0
    %10 = vsyncpa [#allocation5], 0
    // Predicated region
    $region2: #{tpu_custom_call.1} parent=1 // pred_check
      _
    $region3: #{tpu_custom_call.1} parent=1 // pred_check_branch
      %12 = sbr.rel (0) target = $region5
    $region4: #{tpu_custom_call.1} parent=1 // pred_region
      %s14 = ssub.s32 3072, 3072
      %15 = vsyncadd [#allocation4], %s14
      %s16 = sshll.u32 [#allocation3], 4
      %s17 = int_to_ptr.vmem [resolvable:$true] %s16
      %22 = dma.hbm_to_vmem [thread:$0]  %s0, 3072, %s17, [#allocation4], 384, 384, 24
    $region5: #{tpu_custom_call.1} parent=1 // pred_fallthru
      _
    // Predicated region
    $region6: #{tpu_custom_call.1} parent=1 // pred_check
      _
    $region7: #{tpu_custom_call.1} parent=1 // pred_check_branch
      %24 = sbr.rel (0) target = $region9
    $region8: #{tpu_custom_call.1} parent=1 // pred_region
      %s26 = ssub.s32 6144, 6144
      %27 = vsyncadd [#allocation7], %s26
      %s28 = sshll.u32 [#allocation6], 4
      %s29 = int_to_ptr.vmem [resolvable:$true] %s28
      %34 = dma.hbm_to_vmem [thread:$0]  %s1, 6144, %s29, [#allocation7], 384, 384, 24
    $region9: #{tpu_custom_call.1} parent=1 // pred_fallthru
      _
    // Predicated region
    $region10: #{tpu_custom_call.1} parent=1 // pred_check
      _
    $region11: #{tpu_custom_call.1} parent=1 // pred_check_branch
      %36 = sbr.rel (0) target = $region13
    $region12: #{tpu_custom_call.1} parent=1 // pred_region
      _
    $region13: #{tpu_custom_call.1} parent=1 // pred_fallthru
      _
    // Predicated region
    $region14: #{tpu_custom_call.1} parent=1 // pred_check
      _
    $region15: #{tpu_custom_call.1} parent=1 // pred_check_branch
      %38 = sbr.rel (0) target = $region17
    $region16: #{tpu_custom_call.1} parent=1 // pred_region
      %39 = dma.done [#allocation4], 3072
    $region17: #{tpu_custom_call.1} parent=1 // pred_fallthru
      _
    // Predicated region
    $region18: #{tpu_custom_call.1} parent=1 // pred_check
      _
    $region19: #{tpu_custom_call.1} parent=1 // pred_check_branch
      %41 = sbr.rel (0) target = $region21
    $region20: #{tpu_custom_call.1} parent=1 // pred_region
      %42 = dma.done [#allocation7], 6144
    $region21: #{tpu_custom_call.1} parent=1 // pred_fallthru
      _
    %p43 = scmp.eq.s32.totalorder 0, 0
    // Predicated region
    $region22: #{tpu_custom_call.1} parent=1 // pred_check
      %p44 = pneg %p43
    $region23: #{tpu_custom_call.1} parent=1 // pred_check_branch
      %46 = sbr.rel (%p44) target = $region25
    $region24: #{tpu_custom_call.1} parent=1 // pred_region
      %47 = vst [vmem:[#allocation2] sm:$0xff] 0.0
    $region25: #{tpu_custom_call.1} parent=1 // pred_fallthru
      _
    %v48 = vld [vmem:[#allocation6] sm:$0xff]
    %v49 = vld [vmem:[#allocation6 + $0x8] sm:$0xff]
    %v50 = vld [vmem:[#allocation6 + $0x10] sm:$0xff]
    %v51 = vld [vmem:[#allocation6 + $0x18] sm:$0xff]
    %v52 = vld [vmem:[#allocation6 + $0x20] sm:$0xff]
    %v53 = vld [vmem:[#allocation6 + $0x28] sm:$0xff]
    %v54 = vld [vmem:[#allocation6 + $0x30] sm:$0xff]
    %v55 = vld [vmem:[#allocation6 + $0x38] sm:$0xff]
    %v56 = vld [vmem:[#allocation6 + $0x40] sm:$0xff]
    %v57 = vld [vmem:[#allocation6 + $0x48] sm:$0xff]
    %v58 = vld [vmem:[#allocation6 + $0x50] sm:$0xff]
    %v59 = vld [vmem:[#allocation6 + $0x58] sm:$0xff]
    %v60 = vld [vmem:[#allocation6 + $0x60] sm:$0xff]
    %v61 = vld [vmem:[#allocation6 + $0x68] sm:$0xff]
    %v62 = vld [vmem:[#allocation6 + $0x70] sm:$0xff]
    %v63 = vld [vmem:[#allocation6 + $0x78] sm:$0xff]
    %v64 = vld [vmem:[#allocation6 + $0x80] sm:$0xff]
    %v65 = vld [vmem:[#allocation6 + $0x88] sm:$0xff]
    %v66 = vld [vmem:[#allocation6 + $0x90] sm:$0xff]
    %v67 = vld [vmem:[#allocation6 + $0x98] sm:$0xff]
    %v68 = vld [vmem:[#allocation6 + $0xa0] sm:$0xff]
    %v69 = vld [vmem:[#allocation6 + $0xa8] sm:$0xff]
    %v70 = vld [vmem:[#allocation6 + $0xb0] sm:$0xff]
    %v71 = vld [vmem:[#allocation6 + $0xb8] sm:$0xff]
    %v72 = vld [vmem:[#allocation6 + $0xc0] sm:$0xff]
    %v73 = vld [vmem:[#allocation6 + $0xc8] sm:$0xff]
    %v74 = vld [vmem:[#allocation6 + $0xd0] sm:$0xff]
    %v75 = vld [vmem:[#allocation6 + $0xd8] sm:$0xff]
    %v76 = vld [vmem:[#allocation6 + $0xe0] sm:$0xff]
    %v77 = vld [vmem:[#allocation6 + $0xe8] sm:$0xff]
    %v78 = vld [vmem:[#allocation6 + $0xf0] sm:$0xff]
    %v79 = vld [vmem:[#allocation6 + $0xf8] sm:$0xff]
    %v80 = vld [vmem:[#allocation6 + $0x100] sm:$0xff]
    %v81 = vld [vmem:[#allocation6 + $0x108] sm:$0xff]
    %v82 = vld [vmem:[#allocation6 + $0x110] sm:$0xff]
    %v83 = vld [vmem:[#allocation6 + $0x118] sm:$0xff]
    %v84 = vld [vmem:[#allocation6 + $0x120] sm:$0xff]
    %v85 = vld [vmem:[#allocation6 + $0x128] sm:$0xff]
    %v86 = vld [vmem:[#allocation6 + $0x130] sm:$0xff]
    %v87 = vld [vmem:[#allocation6 + $0x138] sm:$0xff]
    %v88 = vld [vmem:[#allocation6 + $0x140] sm:$0xff]
    %v89 = vld [vmem:[#allocation6 + $0x148] sm:$0xff]
    %v90 = vld [vmem:[#allocation6 + $0x150] sm:$0xff]
    %v91 = vld [vmem:[#allocation6 + $0x158] sm:$0xff]
    %v92 = vld [vmem:[#allocation6 + $0x160] sm:$0xff]
    %v93 = vld [vmem:[#allocation6 + $0x168] sm:$0xff]
    %v94 = vld [vmem:[#allocation6 + $0x170] sm:$0xff]
    %v95 = vld [vmem:[#allocation6 + $0x178] sm:$0xff]
    %v96 = vld [vmem:[%s2] sm:$0x7]
    %v98 = vlaneseq
    %v99 = vshrl.u32 %v98, 7
    %v100 = vsub.s32 0, %v99
    %v101 = vrot.slane %v96, %v100
    %v102 = vlaneseq
    %v103 = vshrl.u32 %v102, 7
    %v104 = vsub.s32 1, %v103
    %v105 = vrot.slane %v96, %v104
    %v106 = vlaneseq
    %v107 = vshrl.u32 %v106, 7
    %v108 = vsub.s32 2, %v107
    %v109 = vrot.slane %v96, %v108
    %v113 = vld [vmem:[#allocation2] sm:$0xff]
    %v114 = vld [vmem:[#allocation3] ss:$8 sm:$0x7]
    %s115 = scalar_lea.vmem [#allocation3], 24
    %v116 = vld [vmem:[%s115] ss:$8 sm:$0x7]
    %s117 = scalar_lea.vmem [#allocation3], 48
    %v118 = vld [vmem:[%s117] ss:$8 sm:$0x7]
    %s119 = scalar_lea.vmem [#allocation3], 72
    %v120 = vld [vmem:[%s119] ss:$8 sm:$0x7]
    %s121 = scalar_lea.vmem [#allocation3], 96
    %v122 = vld [vmem:[%s121] ss:$8 sm:$0x7]
    %s123 = scalar_lea.vmem [#allocation3], 120
    %v124 = vld [vmem:[%s123] ss:$8 sm:$0x7]
    %s125 = scalar_lea.vmem [#allocation3], 144
    %v126 = vld [vmem:[%s125] ss:$8 sm:$0x7]
    %s127 = scalar_lea.vmem [#allocation3], 168
    %v128 = vld [vmem:[%s127] ss:$8 sm:$0x7]
    %129 = vmatprep.subr.mxu0 %v94
    %130 = vmatpush1.msra.mxu0 %v93
    %131 = vmatprep.subr.mxu0 %v91
    %132 = vmatpush1.msra.mxu0 %v90
    %133 = vmatprep.subr.mxu0 %v88
    %134 = vmatpush1.msra.mxu0 %v87
    %135 = vmatprep.subr.mxu0 %v85
    %136 = vmatpush1.msra.mxu0 %v84
    %137 = vmatprep.subr.mxu0 %v82
    %138 = vmatpush1.msra.mxu0 %v81
    %139 = vmatprep.subr.mxu0 %v79
    %140 = vmatpush1.msra.mxu0 %v78
    %141 = vmatprep.subr.mxu0 %v76
    %142 = vmatpush1.msra.mxu0 %v75
    %143 = vmatprep.subr.mxu0 %v73
    %144 = vmatpush1.msra.mxu0 %v72
    %145 = vmatprep.subr.mxu0 %v70
    %146 = vmatpush1.msra.mxu0 %v69
    %147 = vmatprep.subr.mxu0 %v67
    %148 = vmatpush1.msra.mxu0 %v66
    %149 = vmatprep.subr.mxu0 %v64
    %150 = vmatpush1.msra.mxu0 %v63
    %151 = vmatprep.subr.mxu0 %v61
    %152 = vmatpush1.msra.mxu0 %v60
    %153 = vmatprep.subr.mxu0 %v58
    %154 = vmatpush1.msra.mxu0 %v57
    %155 = vmatprep.subr.mxu0 %v55
    %156 = vmatpush1.msra.mxu0 %v54
    %157 = vmatprep.subr.mxu0 %v52
    %158 = vmatpush1.msra.mxu0 %v51
    %159 = vmatprep.subr.mxu0 %v49
    %160 = vmatpush1.msra.mxu0 %v48
    %161 = vmatprep.subr.mxu0 0.0
    %162 = vmatpush2.msra.mxu0 0.0
    %163 = vmatprep.subr.mxu0 0.0
    %164 = vmatpush2.msra.mxu0 0.0
    %165 = vmatprep.subr.mxu0 0.0
    %166 = vmatpush2.msra.mxu0 0.0
    %167 = vmatprep.subr.mxu0 0.0
    %168 = vmatpush2.msra.mxu0 0.0
    %169 = vmatprep.subr.mxu0 0.0
    %170 = vmatpush2.msra.mxu0 0.0
    %171 = vmatprep.subr.mxu0 0.0
    %172 = vmatpush2.msra.mxu0 0.0
    %173 = vmatprep.subr.mxu0 0.0
    %174 = vmatpush2.msra.mxu0 0.0
    %175 = vmatprep.subr.mxu0 0.0
    %176 = vmatpush2.msra.mxu0 0.0
    %177 = vmatprep.subr.mxu0 0.0
    %178 = vmatpush2.msra.mxu0 0.0
    %179 = vmatprep.subr.mxu0 0.0
    %180 = vmatpush2.msra.mxu0 0.0
    %181 = vmatprep.subr.mxu0 0.0
    %182 = vmatpush2.msra.mxu0 0.0
    %183 = vmatprep.subr.mxu0 0.0
    %184 = vmatpush2.msra.mxu0 0.0
    %185 = vmatprep.subr.mxu0 0.0
    %186 = vmatpush2.msra.mxu0 0.0
    %187 = vmatprep.subr.mxu0 0.0
    %188 = vmatpush2.msra.mxu0 0.0
    %189 = vmatprep.subr.mxu0 0.0
    %190 = vmatpush2.msra.mxu0 0.0
    %191 = vmatprep.subr.mxu0 0.0
    %192 = vmatpush2.msra.mxu0 0.0
    %193 = vmatprep.mubr.f32.mxu0 0.0
    %194 = vmatmul.mubr.f32.gmra.mxu0 %v113
    %v195 = vpop.f32.mrf.mxu0
    %v196 = vadd.f32 %v101, %v195
    %v197 = vpop.f32.mrf.mxu0
    %v198 = vadd.f32 %v105, %v197
    %199 = vdwg.mxu0
    %200 = vmatprep.subr.mxu0 0.0
    %201 = vmatpush1.msra.mxu0 %v95
    %202 = vmatprep.subr.mxu0 0.0
    %203 = vmatpush1.msra.mxu0 %v92
    %204 = vmatprep.subr.mxu0 0.0
    %205 = vmatpush1.msra.mxu0 %v89
    %206 = vmatprep.subr.mxu0 0.0
    %207 = vmatpush1.msra.mxu0 %v86
    %208 = vmatprep.subr.mxu0 0.0
    %209 = vmatpush1.msra.mxu0 %v83
    %210 = vmatprep.subr.mxu0 0.0
    %211 = vmatpush1.msra.mxu0 %v80
    %212 = vmatprep.subr.mxu0 0.0
    %213 = vmatpush1.msra.mxu0 %v77
    %214 = vmatprep.subr.mxu0 0.0
    %215 = vmatpush1.msra.mxu0 %v74
    %216 = vmatprep.subr.mxu0 0.0
    %217 = vmatpush1.msra.mxu0 %v71
    %218 = vmatprep.subr.mxu0 0.0
    %219 = vmatpush1.msra.mxu0 %v68
    %220 = vmatprep.subr.mxu0 0.0
    %221 = vmatpush1.msra.mxu0 %v65
    %222 = vmatprep.subr.mxu0 0.0
    %223 = vmatpush1.msra.mxu0 %v62
    %224 = vmatprep.subr.mxu0 0.0
    %225 = vmatpush1.msra.mxu0 %v59
    %226 = vmatprep.subr.mxu0 0.0
    %227 = vmatpush1.msra.mxu0 %v56
    %228 = vmatprep.subr.mxu0 0.0
    %229 = vmatpush1.msra.mxu0 %v53
    %230 = vmatprep.subr.mxu0 0.0
    %231 = vmatpush1.msra.mxu0 %v50
    %232 = vmatprep.subr.mxu0 0.0
    %233 = vmatpush2.msra.mxu0 0.0
    %234 = vmatprep.subr.mxu0 0.0
    %235 = vmatpush2.msra.mxu0 0.0
    %236 = vmatprep.subr.mxu0 0.0
    %237 = vmatpush2.msra.mxu0 0.0
    %238 = vmatprep.subr.mxu0 0.0
    %239 = vmatpush2.msra.mxu0 0.0
    %240 = vmatprep.subr.mxu0 0.0
    %241 = vmatpush2.msra.mxu0 0.0
    %242 = vmatprep.subr.mxu0 0.0
    %243 = vmatpush2.msra.mxu0 0.0
    %244 = vmatprep.subr.mxu0 0.0
    %245 = vmatpush2.msra.mxu0 0.0
    %246 = vmatprep.subr.mxu0 0.0
    %247 = vmatpush2.msra.mxu0 0.0
    %248 = vmatprep.subr.mxu0 0.0
    %249 = vmatpush2.msra.mxu0 0.0
    %250 = vmatprep.subr.mxu0 0.0
    %251 = vmatpush2.msra.mxu0 0.0
    %252 = vmatprep.subr.mxu0 0.0
    %253 = vmatpush2.msra.mxu0 0.0
    %254 = vmatprep.subr.mxu0 0.0
    %255 = vmatpush2.msra.mxu0 0.0
    %256 = vmatprep.subr.mxu0 0.0
    %257 = vmatpush2.msra.mxu0 0.0
    %258 = vmatprep.subr.mxu0 0.0
    %259 = vmatpush2.msra.mxu0 0.0
    %260 = vmatprep.subr.mxu0 0.0
    %261 = vmatpush2.msra.mxu0 0.0
    %262 = vmatprep.subr.mxu0 0.0
    %263 = vmatpush2.msra.mxu0 0.0
    %264 = vmatprep.mubr.f32.mxu0 0.0
    %265 = vmatmul.mubr.f32.gmra.mxu0 %v113
    %v266 = vpop.f32.mrf.mxu0
    %v267 = vadd.f32 %v109, %v266
    %v268 = vpop.f32.mrf.mxu0
    %269 = vdwg.mxu0
    %v271 = vcombine.high %v196, %v196
    %v273 = vunpack.c.l.s4 1966171168
    %v274 = vunpack.c.0.s8 %v273
    %v275 = vlaneseq
    %v276 = vshrl.u32 %v275, 7
    %v277 = vsub.s32 %v274, %v276
    %v278 = vrot.slane %v196, %v277
    %v280 = vunpack.c.l.s4 1966171168
    %v281 = vunpack.c.0.s8 %v280
    %v282 = vlaneseq
    %v283 = vshrl.u32 %v282, 7
    %v284 = vsub.s32 %v281, %v283
    %v285 = vrot.slane %v271, %v284
    %v286 = vcombine.high %v278, %v278
    %v287 = vcombine.high %v285, %v285
    %v289 = vunpack.c.l.s4 1966171168
    %v290 = vunpack.c.0.s8 %v289
    %v291 = vlaneseq
    %v292 = vshrl.u32 %v291, 7
    %v293 = vsub.s32 %v290, %v292
    %v294 = vrot.slane %v278, %v293
    %v296 = vunpack.c.l.s4 1966171168
    %v297 = vunpack.c.0.s8 %v296
    %v298 = vlaneseq
    %v299 = vshrl.u32 %v298, 7
    %v300 = vsub.s32 %v297, %v299
    %v301 = vrot.slane %v285, %v300
    %v303 = vunpack.c.l.s4 1966171168
    %v304 = vunpack.c.0.s8 %v303
    %v305 = vlaneseq
    %v306 = vshrl.u32 %v305, 7
    %v307 = vsub.s32 %v304, %v306
    %v308 = vrot.slane %v286, %v307
    %v310 = vunpack.c.l.s4 1966171168
    %v311 = vunpack.c.0.s8 %v310
    %v312 = vlaneseq
    %v313 = vshrl.u32 %v312, 7
    %v314 = vsub.s32 %v311, %v313
    %v315 = vrot.slane %v287, %v314
    %v316 = vcombine.high %v294, %v294
    %v317 = vcombine.high %v301, %v301
    %v318 = vcombine.high %v308, %v308
    %v319 = vcombine.high %v315, %v315
    %v328 = vadd.f32 %v114, %v294
    %v329 = vadd.f32 %v116, %v308
    %v330 = vadd.f32 %v118, %v316
    %v331 = vadd.f32 %v120, %v318
    %v332 = vadd.f32 %v122, %v301
    %v333 = vadd.f32 %v124, %v315
    %v334 = vadd.f32 %v126, %v317
    %v335 = vadd.f32 %v128, %v319
    %v336 = vxor.u32 %v328, 2147483648
    %v337 = vxor.u32 %v329, 2147483648
    %v338 = vxor.u32 %v330, 2147483648
    %v339 = vxor.u32 %v331, 2147483648
    %v340 = vxor.u32 %v332, 2147483648
    %v341 = vxor.u32 %v333, 2147483648
    %v342 = vxor.u32 %v334, 2147483648
    %v343 = vxor.u32 %v335, 2147483648
    %v344 = vmul.f32 %v336, 1.442695
    %v345 = vpow.pop %v344
    %v346 = vmul.f32 %v337, 1.442695
    %v347 = vpow.pop %v346
    %v348 = vmul.f32 %v338, 1.442695
    %v349 = vpow.pop %v348
    %v350 = vmul.f32 %v339, 1.442695
    %v351 = vpow.pop %v350
    %v352 = vmul.f32 %v340, 1.442695
    %v353 = vpow.pop %v352
    %v354 = vmul.f32 %v341, 1.442695
    %v355 = vpow.pop %v354
    %v356 = vmul.f32 %v342, 1.442695
    %v357 = vpow.pop %v356
    %v358 = vmul.f32 %v343, 1.442695
    %v359 = vpow.pop %v358
    %v360 = vadd.f32 %v345, 1.0
    %v361 = vadd.f32 %v347, 1.0
    %v362 = vadd.f32 %v349, 1.0
    %v363 = vadd.f32 %v351, 1.0
    %v364 = vadd.f32 %v353, 1.0
    %v365 = vadd.f32 %v355, 1.0
    %v366 = vadd.f32 %v357, 1.0
    %v367 = vadd.f32 %v359, 1.0
    %v368 = vrcp.pop %v360
    %v369 = vmul.f32 1.0, %v368
    %v370 = vrcp.pop %v361
    %v371 = vmul.f32 1.0, %v370
    %v372 = vrcp.pop %v362
    %v373 = vmul.f32 1.0, %v372
    %v374 = vrcp.pop %v363
    %v375 = vmul.f32 1.0, %v374
    %v376 = vrcp.pop %v364
    %v377 = vmul.f32 1.0, %v376
    %v378 = vrcp.pop %v365
    %v379 = vmul.f32 1.0, %v378
    %v380 = vrcp.pop %v366
    %v381 = vmul.f32 1.0, %v380
    %v382 = vrcp.pop %v367
    %v383 = vmul.f32 1.0, %v382
    %v392 = vrot.slane %v114, 1
    %v393 = vrot.slane %v116, 1
    %v394 = vrot.slane %v118, 1
    %v395 = vrot.slane %v120, 1
    %v396 = vrot.slane %v122, 1
    %v397 = vrot.slane %v124, 1
    %v398 = vrot.slane %v126, 1
    %v399 = vrot.slane %v128, 1
    %v409 = vcombine.high %v198, %v198
    %v411 = vunpack.c.l.s4 1966171168
    %v412 = vunpack.c.0.s8 %v411
    %v413 = vlaneseq
    %v414 = vshrl.u32 %v413, 7
    %v415 = vsub.s32 %v412, %v414
    %v416 = vrot.slane %v198, %v415
    %v418 = vunpack.c.l.s4 1966171168
    %v419 = vunpack.c.0.s8 %v418
    %v420 = vlaneseq
    %v421 = vshrl.u32 %v420, 7
    %v422 = vsub.s32 %v419, %v421
    %v423 = vrot.slane %v409, %v422
    %v424 = vcombine.high %v416, %v416
    %v425 = vcombine.high %v423, %v423
    %v427 = vunpack.c.l.s4 1966171168
    %v428 = vunpack.c.0.s8 %v427
    %v429 = vlaneseq
    %v430 = vshrl.u32 %v429, 7
    %v431 = vsub.s32 %v428, %v430
    %v432 = vrot.slane %v416, %v431
    %v434 = vunpack.c.l.s4 1966171168
    %v435 = vunpack.c.0.s8 %v434
    %v436 = vlaneseq
    %v437 = vshrl.u32 %v436, 7
    %v438 = vsub.s32 %v435, %v437
    %v439 = vrot.slane %v423, %v438
    %v441 = vunpack.c.l.s4 1966171168
    %v442 = vunpack.c.0.s8 %v441
    %v443 = vlaneseq
    %v444 = vshrl.u32 %v443, 7
    %v445 = vsub.s32 %v442, %v444
    %v446 = vrot.slane %v424, %v445
    %v448 = vunpack.c.l.s4 1966171168
    %v449 = vunpack.c.0.s8 %v448
    %v450 = vlaneseq
    %v451 = vshrl.u32 %v450, 7
    %v452 = vsub.s32 %v449, %v451
    %v453 = vrot.slane %v425, %v452
    %v454 = vcombine.high %v432, %v432
    %v455 = vcombine.high %v439, %v439
    %v456 = vcombine.high %v446, %v446
    %v457 = vcombine.high %v453, %v453
    %v466 = vadd.f32 %v392, %v432
    %v467 = vadd.f32 %v393, %v446
    %v468 = vadd.f32 %v394, %v454
    %v469 = vadd.f32 %v395, %v456
    %v470 = vadd.f32 %v396, %v439
    %v471 = vadd.f32 %v397, %v453
    %v472 = vadd.f32 %v398, %v455
    %v473 = vadd.f32 %v399, %v457
    %v474 = vxor.u32 %v466, 2147483648
    %v475 = vxor.u32 %v467, 2147483648
    %v476 = vxor.u32 %v468, 2147483648
    %v477 = vxor.u32 %v469, 2147483648
    %v478 = vxor.u32 %v470, 2147483648
    %v479 = vxor.u32 %v471, 2147483648
    %v480 = vxor.u32 %v472, 2147483648
    %v481 = vxor.u32 %v473, 2147483648
    %v482 = vmul.f32 %v474, 1.442695
    %v483 = vpow.pop %v482
    %v484 = vmul.f32 %v475, 1.442695
    %v485 = vpow.pop %v484
    %v486 = vmul.f32 %v476, 1.442695
    %v487 = vpow.pop %v486
    %v488 = vmul.f32 %v477, 1.442695
    %v489 = vpow.pop %v488
    %v490 = vmul.f32 %v478, 1.442695
    %v491 = vpow.pop %v490
    %v492 = vmul.f32 %v479, 1.442695
    %v493 = vpow.pop %v492
    %v494 = vmul.f32 %v480, 1.442695
    %v495 = vpow.pop %v494
    %v496 = vmul.f32 %v481, 1.442695
    %v497 = vpow.pop %v496
    %v498 = vadd.f32 %v483, 1.0
    %v499 = vadd.f32 %v485, 1.0
    %v500 = vadd.f32 %v487, 1.0
    %v501 = vadd.f32 %v489, 1.0
    %v502 = vadd.f32 %v491, 1.0
    %v503 = vadd.f32 %v493, 1.0
    %v504 = vadd.f32 %v495, 1.0
    %v505 = vadd.f32 %v497, 1.0
    %v506 = vrcp.pop %v498
    %v507 = vmul.f32 1.0, %v506
    %v508 = vrcp.pop %v499
    %v509 = vmul.f32 1.0, %v508
    %v510 = vrcp.pop %v500
    %v511 = vmul.f32 1.0, %v510
    %v512 = vrcp.pop %v501
    %v513 = vmul.f32 1.0, %v512
    %v514 = vrcp.pop %v502
    %v515 = vmul.f32 1.0, %v514
    %v516 = vrcp.pop %v503
    %v517 = vmul.f32 1.0, %v516
    %v518 = vrcp.pop %v504
    %v519 = vmul.f32 1.0, %v518
    %v520 = vrcp.pop %v505
    %v521 = vmul.f32 1.0, %v520
    %v523 = vcombine.high %v267, %v267
    %v525 = vunpack.c.l.s4 1966171168
    %v526 = vunpack.c.0.s8 %v525
    %v527 = vlaneseq
    %v528 = vshrl.u32 %v527, 7
    %v529 = vsub.s32 %v526, %v528
    %v530 = vrot.slane %v267, %v529
    %v532 = vunpack.c.l.s4 1966171168
    %v533 = vunpack.c.0.s8 %v532
    %v534 = vlaneseq
    %v535 = vshrl.u32 %v534, 7
    %v536 = vsub.s32 %v533, %v535
    %v537 = vrot.slane %v523, %v536
    %v538 = vcombine.high %v530, %v530
    %v539 = vcombine.high %v537, %v537
    %v541 = vunpack.c.l.s4 1966171168
    %v542 = vunpack.c.0.s8 %v541
    %v543 = vlaneseq
    %v544 = vshrl.u32 %v543, 7
    %v545 = vsub.s32 %v542, %v544
    %v546 = vrot.slane %v530, %v545
    %v548 = vunpack.c.l.s4 1966171168
    %v549 = vunpack.c.0.s8 %v548
    %v550 = vlaneseq
    %v551 = vshrl.u32 %v550, 7
    %v552 = vsub.s32 %v549, %v551
    %v553 = vrot.slane %v537, %v552
    %v555 = vunpack.c.l.s4 1966171168
    %v556 = vunpack.c.0.s8 %v555
    %v557 = vlaneseq
    %v558 = vshrl.u32 %v557, 7
    %v559 = vsub.s32 %v556, %v558
    %v560 = vrot.slane %v538, %v559
    %v562 = vunpack.c.l.s4 1966171168
    %v563 = vunpack.c.0.s8 %v562
    %v564 = vlaneseq
    %v565 = vshrl.u32 %v564, 7
    %v566 = vsub.s32 %v563, %v565
    %v567 = vrot.slane %v539, %v566
    %v568 = vcombine.high %v546, %v546
    %v569 = vcombine.high %v553, %v553
    %v570 = vcombine.high %v560, %v560
    %v571 = vcombine.high %v567, %v567
    %v580 = vmul.f32 %v369, %v546
    %v581 = vmul.f32 %v371, %v560
    %v582 = vmul.f32 %v373, %v568
    %v583 = vmul.f32 %v375, %v570
    %v584 = vmul.f32 %v377, %v553
    %v585 = vmul.f32 %v379, %v567
    %v586 = vmul.f32 %v381, %v569
    %v587 = vmul.f32 %v383, %v571
    %v588 = vrot.slane %v114, 2
    %v589 = vrot.slane %v116, 2
    %v590 = vrot.slane %v118, 2
    %v591 = vrot.slane %v120, 2
    %v592 = vrot.slane %v122, 2
    %v593 = vrot.slane %v124, 2
    %v594 = vrot.slane %v126, 2
    %v595 = vrot.slane %v128, 2
    %v604 = vadd.f32 %v588, %v580
    %v605 = vadd.f32 %v589, %v581
    %v606 = vadd.f32 %v590, %v582
    %v607 = vadd.f32 %v591, %v583
    %v608 = vadd.f32 %v592, %v584
    %v609 = vadd.f32 %v593, %v585
    %v610 = vadd.f32 %v594, %v586
    %v611 = vadd.f32 %v595, %v587
    %v612 = vtanh.pop %v604
    %v613 = vtanh.pop %v605
    %v614 = vtanh.pop %v606
    %v615 = vtanh.pop %v607
    %v616 = vtanh.pop %v608
    %v617 = vtanh.pop %v609
    %v618 = vtanh.pop %v610
    %v619 = vtanh.pop %v611
    %v620 = vsub.f32 1.0, %v507
    %v621 = vsub.f32 1.0, %v509
    %v622 = vsub.f32 1.0, %v511
    %v623 = vsub.f32 1.0, %v513
    %v624 = vsub.f32 1.0, %v515
    %v625 = vsub.f32 1.0, %v517
    %v626 = vsub.f32 1.0, %v519
    %v627 = vsub.f32 1.0, %v521
    %v628 = vmul.f32 %v620, %v612
    %v629 = vmul.f32 %v621, %v613
    %v630 = vmul.f32 %v622, %v614
    %v631 = vmul.f32 %v623, %v615
    %v632 = vmul.f32 %v624, %v616
    %v633 = vmul.f32 %v625, %v617
    %v634 = vmul.f32 %v626, %v618
    %v635 = vmul.f32 %v627, %v619
    %v637 = vcombine.high %v113, %v113
    %v639 = vunpack.c.l.s4 1966171168
    %v640 = vunpack.c.0.s8 %v639
    %v641 = vlaneseq
    %v642 = vshrl.u32 %v641, 7
    %v643 = vsub.s32 %v640, %v642
    %v644 = vrot.slane %v113, %v643
    %v646 = vunpack.c.l.s4 1966171168
    %v647 = vunpack.c.0.s8 %v646
    %v648 = vlaneseq
    %v649 = vshrl.u32 %v648, 7
    %v650 = vsub.s32 %v647, %v649
    %v651 = vrot.slane %v637, %v650
    %v652 = vcombine.high %v644, %v644
    %v653 = vcombine.high %v651, %v651
    %v655 = vunpack.c.l.s4 1966171168
    %v656 = vunpack.c.0.s8 %v655
    %v657 = vlaneseq
    %v658 = vshrl.u32 %v657, 7
    %v659 = vsub.s32 %v656, %v658
    %v660 = vrot.slane %v644, %v659
    %v662 = vunpack.c.l.s4 1966171168
    %v663 = vunpack.c.0.s8 %v662
    %v664 = vlaneseq
    %v665 = vshrl.u32 %v664, 7
    %v666 = vsub.s32 %v663, %v665
    %v667 = vrot.slane %v651, %v666
    %v669 = vunpack.c.l.s4 1966171168
    %v670 = vunpack.c.0.s8 %v669
    %v671 = vlaneseq
    %v672 = vshrl.u32 %v671, 7
    %v673 = vsub.s32 %v670, %v672
    %v674 = vrot.slane %v652, %v673
    %v676 = vunpack.c.l.s4 1966171168
    %v677 = vunpack.c.0.s8 %v676
    %v678 = vlaneseq
    %v679 = vshrl.u32 %v678, 7
    %v680 = vsub.s32 %v677, %v679
    %v681 = vrot.slane %v653, %v680
    %v682 = vcombine.high %v660, %v660
    %v683 = vcombine.high %v667, %v667
    %v684 = vcombine.high %v674, %v674
    %v685 = vcombine.high %v681, %v681
    %v694 = vmul.f32 %v507, %v660
    %v695 = vmul.f32 %v509, %v674
    %v696 = vmul.f32 %v511, %v682
    %v697 = vmul.f32 %v513, %v684
    %v698 = vmul.f32 %v515, %v667
    %v699 = vmul.f32 %v517, %v681
    %v700 = vmul.f32 %v519, %v683
    %v701 = vmul.f32 %v521, %v685
    %v702 = vadd.f32 %v628, %v694
    %v703 = vadd.f32 %v629, %v695
    %v704 = vadd.f32 %v630, %v696
    %v705 = vadd.f32 %v631, %v697
    %v706 = vadd.f32 %v632, %v698
    %v707 = vadd.f32 %v633, %v699
    %v708 = vadd.f32 %v634, %v700
    %v709 = vadd.f32 %v635, %v701
    %710 = vst [vmem:[#allocation8] sm:$0x1] %v702
    %711 = vst [vmem:[#allocation8 + $0x8] sm:$0x1] %v703
    %712 = vst [vmem:[#allocation8 + $0x10] sm:$0x1] %v704
    %713 = vst [vmem:[#allocation8 + $0x18] sm:$0x1] %v705
    %714 = vst [vmem:[#allocation8 + $0x20] sm:$0x1] %v706
    %715 = vst [vmem:[#allocation8 + $0x28] sm:$0x1] %v707
    %716 = vst [vmem:[#allocation8 + $0x30] sm:$0x1] %v708
    %717 = vst [vmem:[#allocation8 + $0x38] sm:$0x1] %v709
    %s718 = scalar_lea.vmem [#allocation3], 1
    %v719 = vld [vmem:[%s718] ss:$8 sm:$0x7]
    %s720 = scalar_lea.vmem [#allocation3], 25
    %v721 = vld [vmem:[%s720] ss:$8 sm:$0x7]
    %s722 = scalar_lea.vmem [#allocation3], 49
    %v723 = vld [vmem:[%s722] ss:$8 sm:$0x7]
    %s724 = scalar_lea.vmem [#allocation3], 73
    %v725 = vld [vmem:[%s724] ss:$8 sm:$0x7]
    %s726 = scalar_lea.vmem [#allocation3], 97
    %v727 = vld [vmem:[%s726] ss:$8 sm:$0x7]
    %s728 = scalar_lea.vmem [#allocation3], 121
    %v729 = vld [vmem:[%s728] ss:$8 sm:$0x7]
    %s730 = scalar_lea.vmem [#allocation3], 145
    %v731 = vld [vmem:[%s730] ss:$8 sm:$0x7]
    %s732 = scalar_lea.vmem [#allocation3], 169
    %v733 = vld [vmem:[%s732] ss:$8 sm:$0x7]
    %v742 = vcombine.low %v702, %v703
    %v743 = vcombine.low %v704, %v705
    %v744 = vcombine.low %v706, %v707
    %v745 = vcombine.low %v708, %v709
    %v747 = vunpack.c.l.s4 1966171168
    %v748 = vunpack.c.0.s8 %v747
    %v749 = vlaneseq
    %v750 = vshrl.u32 %v749, 7
    %v751 = vsub.s32 %v748, %v750
    %v752 = vrot.slane %v742, %v751
    %v754 = vunpack.c.l.s4 1966171168
    %v755 = vunpack.c.0.s8 %v754
    %v756 = vlaneseq
    %v757 = vshrl.u32 %v756, 7
    %v758 = vsub.s32 %v755, %v757
    %v759 = vrot.slane %v743, %v758
    %v761 = vunpack.c.l.s4 1966171168
    %v762 = vunpack.c.0.s8 %v761
    %v763 = vlaneseq
    %v764 = vshrl.u32 %v763, 7
    %v765 = vsub.s32 %v762, %v764
    %v766 = vrot.slane %v744, %v765
    %v768 = vunpack.c.l.s4 1966171168
    %v769 = vunpack.c.0.s8 %v768
    %v770 = vlaneseq
    %v771 = vshrl.u32 %v770, 7
    %v772 = vsub.s32 %v769, %v771
    %v773 = vrot.slane %v745, %v772
    %v774 = vcombine.low %v752, %v759
    %v775 = vcombine.low %v766, %v773
    %v777 = vunpack.c.l.s4 1966171168
    %v778 = vunpack.c.0.s8 %v777
    %v779 = vlaneseq
    %v780 = vshrl.u32 %v779, 7
    %v781 = vsub.s32 %v778, %v780
    %v782 = vrot.slane %v774, %v781
    %v784 = vunpack.c.l.s4 1966171168
    %v785 = vunpack.c.0.s8 %v784
    %v786 = vlaneseq
    %v787 = vshrl.u32 %v786, 7
    %v788 = vsub.s32 %v785, %v787
    %v789 = vrot.slane %v775, %v788
    %v790 = vcombine.low %v782, %v789
    %792 = vmatprep.subr.mxu0 %v94
    %793 = vmatpush1.msra.mxu0 %v93
    %794 = vmatprep.subr.mxu0 %v91
    %795 = vmatpush1.msra.mxu0 %v90
    %796 = vmatprep.subr.mxu0 %v88
    %797 = vmatpush1.msra.mxu0 %v87
    %798 = vmatprep.subr.mxu0 %v85
    %799 = vmatpush1.msra.mxu0 %v84
    %800 = vmatprep.subr.mxu0 %v82
    %801 = vmatpush1.msra.mxu0 %v81
    %802 = vmatprep.subr.mxu0 %v79
    %803 = vmatpush1.msra.mxu0 %v78
    %804 = vmatprep.subr.mxu0 %v76
    %805 = vmatpush1.msra.mxu0 %v75
    %806 = vmatprep.subr.mxu0 %v73
    %807 = vmatpush1.msra.mxu0 %v72
    %808 = vmatprep.subr.mxu0 %v70
    %809 = vmatpush1.msra.mxu0 %v69
    %810 = vmatprep.subr.mxu0 %v67
    %811 = vmatpush1.msra.mxu0 %v66
    %812 = vmatprep.subr.mxu0 %v64
    %813 = vmatpush1.msra.mxu0 %v63
    %814 = vmatprep.subr.mxu0 %v61
    %815 = vmatpush1.msra.mxu0 %v60
    %816 = vmatprep.subr.mxu0 %v58
    %817 = vmatpush1.msra.mxu0 %v57
    %818 = vmatprep.subr.mxu0 %v55
    %819 = vmatpush1.msra.mxu0 %v54
    %820 = vmatprep.subr.mxu0 %v52
    %821 = vmatpush1.msra.mxu0 %v51
    %822 = vmatprep.subr.mxu0 %v49
    %823 = vmatpush1.msra.mxu0 %v48
    %824 = vmatprep.subr.mxu0 0.0
    %825 = vmatpush2.msra.mxu0 0.0
    %826 = vmatprep.subr.mxu0 0.0
    %827 = vmatpush2.msra.mxu0 0.0
    %828 = vmatprep.subr.mxu0 0.0
    %829 = vmatpush2.msra.mxu0 0.0
    %830 = vmatprep.subr.mxu0 0.0
    %831 = vmatpush2.msra.mxu0 0.0
    %832 = vmatprep.subr.mxu0 0.0
    %833 = vmatpush2.msra.mxu0 0.0
    %834 = vmatprep.subr.mxu0 0.0
    %835 = vmatpush2.msra.mxu0 0.0
    %836 = vmatprep.subr.mxu0 0.0
    %837 = vmatpush2.msra.mxu0 0.0
    %838 = vmatprep.subr.mxu0 0.0
    %839 = vmatpush2.msra.mxu0 0.0
    %840 = vmatprep.subr.mxu0 0.0
    %841 = vmatpush2.msra.mxu0 0.0
    %842 = vmatprep.subr.mxu0 0.0
    %843 = vmatpush2.msra.mxu0 0.0
    %844 = vmatprep.subr.mxu0 0.0
    %845 = vmatpush2.msra.mxu0 0.0
    %846 = vmatprep.subr.mxu0 0.0
    %847 = vmatpush2.msra.mxu0 0.0
    %848 = vmatprep.subr.mxu0 0.0
    %849 = vmatpush2.msra.mxu0 0.0
    %850 = vmatprep.subr.mxu0 0.0
    %851 = vmatpush2.msra.mxu0 0.0
    %852 = vmatprep.subr.mxu0 0.0
    %853 = vmatpush2.msra.mxu0 0.0
    %854 = vmatprep.subr.mxu0 0.0
    %855 = vmatpush2.msra.mxu0 0.0
    %856 = vmatprep.mubr.f32.mxu0 0.0
    %857 = vmatmul.mubr.f32.gmra.mxu0 %v790
    %v858 = vpop.f32.mrf.mxu0
    %v859 = vadd.f32 %v101, %v858
    %v860 = vpop.f32.mrf.mxu0
    %v861 = vadd.f32 %v105, %v860
    %862 = vdwg.mxu0
    %863 = vmatprep.subr.mxu0 0.0
    %864 = vmatpush1.msra.mxu0 %v95
    %865 = vmatprep.subr.mxu0 0.0
    %866 = vmatpush1.msra.mxu0 %v92
    %867 = vmatprep.subr.mxu0 0.0
    %868 = vmatpush1.msra.mxu0 %v89
    %869 = vmatprep.subr.mxu0 0.0
    %870 = vmatpush1.msra.mxu0 %v86
    %871 = vmatprep.subr.mxu0 0.0
    %872 = vmatpush1.msra.mxu0 %v83
    %873 = vmatprep.subr.mxu0 0.0
    %874 = vmatpush1.msra.mxu0 %v80
    %875 = vmatprep.subr.mxu0 0.0
    %876 = vmatpush1.msra.mxu0 %v77
    %877 = vmatprep.subr.mxu0 0.0
    %878 = vmatpush1.msra.mxu0 %v74
    %879 = vmatprep.subr.mxu0 0.0
    %880 = vmatpush1.msra.mxu0 %v71
    %881 = vmatprep.subr.mxu0 0.0
    %882 = vmatpush1.msra.mxu0 %v68
    %883 = vmatprep.subr.mxu0 0.0
    %884 = vmatpush1.msra.mxu0 %v65
    %885 = vmatprep.subr.mxu0 0.0
    %886 = vmatpush1.msra.mxu0 %v62
    %887 = vmatprep.subr.mxu0 0.0
    %888 = vmatpush1.msra.mxu0 %v59
    %889 = vmatprep.subr.mxu0 0.0
    %890 = vmatpush1.msra.mxu0 %v56
    %891 = vmatprep.subr.mxu0 0.0
    %892 = vmatpush1.msra.mxu0 %v53
    %893 = vmatprep.subr.mxu0 0.0
    %894 = vmatpush1.msra.mxu0 %v50
    %895 = vmatprep.subr.mxu0 0.0
    %896 = vmatpush2.msra.mxu0 0.0
    %897 = vmatprep.subr.mxu0 0.0
    %898 = vmatpush2.msra.mxu0 0.0
    %899 = vmatprep.subr.mxu0 0.0
    %900 = vmatpush2.msra.mxu0 0.0
    %901 = vmatprep.subr.mxu0 0.0
    %902 = vmatpush2.msra.mxu0 0.0
    %903 = vmatprep.subr.mxu0 0.0
    %904 = vmatpush2.msra.mxu0 0.0
    %905 = vmatprep.subr.mxu0 0.0
    %906 = vmatpush2.msra.mxu0 0.0
    %907 = vmatprep.subr.mxu0 0.0
    %908 = vmatpush2.msra.mxu0 0.0
    %909 = vmatprep.subr.mxu0 0.0
    %910 = vmatpush2.msra.mxu0 0.0
    %911 = vmatprep.subr.mxu0 0.0
    %912 = vmatpush2.msra.mxu0 0.0
    %913 = vmatprep.subr.mxu0 0.0
    %914 = vmatpush2.msra.mxu0 0.0
    %915 = vmatprep.subr.mxu0 0.0
    %916 = vmatpush2.msra.mxu0 0.0
    %917 = vmatprep.subr.mxu0 0.0
    %918 = vmatpush2.msra.mxu0 0.0
    %919 = vmatprep.subr.mxu0 0.0
    %920 = vmatpush2.msra.mxu0 0.0
    %921 = vmatprep.subr.mxu0 0.0
    %922 = vmatpush2.msra.mxu0 0.0
    %923 = vmatprep.subr.mxu0 0.0
    %924 = vmatpush2.msra.mxu0 0.0
    %925 = vmatprep.subr.mxu0 0.0
    %926 = vmatpush2.msra.mxu0 0.0
    %927 = vmatprep.mubr.f32.mxu0 0.0
    %928 = vmatmul.mubr.f32.gmra.mxu0 %v790
    %v929 = vpop.f32.mrf.mxu0
    %v930 = vadd.f32 %v109, %v929
    %v931 = vpop.f32.mrf.mxu0
    %932 = vdwg.mxu0
    %v934 = vcombine.high %v859, %v859
    %v936 = vunpack.c.l.s4 1966171168
    %v937 = vunpack.c.0.s8 %v936
    %v938 = vlaneseq
    %v939 = vshrl.u32 %v938, 7
    %v940 = vsub.s32 %v937, %v939
    %v941 = vrot.slane %v859, %v940
    %v943 = vunpack.c.l.s4 1966171168
    %v944 = vunpack.c.0.s8 %v943
    %v945 = vlaneseq
    %v946 = vshrl.u32 %v945, 7
    %v947 = vsub.s32 %v944, %v946
    %v948 = vrot.slane %v934, %v947
    %v949 = vcombine.high %v941, %v941
    %v950 = vcombine.high %v948, %v948
    %v952 = vunpack.c.l.s4 1966171168
    %v953 = vunpack.c.0.s8 %v952
    %v954 = vlaneseq
    %v955 = vshrl.u32 %v954, 7
    %v956 = vsub.s32 %v953, %v955
    %v957 = vrot.slane %v941, %v956
    %v959 = vunpack.c.l.s4 1966171168
    %v960 = vunpack.c.0.s8 %v959
    %v961 = vlaneseq
    %v962 = vshrl.u32 %v961, 7
    %v963 = vsub.s32 %v960, %v962
    %v964 = vrot.slane %v948, %v963
    %v966 = vunpack.c.l.s4 1966171168
    %v967 = vunpack.c.0.s8 %v966
    %v968 = vlaneseq
    %v969 = vshrl.u32 %v968, 7
    %v970 = vsub.s32 %v967, %v969
    %v971 = vrot.slane %v949, %v970
    %v973 = vunpack.c.l.s4 1966171168
    %v974 = vunpack.c.0.s8 %v973
    %v975 = vlaneseq
    %v976 = vshrl.u32 %v975, 7
    %v977 = vsub.s32 %v974, %v976
    %v978 = vrot.slane %v950, %v977
    %v979 = vcombine.high %v957, %v957
    %v980 = vcombine.high %v964, %v964
    %v981 = vcombine.high %v971, %v971
    %v982 = vcombine.high %v978, %v978
    %v991 = vadd.f32 %v719, %v957
    %v992 = vadd.f32 %v721, %v971
    %v993 = vadd.f32 %v723, %v979
    %v994 = vadd.f32 %v725, %v981
    %v995 = vadd.f32 %v727, %v964
    %v996 = vadd.f32 %v729, %v978
    %v997 = vadd.f32 %v731, %v980
    %v998 = vadd.f32 %v733, %v982
    %v999 = vxor.u32 %v991, 2147483648
    %v1000 = vxor.u32 %v992, 2147483648
    %v1001 = vxor.u32 %v993, 2147483648
    %v1002 = vxor.u32 %v994, 2147483648
    %v1003 = vxor.u32 %v995, 2147483648
    %v1004 = vxor.u32 %v996, 2147483648
    %v1005 = vxor.u32 %v997, 2147483648
    %v1006 = vxor.u32 %v998, 2147483648
    %v1007 = vmul.f32 %v999, 1.442695
    %v1008 = vpow.pop %v1007
    %v1009 = vmul.f32 %v1000, 1.442695
    %v1010 = vpow.pop %v1009
    %v1011 = vmul.f32 %v1001, 1.442695
    %v1012 = vpow.pop %v1011
    %v1013 = vmul.f32 %v1002, 1.442695
    %v1014 = vpow.pop %v1013
    %v1015 = vmul.f32 %v1003, 1.442695
    %v1016 = vpow.pop %v1015
    %v1017 = vmul.f32 %v1004, 1.442695
    %v1018 = vpow.pop %v1017
    %v1019 = vmul.f32 %v1005, 1.442695
    %v1020 = vpow.pop %v1019
    %v1021 = vmul.f32 %v1006, 1.442695
    %v1022 = vpow.pop %v1021
    %v1023 = vadd.f32 %v1008, 1.0
    %v1024 = vadd.f32 %v1010, 1.0
    %v1025 = vadd.f32 %v1012, 1.0
    %v1026 = vadd.f32 %v1014, 1.0
    %v1027 = vadd.f32 %v1016, 1.0
    %v1028 = vadd.f32 %v1018, 1.0
    %v1029 = vadd.f32 %v1020, 1.0
    %v1030 = vadd.f32 %v1022, 1.0
    %v1031 = vrcp.pop %v1023
    %v1032 = vmul.f32 1.0, %v1031
    %v1033 = vrcp.pop %v1024
    %v1034 = vmul.f32 1.0, %v1033
    %v1035 = vrcp.pop %v1025
    %v1036 = vmul.f32 1.0, %v1035
    %v1037 = vrcp.pop %v1026
    %v1038 = vmul.f32 1.0, %v1037
    %v1039 = vrcp.pop %v1027
    %v1040 = vmul.f32 1.0, %v1039
    %v1041 = vrcp.pop %v1028
    %v1042 = vmul.f32 1.0, %v1041
    %v1043 = vrcp.pop %v1029
    %v1044 = vmul.f32 1.0, %v1043
    %v1045 = vrcp.pop %v1030
    %v1046 = vmul.f32 1.0, %v1045
    %v1055 = vrot.slane %v719, 1
    %v1056 = vrot.slane %v721, 1
    %v1057 = vrot.slane %v723, 1
    %v1058 = vrot.slane %v725, 1
    %v1059 = vrot.slane %v727, 1
    %v1060 = vrot.slane %v729, 1
    %v1061 = vrot.slane %v731, 1
    %v1062 = vrot.slane %v733, 1
    %v1072 = vcombine.high %v861, %v861
    %v1074 = vunpack.c.l.s4 1966171168
    %v1075 = vunpack.c.0.s8 %v1074
    %v1076 = vlaneseq
    %v1077 = vshrl.u32 %v1076, 7
    %v1078 = vsub.s32 %v1075, %v1077
    %v1079 = vrot.slane %v861, %v1078
    %v1081 = vunpack.c.l.s4 1966171168
    %v1082 = vunpack.c.0.s8 %v1081
    %v1083 = vlaneseq
    %v1084 = vshrl.u32 %v1083, 7
    %v1085 = vsub.s32 %v1082, %v1084
    %v1086 = vrot.slane %v1072, %v1085
    %v1087 = vcombine.high %v1079, %v1079
    %v1088 = vcombine.high %v1086, %v1086
    %v1090 = vunpack.c.l.s4 1966171168
    %v1091 = vunpack.c.0.s8 %v1090
    %v1092 = vlaneseq
    %v1093 = vshrl.u32 %v1092, 7
    %v1094 = vsub.s32 %v1091, %v1093
    %v1095 = vrot.slane %v1079, %v1094
    %v1097 = vunpack.c.l.s4 1966171168
    %v1098 = vunpack.c.0.s8 %v1097
    %v1099 = vlaneseq
    %v1100 = vshrl.u32 %v1099, 7
    %v1101 = vsub.s32 %v1098, %v1100
    %v1102 = vrot.slane %v1086, %v1101
    %v1104 = vunpack.c.l.s4 1966171168
    %v1105 = vunpack.c.0.s8 %v1104
    %v1106 = vlaneseq
    %v1107 = vshrl.u32 %v1106, 7
    %v1108 = vsub.s32 %v1105, %v1107
    %v1109 = vrot.slane %v1087, %v1108
    %v1111 = vunpack.c.l.s4 1966171168
    %v1112 = vunpack.c.0.s8 %v1111
    %v1113 = vlaneseq
    %v1114 = vshrl.u32 %v1113, 7
    %v1115 = vsub.s32 %v1112, %v1114
    %v1116 = vrot.slane %v1088, %v1115
    %v1117 = vcombine.high %v1095, %v1095
    %v1118 = vcombine.high %v1102, %v1102
    %v1119 = vcombine.high %v1109, %v1109
    %v1120 = vcombine.high %v1116, %v1116
    %v1129 = vadd.f32 %v1055, %v1095
    %v1130 = vadd.f32 %v1056, %v1109
    %v1131 = vadd.f32 %v1057, %v1117
    %v1132 = vadd.f32 %v1058, %v1119
    %v1133 = vadd.f32 %v1059, %v1102
    %v1134 = vadd.f32 %v1060, %v1116
    %v1135 = vadd.f32 %v1061, %v1118
    %v1136 = vadd.f32 %v1062, %v1120
    %v1137 = vxor.u32 %v1129, 2147483648
    %v1138 = vxor.u32 %v1130, 2147483648
    %v1139 = vxor.u32 %v1131, 2147483648
    %v1140 = vxor.u32 %v1132, 2147483648
    %v1141 = vxor.u32 %v1133, 2147483648
    %v1142 = vxor.u32 %v1134, 2147483648
    %v1143 = vxor.u32 %v1135, 2147483648
    %v1144 = vxor.u32 %v1136, 2147483648
    %v1145 = vmul.f32 %v1137, 1.442695
    %v1146 = vpow.pop %v1145
    %v1147 = vmul.f32 %v1138, 1.442695
    %v1148 = vpow.pop %v1147
    %v1149 = vmul.f32 %v1139, 1.442695
    %v1150 = vpow.pop %v1149
    %v1151 = vmul.f32 %v1140, 1.442695
    %v1152 = vpow.pop %v1151
    %v1153 = vmul.f32 %v1141, 1.442695
    %v1154 = vpow.pop %v1153
    %v1155 = vmul.f32 %v1142, 1.442695
    %v1156 = vpow.pop %v1155
    %v1157 = vmul.f32 %v1143, 1.442695
    %v1158 = vpow.pop %v1157
    %v1159 = vmul.f32 %v1144, 1.442695
    %v1160 = vpow.pop %v1159
    %v1161 = vadd.f32 %v1146, 1.0
    %v1162 = vadd.f32 %v1148, 1.0
    %v1163 = vadd.f32 %v1150, 1.0
    %v1164 = vadd.f32 %v1152, 1.0
    %v1165 = vadd.f32 %v1154, 1.0
    %v1166 = vadd.f32 %v1156, 1.0
    %v1167 = vadd.f32 %v1158, 1.0
    %v1168 = vadd.f32 %v1160, 1.0
    %v1169 = vrcp.pop %v1161
    %v1170 = vmul.f32 1.0, %v1169
    %v1171 = vrcp.pop %v1162
    %v1172 = vmul.f32 1.0, %v1171
    %v1173 = vrcp.pop %v1163
    %v1174 = vmul.f32 1.0, %v1173
    %v1175 = vrcp.pop %v1164
    %v1176 = vmul.f32 1.0, %v1175
    %v1177 = vrcp.pop %v1165
    %v1178 = vmul.f32 1.0, %v1177
    %v1179 = vrcp.pop %v1166
    %v1180 = vmul.f32 1.0, %v1179
    %v1181 = vrcp.pop %v1167
    %v1182 = vmul.f32 1.0, %v1181
    %v1183 = vrcp.pop %v1168
    %v1184 = vmul.f32 1.0, %v1183
    %v1186 = vcombine.high %v930, %v930
    %v1188 = vunpack.c.l.s4 1966171168
    %v1189 = vunpack.c.0.s8 %v1188
    %v1190 = vlaneseq
    %v1191 = vshrl.u32 %v1190, 7
    %v1192 = vsub.s32 %v1189, %v1191
    %v1193 = vrot.slane %v930, %v1192
    %v1195 = vunpack.c.l.s4 1966171168
    %v1196 = vunpack.c.0.s8 %v1195
    %v1197 = vlaneseq
    %v1198 = vshrl.u32 %v1197, 7
    %v1199 = vsub.s32 %v1196, %v1198
    %v1200 = vrot.slane %v1186, %v1199
    %v1201 = vcombine.high %v1193, %v1193
    %v1202 = vcombine.high %v1200, %v1200
    %v1204 = vunpack.c.l.s4 1966171168
    %v1205 = vunpack.c.0.s8 %v1204
    %v1206 = vlaneseq
    %v1207 = vshrl.u32 %v1206, 7
    %v1208 = vsub.s32 %v1205, %v1207
    %v1209 = vrot.slane %v1193, %v1208
    %v1211 = vunpack.c.l.s4 1966171168
    %v1212 = vunpack.c.0.s8 %v1211
    %v1213 = vlaneseq
    %v1214 = vshrl.u32 %v1213, 7
    %v1215 = vsub.s32 %v1212, %v1214
    %v1216 = vrot.slane %v1200, %v1215
    %v1218 = vunpack.c.l.s4 1966171168
    %v1219 = vunpack.c.0.s8 %v1218
    %v1220 = vlaneseq
    %v1221 = vshrl.u32 %v1220, 7
    %v1222 = vsub.s32 %v1219, %v1221
    %v1223 = vrot.slane %v1201, %v1222
    %v1225 = vunpack.c.l.s4 1966171168
    %v1226 = vunpack.c.0.s8 %v1225
    %v1227 = vlaneseq
    %v1228 = vshrl.u32 %v1227, 7
    %v1229 = vsub.s32 %v1226, %v1228
    %v1230 = vrot.slane %v1202, %v1229
    %v1231 = vcombine.high %v1209, %v1209
    %v1232 = vcombine.high %v1216, %v1216
    %v1233 = vcombine.high %v1223, %v1223
    %v1234 = vcombine.high %v1230, %v1230
    %v1243 = vmul.f32 %v1032, %v1209
    %v1244 = vmul.f32 %v1034, %v1223
    %v1245 = vmul.f32 %v1036, %v1231
    %v1246 = vmul.f32 %v1038, %v1233
    %v1247 = vmul.f32 %v1040, %v1216
    %v1248 = vmul.f32 %v1042, %v1230
    %v1249 = vmul.f32 %v1044, %v1232
    %v1250 = vmul.f32 %v1046, %v1234
    %v1251 = vrot.slane %v719, 2
    %v1252 = vrot.slane %v721, 2
    %v1253 = vrot.slane %v723, 2
    %v1254 = vrot.slane %v725, 2
    %v1255 = vrot.slane %v727, 2
    %v1256 = vrot.slane %v729, 2
    %v1257 = vrot.slane %v731, 2
    %v1258 = vrot.slane %v733, 2
    %v1267 = vadd.f32 %v1251, %v1243
    %v1268 = vadd.f32 %v1252, %v1244
    %v1269 = vadd.f32 %v1253, %v1245
    %v1270 = vadd.f32 %v1254, %v1246
    %v1271 = vadd.f32 %v1255, %v1247
    %v1272 = vadd.f32 %v1256, %v1248
    %v1273 = vadd.f32 %v1257, %v1249
    %v1274 = vadd.f32 %v1258, %v1250
    %v1275 = vtanh.pop %v1267
    %v1276 = vtanh.pop %v1268
    %v1277 = vtanh.pop %v1269
    %v1278 = vtanh.pop %v1270
    %v1279 = vtanh.pop %v1271
    %v1280 = vtanh.pop %v1272
    %v1281 = vtanh.pop %v1273
    %v1282 = vtanh.pop %v1274
    %v1283 = vsub.f32 1.0, %v1170
    %v1284 = vsub.f32 1.0, %v1172
    %v1285 = vsub.f32 1.0, %v1174
    %v1286 = vsub.f32 1.0, %v1176
    %v1287 = vsub.f32 1.0, %v1178
    %v1288 = vsub.f32 1.0, %v1180
    %v1289 = vsub.f32 1.0, %v1182
    %v1290 = vsub.f32 1.0, %v1184
    %v1291 = vmul.f32 %v1283, %v1275
    %v1292 = vmul.f32 %v1284, %v1276
    %v1293 = vmul.f32 %v1285, %v1277
    %v1294 = vmul.f32 %v1286, %v1278
    %v1295 = vmul.f32 %v1287, %v1279
    %v1296 = vmul.f32 %v1288, %v1280
    %v1297 = vmul.f32 %v1289, %v1281
    %v1298 = vmul.f32 %v1290, %v1282
    %v1299 = vmul.f32 %v1170, %v702
    %v1300 = vmul.f32 %v1172, %v703
    %v1301 = vmul.f32 %v1174, %v704
    %v1302 = vmul.f32 %v1176, %v705
    %v1303 = vmul.f32 %v1178, %v706
    %v1304 = vmul.f32 %v1180, %v707
    %v1305 = vmul.f32 %v1182, %v708
    %v1306 = vmul.f32 %v1184, %v709
    %v1307 = vadd.f32 %v1291, %v1299
    %v1308 = vadd.f32 %v1292, %v1300
    %v1309 = vadd.f32 %v1293, %v1301
    %v1310 = vadd.f32 %v1294, %v1302
    %v1311 = vadd.f32 %v1295, %v1303
    %v1312 = vadd.f32 %v1296, %v1304
    %v1313 = vadd.f32 %v1297, %v1305
    %v1314 = vadd.f32 %v1298, %v1306
    %1315 = vst [vmem:[#allocation8 + $0x1] sm:$0x1] %v1307
    %1316 = vst [vmem:[#allocation8 + $0x9] sm:$0x1] %v1308
    %1317 = vst [vmem:[#allocation8 + $0x11] sm:$0x1] %v1309
    %1318 = vst [vmem:[#allocation8 + $0x19] sm:$0x1] %v1310
    %1319 = vst [vmem:[#allocation8 + $0x21] sm:$0x1] %v1311
    %1320 = vst [vmem:[#allocation8 + $0x29] sm:$0x1] %v1312
    %1321 = vst [vmem:[#allocation8 + $0x31] sm:$0x1] %v1313
    %1322 = vst [vmem:[#allocation8 + $0x39] sm:$0x1] %v1314
    %s1323 = scalar_lea.vmem [#allocation3], 2
    %v1324 = vld [vmem:[%s1323] ss:$8 sm:$0x7]
    %s1325 = scalar_lea.vmem [#allocation3], 26
    %v1326 = vld [vmem:[%s1325] ss:$8 sm:$0x7]
    %s1327 = scalar_lea.vmem [#allocation3], 50
    %v1328 = vld [vmem:[%s1327] ss:$8 sm:$0x7]
    %s1329 = scalar_lea.vmem [#allocation3], 74
    %v1330 = vld [vmem:[%s1329] ss:$8 sm:$0x7]
    %s1331 = scalar_lea.vmem [#allocation3], 98
    %v1332 = vld [vmem:[%s1331] ss:$8 sm:$0x7]
    %s1333 = scalar_lea.vmem [#allocation3], 122
    %v1334 = vld [vmem:[%s1333] ss:$8 sm:$0x7]
    %s1335 = scalar_lea.vmem [#allocation3], 146
    %v1336 = vld [vmem:[%s1335] ss:$8 sm:$0x7]
    %s1337 = scalar_lea.vmem [#allocation3], 170
    %v1338 = vld [vmem:[%s1337] ss:$8 sm:$0x7]
    %v1347 = vcombine.low %v1307, %v1308
    %v1348 = vcombine.low %v1309, %v1310
    %v1349 = vcombine.low %v1311, %v1312
    %v1350 = vcombine.low %v1313, %v1314
    %v1352 = vunpack.c.l.s4 1966171168
    %v1353 = vunpack.c.0.s8 %v1352
    %v1354 = vlaneseq
    %v1355 = vshrl.u32 %v1354, 7
    %v1356 = vsub.s32 %v1353, %v1355
    %v1357 = vrot.slane %v1347, %v1356
    %v1359 = vunpack.c.l.s4 1966171168
    %v1360 = vunpack.c.0.s8 %v1359
    %v1361 = vlaneseq
    %v1362 = vshrl.u32 %v1361, 7
    %v1363 = vsub.s32 %v1360, %v1362
    %v1364 = vrot.slane %v1348, %v1363
    %v1366 = vunpack.c.l.s4 1966171168
    %v1367 = vunpack.c.0.s8 %v1366
    %v1368 = vlaneseq
    %v1369 = vshrl.u32 %v1368, 7
    %v1370 = vsub.s32 %v1367, %v1369
    %v1371 = vrot.slane %v1349, %v1370
    %v1373 = vunpack.c.l.s4 1966171168
    %v1374 = vunpack.c.0.s8 %v1373
    %v1375 = vlaneseq
    %v1376 = vshrl.u32 %v1375, 7
    %v1377 = vsub.s32 %v1374, %v1376
    %v1378 = vrot.slane %v1350, %v1377
    %v1379 = vcombine.low %v1357, %v1364
    %v1380 = vcombine.low %v1371, %v1378
    %v1382 = vunpack.c.l.s4 1966171168
    %v1383 = vunpack.c.0.s8 %v1382
    %v1384 = vlaneseq
    %v1385 = vshrl.u32 %v1384, 7
    %v1386 = vsub.s32 %v1383, %v1385
    %v1387 = vrot.slane %v1379, %v1386
    %v1389 = vunpack.c.l.s4 1966171168
    %v1390 = vunpack.c.0.s8 %v1389
    %v1391 = vlaneseq
    %v1392 = vshrl.u32 %v1391, 7
    %v1393 = vsub.s32 %v1390, %v1392
    %v1394 = vrot.slane %v1380, %v1393
    %v1395 = vcombine.low %v1387, %v1394
    %1397 = vmatprep.subr.mxu0 %v94
    %1398 = vmatpush1.msra.mxu0 %v93
    %1399 = vmatprep.subr.mxu0 %v91
    %1400 = vmatpush1.msra.mxu0 %v90
    %1401 = vmatprep.subr.mxu0 %v88
    %1402 = vmatpush1.msra.mxu0 %v87
    %1403 = vmatprep.subr.mxu0 %v85
    %1404 = vmatpush1.msra.mxu0 %v84
    %1405 = vmatprep.subr.mxu0 %v82
    %1406 = vmatpush1.msra.mxu0 %v81
    %1407 = vmatprep.subr.mxu0 %v79
    %1408 = vmatpush1.msra.mxu0 %v78
    %1409 = vmatprep.subr.mxu0 %v76
    %1410 = vmatpush1.msra.mxu0 %v75
    %1411 = vmatprep.subr.mxu0 %v73
    %1412 = vmatpush1.msra.mxu0 %v72
    %1413 = vmatprep.subr.mxu0 %v70
    %1414 = vmatpush1.msra.mxu0 %v69
    %1415 = vmatprep.subr.mxu0 %v67
    %1416 = vmatpush1.msra.mxu0 %v66
    %1417 = vmatprep.subr.mxu0 %v64
    %1418 = vmatpush1.msra.mxu0 %v63
    %1419 = vmatprep.subr.mxu0 %v61
    %1420 = vmatpush1.msra.mxu0 %v60
    %1421 = vmatprep.subr.mxu0 %v58
    %1422 = vmatpush1.msra.mxu0 %v57
    %1423 = vmatprep.subr.mxu0 %v55
    %1424 = vmatpush1.msra.mxu0 %v54
    %1425 = vmatprep.subr.mxu0 %v52
    %1426 = vmatpush1.msra.mxu0 %v51
    %1427 = vmatprep.subr.mxu0 %v49
    %1428 = vmatpush1.msra.mxu0 %v48
    %1429 = vmatprep.subr.mxu0 0.0
    %1430 = vmatpush2.msra.mxu0 0.0
    %1431 = vmatprep.subr.mxu0 0.0
    %1432 = vmatpush2.msra.mxu0 0.0
    %1433 = vmatprep.subr.mxu0 0.0
    %1434 = vmatpush2.msra.mxu0 0.0
    %1435 = vmatprep.subr.mxu0 0.0
    %1436 = vmatpush2.msra.mxu0 0.0
    %1437 = vmatprep.subr.mxu0 0.0
    %1438 = vmatpush2.msra.mxu0 0.0
    %1439 = vmatprep.subr.mxu0 0.0
    %1440 = vmatpush2.msra.mxu0 0.0
    %1441 = vmatprep.subr.mxu0 0.0
    %1442 = vmatpush2.msra.mxu0 0.0
    %1443 = vmatprep.subr.mxu0 0.0
    %1444 = vmatpush2.msra.mxu0 0.0
    %1445 = vmatprep.subr.mxu0 0.0
    %1446 = vmatpush2.msra.mxu0 0.0
    %1447 = vmatprep.subr.mxu0 0.0
    %1448 = vmatpush2.msra.mxu0 0.0
    %1449 = vmatprep.subr.mxu0 0.0
    %1450 = vmatpush2.msra.mxu0 0.0
    %1451 = vmatprep.subr.mxu0 0.0
    %1452 = vmatpush2.msra.mxu0 0.0
    %1453 = vmatprep.subr.mxu0 0.0
    %1454 = vmatpush2.msra.mxu0 0.0
    %1455 = vmatprep.subr.mxu0 0.0
    %1456 = vmatpush2.msra.mxu0 0.0
    %1457 = vmatprep.subr.mxu0 0.0
    %1458 = vmatpush2.msra.mxu0 0.0
    %1459 = vmatprep.subr.mxu0 0.0
    %1460 = vmatpush2.msra.mxu0 0.0
    %1461 = vmatprep.mubr.f32.mxu0 0.0
    %1462 = vmatmul.mubr.f32.gmra.mxu0 %v1395
    %v1463 = vpop.f32.mrf.mxu0
    %v1464 = vadd.f32 %v101, %v1463
    %v1465 = vpop.f32.mrf.mxu0
    %v1466 = vadd.f32 %v105, %v1465
    %1467 = vdwg.mxu0
    %1468 = vmatprep.subr.mxu0 0.0
    %1469 = vmatpush1.msra.mxu0 %v95
    %1470 = vmatprep.subr.mxu0 0.0
    %1471 = vmatpush1.msra.mxu0 %v92
    %1472 = vmatprep.subr.mxu0 0.0
    %1473 = vmatpush1.msra.mxu0 %v89
    %1474 = vmatprep.subr.mxu0 0.0
    %1475 = vmatpush1.msra.mxu0 %v86
    %1476 = vmatprep.subr.mxu0 0.0
    %1477 = vmatpush1.msra.mxu0 %v83
    %1478 = vmatprep.subr.mxu0 0.0
    %1479 = vmatpush1.msra.mxu0 %v80
    %1480 = vmatprep.subr.mxu0 0.0
    %1481 = vmatpush1.msra.mxu0 %v77
    %1482 = vmatprep.subr.mxu0 0.0
    %1483 = vmatpush1.msra.mxu0 %v74
    %1484 = vmatprep.subr.mxu0 0.0
    %1485 = vmatpush1.msra.mxu0 %v71
    %1486 = vmatprep.subr.mxu0 0.0
    %1487 = vmatpush1.msra.mxu0 %v68
    %1488 = vmatprep.subr.mxu0 0.0
    %1489 = vmatpush1.msra.mxu0 %v65
    %1490 = vmatprep.subr.mxu0 0.0
    %1491 = vmatpush1.msra.mxu0 %v62
    %1492 = vmatprep.subr.mxu0 0.0
    %1493 = vmatpush1.msra.mxu0 %v59
    %1494 = vmatprep.subr.mxu0 0.0
    %1495 = vmatpush1.msra.mxu0 %v56
    %1496 = vmatprep.subr.mxu0 0.0
    %1497 = vmatpush1.msra.mxu0 %v53
    %1498 = vmatprep.subr.mxu0 0.0
    %1499 = vmatpush1.msra.mxu0 %v50
    %1500 = vmatprep.subr.mxu0 0.0
    %1501 = vmatpush2.msra.mxu0 0.0
    %1502 = vmatprep.subr.mxu0 0.0
    %1503 = vmatpush2.msra.mxu0 0.0
    %1504 = vmatprep.subr.mxu0 0.0
    %1505 = vmatpush2.msra.mxu0 0.0
    %1506 = vmatprep.subr.mxu0 0.0
    %1507 = vmatpush2.msra.mxu0 0.0
    %1508 = vmatprep.subr.mxu0 0.0
    %1509 = vmatpush2.msra.mxu0 0.0
    %1510 = vmatprep.subr.mxu0 0.0
    %1511 = vmatpush2.msra.mxu0 0.0
    %1512 = vmatprep.subr.mxu0 0.0
    %1513 = vmatpush2.msra.mxu0 0.0
    %1514 = vmatprep.subr.mxu0 0.0
    %1515 = vmatpush2.msra.mxu0 0.0
    %1516 = vmatprep.subr.mxu0 0.0
    %1517 = vmatpush2.msra.mxu0 0.0
    %1518 = vmatprep.subr.mxu0 0.0
    %1519 = vmatpush2.msra.mxu0 0.0
    %1520 = vmatprep.subr.mxu0 0.0
    %1521 = vmatpush2.msra.mxu0 0.0
    %1522 = vmatprep.subr.mxu0 0.0
    %1523 = vmatpush2.msra.mxu0 0.0
    %1524 = vmatprep.subr.mxu0 0.0
    %1525 = vmatpush2.msra.mxu0 0.0
    %1526 = vmatprep.subr.mxu0 0.0
    %1527 = vmatpush2.msra.mxu0 0.0
    %1528 = vmatprep.subr.mxu0 0.0
    %1529 = vmatpush2.msra.mxu0 0.0
    %1530 = vmatprep.subr.mxu0 0.0
    %1531 = vmatpush2.msra.mxu0 0.0
    %1532 = vmatprep.mubr.f32.mxu0 0.0
    %1533 = vmatmul.mubr.f32.gmra.mxu0 %v1395
    %v1534 = vpop.f32.mrf.mxu0
    %v1535 = vadd.f32 %v109, %v1534
    %v1536 = vpop.f32.mrf.mxu0
    %1537 = vdwg.mxu0
    %v1539 = vcombine.high %v1464, %v1464
    %v1541 = vunpack.c.l.s4 1966171168
    %v1542 = vunpack.c.0.s8 %v1541
    %v1543 = vlaneseq
    %v1544 = vshrl.u32 %v1543, 7
    %v1545 = vsub.s32 %v1542, %v1544
    %v1546 = vrot.slane %v1464, %v1545
    %v1548 = vunpack.c.l.s4 1966171168
    %v1549 = vunpack.c.0.s8 %v1548
    %v1550 = vlaneseq
    %v1551 = vshrl.u32 %v1550, 7
    %v1552 = vsub.s32 %v1549, %v1551
    %v1553 = vrot.slane %v1539, %v1552
    %v1554 = vcombine.high %v1546, %v1546
    %v1555 = vcombine.high %v1553, %v1553
    %v1557 = vunpack.c.l.s4 1966171168
    %v1558 = vunpack.c.0.s8 %v1557
    %v1559 = vlaneseq
    %v1560 = vshrl.u32 %v1559, 7
    %v1561 = vsub.s32 %v1558, %v1560
    %v1562 = vrot.slane %v1546, %v1561
    %v1564 = vunpack.c.l.s4 1966171168
    %v1565 = vunpack.c.0.s8 %v1564
    %v1566 = vlaneseq
    %v1567 = vshrl.u32 %v1566, 7
    %v1568 = vsub.s32 %v1565, %v1567
    %v1569 = vrot.slane %v1553, %v1568
    %v1571 = vunpack.c.l.s4 1966171168
    %v1572 = vunpack.c.0.s8 %v1571
    %v1573 = vlaneseq
    %v1574 = vshrl.u32 %v1573, 7
    %v1575 = vsub.s32 %v1572, %v1574
    %v1576 = vrot.slane %v1554, %v1575
    %v1578 = vunpack.c.l.s4 1966171168
    %v1579 = vunpack.c.0.s8 %v1578
    %v1580 = vlaneseq
    %v1581 = vshrl.u32 %v1580, 7
    %v1582 = vsub.s32 %v1579, %v1581
    %v1583 = vrot.slane %v1555, %v1582
    %v1584 = vcombine.high %v1562, %v1562
    %v1585 = vcombine.high %v1569, %v1569
    %v1586 = vcombine.high %v1576, %v1576
    %v1587 = vcombine.high %v1583, %v1583
    %v1596 = vadd.f32 %v1324, %v1562
    %v1597 = vadd.f32 %v1326, %v1576
    %v1598 = vadd.f32 %v1328, %v1584
    %v1599 = vadd.f32 %v1330, %v1586
    %v1600 = vadd.f32 %v1332, %v1569
    %v1601 = vadd.f32 %v1334, %v1583
    %v1602 = vadd.f32 %v1336, %v1585
    %v1603 = vadd.f32 %v1338, %v1587
    %v1604 = vxor.u32 %v1596, 2147483648
    %v1605 = vxor.u32 %v1597, 2147483648
    %v1606 = vxor.u32 %v1598, 2147483648
    %v1607 = vxor.u32 %v1599, 2147483648
    %v1608 = vxor.u32 %v1600, 2147483648
    %v1609 = vxor.u32 %v1601, 2147483648
    %v1610 = vxor.u32 %v1602, 2147483648
    %v1611 = vxor.u32 %v1603, 2147483648
    %v1612 = vmul.f32 %v1604, 1.442695
    %v1613 = vpow.pop %v1612
    %v1614 = vmul.f32 %v1605, 1.442695
    %v1615 = vpow.pop %v1614
    %v1616 = vmul.f32 %v1606, 1.442695
    %v1617 = vpow.pop %v1616
    %v1618 = vmul.f32 %v1607, 1.442695
    %v1619 = vpow.pop %v1618
    %v1620 = vmul.f32 %v1608, 1.442695
    %v1621 = vpow.pop %v1620
    %v1622 = vmul.f32 %v1609, 1.442695
    %v1623 = vpow.pop %v1622
    %v1624 = vmul.f32 %v1610, 1.442695
    %v1625 = vpow.pop %v1624
    %v1626 = vmul.f32 %v1611, 1.442695
    %v1627 = vpow.pop %v1626
    %v1628 = vadd.f32 %v1613, 1.0
    %v1629 = vadd.f32 %v1615, 1.0
    %v1630 = vadd.f32 %v1617, 1.0
    %v1631 = vadd.f32 %v1619, 1.0
    %v1632 = vadd.f32 %v1621, 1.0
    %v1633 = vadd.f32 %v1623, 1.0
    %v1634 = vadd.f32 %v1625, 1.0
    %v1635 = vadd.f32 %v1627, 1.0
    %v1636 = vrcp.pop %v1628
    %v1637 = vmul.f32 1.0, %v1636
    %v1638 = vrcp.pop %v1629
    %v1639 = vmul.f32 1.0, %v1638
    %v1640 = vrcp.pop %v1630
    %v1641 = vmul.f32 1.0, %v1640
    %v1642 = vrcp.pop %v1631
    %v1643 = vmul.f32 1.0, %v1642
    %v1644 = vrcp.pop %v1632
    %v1645 = vmul.f32 1.0, %v1644
    %v1646 = vrcp.pop %v1633
    %v1647 = vmul.f32 1.0, %v1646
    %v1648 = vrcp.pop %v1634
    %v1649 = vmul.f32 1.0, %v1648
    %v1650 = vrcp.pop %v1635
    %v1651 = vmul.f32 1.0, %v1650
    %v1660 = vrot.slane %v1324, 1
    %v1661 = vrot.slane %v1326, 1
    %v1662 = vrot.slane %v1328, 1
    %v1663 = vrot.slane %v1330, 1
    %v1664 = vrot.slane %v1332, 1
    %v1665 = vrot.slane %v1334, 1
    %v1666 = vrot.slane %v1336, 1
    %v1667 = vrot.slane %v1338, 1
    %v1677 = vcombine.high %v1466, %v1466
    %v1679 = vunpack.c.l.s4 1966171168
    %v1680 = vunpack.c.0.s8 %v1679
    %v1681 = vlaneseq
    %v1682 = vshrl.u32 %v1681, 7
    %v1683 = vsub.s32 %v1680, %v1682
    %v1684 = vrot.slane %v1466, %v1683
    %v1686 = vunpack.c.l.s4 1966171168
    %v1687 = vunpack.c.0.s8 %v1686
    %v1688 = vlaneseq
    %v1689 = vshrl.u32 %v1688, 7
    %v1690 = vsub.s32 %v1687, %v1689
    %v1691 = vrot.slane %v1677, %v1690
    %v1692 = vcombine.high %v1684, %v1684
    %v1693 = vcombine.high %v1691, %v1691
    %v1695 = vunpack.c.l.s4 1966171168
    %v1696 = vunpack.c.0.s8 %v1695
    %v1697 = vlaneseq
    %v1698 = vshrl.u32 %v1697, 7
    %v1699 = vsub.s32 %v1696, %v1698
    %v1700 = vrot.slane %v1684, %v1699
    %v1702 = vunpack.c.l.s4 1966171168
    %v1703 = vunpack.c.0.s8 %v1702
    %v1704 = vlaneseq
    %v1705 = vshrl.u32 %v1704, 7
    %v1706 = vsub.s32 %v1703, %v1705
    %v1707 = vrot.slane %v1691, %v1706
    %v1709 = vunpack.c.l.s4 1966171168
    %v1710 = vunpack.c.0.s8 %v1709
    %v1711 = vlaneseq
    %v1712 = vshrl.u32 %v1711, 7
    %v1713 = vsub.s32 %v1710, %v1712
    %v1714 = vrot.slane %v1692, %v1713
    %v1716 = vunpack.c.l.s4 1966171168
    %v1717 = vunpack.c.0.s8 %v1716
    %v1718 = vlaneseq
    %v1719 = vshrl.u32 %v1718, 7
    %v1720 = vsub.s32 %v1717, %v1719
    %v1721 = vrot.slane %v1693, %v1720
    %v1722 = vcombine.high %v1700, %v1700
    %v1723 = vcombine.high %v1707, %v1707
    %v1724 = vcombine.high %v1714, %v1714
    %v1725 = vcombine.high %v1721, %v1721
    %v1734 = vadd.f32 %v1660, %v1700
    %v1735 = vadd.f32 %v1661, %v1714
    %v1736 = vadd.f32 %v1662, %v1722
    %v1737 = vadd.f32 %v1663, %v1724
    %v1738 = vadd.f32 %v1664, %v1707
    %v1739 = vadd.f32 %v1665, %v1721
    %v1740 = vadd.f32 %v1666, %v1723
    %v1741 = vadd.f32 %v1667, %v1725
    %v1742 = vxor.u32 %v1734, 2147483648
    %v1743 = vxor.u32 %v1735, 2147483648
    %v1744 = vxor.u32 %v1736, 2147483648
    %v1745 = vxor.u32 %v1737, 2147483648
    %v1746 = vxor.u32 %v1738, 2147483648
    %v1747 = vxor.u32 %v1739, 2147483648
    %v1748 = vxor.u32 %v1740, 2147483648
    %v1749 = vxor.u32 %v1741, 2147483648
    %v1750 = vmul.f32 %v1742, 1.442695
    %v1751 = vpow.pop %v1750
    %v1752 = vmul.f32 %v1743, 1.442695
    %v1753 = vpow.pop %v1752
    %v1754 = vmul.f32 %v1744, 1.442695
    %v1755 = vpow.pop %v1754
    %v1756 = vmul.f32 %v1745, 1.442695
    %v1757 = vpow.pop %v1756
    %v1758 = vmul.f32 %v1746, 1.442695
    %v1759 = vpow.pop %v1758
    %v1760 = vmul.f32 %v1747, 1.442695
    %v1761 = vpow.pop %v1760
    %v1762 = vmul.f32 %v1748, 1.442695
    %v1763 = vpow.pop %v1762
    %v1764 = vmul.f32 %v1749, 1.442695
    %v1765 = vpow.pop %v1764
    %v1766 = vadd.f32 %v1751, 1.0
    %v1767 = vadd.f32 %v1753, 1.0
    %v1768 = vadd.f32 %v1755, 1.0
    %v1769 = vadd.f32 %v1757, 1.0
    %v1770 = vadd.f32 %v1759, 1.0
    %v1771 = vadd.f32 %v1761, 1.0
    %v1772 = vadd.f32 %v1763, 1.0
    %v1773 = vadd.f32 %v1765, 1.0
    %v1774 = vrcp.pop %v1766
    %v1775 = vmul.f32 1.0, %v1774
    %v1776 = vrcp.pop %v1767
    %v1777 = vmul.f32 1.0, %v1776
    %v1778 = vrcp.pop %v1768
    %v1779 = vmul.f32 1.0, %v1778
    %v1780 = vrcp.pop %v1769
    %v1781 = vmul.f32 1.0, %v1780
    %v1782 = vrcp.pop %v1770
    %v1783 = vmul.f32 1.0, %v1782
    %v1784 = vrcp.pop %v1771
    %v1785 = vmul.f32 1.0, %v1784
    %v1786 = vrcp.pop %v1772
    %v1787 = vmul.f32 1.0, %v1786
    %v1788 = vrcp.pop %v1773
    %v1789 = vmul.f32 1.0, %v1788
    %v1791 = vcombine.high %v1535, %v1535
    %v1793 = vunpack.c.l.s4 1966171168
    %v1794 = vunpack.c.0.s8 %v1793
    %v1795 = vlaneseq
    %v1796 = vshrl.u32 %v1795, 7
    %v1797 = vsub.s32 %v1794, %v1796
    %v1798 = vrot.slane %v1535, %v1797
    %v1800 = vunpack.c.l.s4 1966171168
    %v1801 = vunpack.c.0.s8 %v1800
    %v1802 = vlaneseq
    %v1803 = vshrl.u32 %v1802, 7
    %v1804 = vsub.s32 %v1801, %v1803
    %v1805 = vrot.slane %v1791, %v1804
    %v1806 = vcombine.high %v1798, %v1798
    %v1807 = vcombine.high %v1805, %v1805
    %v1809 = vunpack.c.l.s4 1966171168
    %v1810 = vunpack.c.0.s8 %v1809
    %v1811 = vlaneseq
    %v1812 = vshrl.u32 %v1811, 7
    %v1813 = vsub.s32 %v1810, %v1812
    %v1814 = vrot.slane %v1798, %v1813
    %v1816 = vunpack.c.l.s4 1966171168
    %v1817 = vunpack.c.0.s8 %v1816
    %v1818 = vlaneseq
    %v1819 = vshrl.u32 %v1818, 7
    %v1820 = vsub.s32 %v1817, %v1819
    %v1821 = vrot.slane %v1805, %v1820
    %v1823 = vunpack.c.l.s4 1966171168
    %v1824 = vunpack.c.0.s8 %v1823
    %v1825 = vlaneseq
    %v1826 = vshrl.u32 %v1825, 7
    %v1827 = vsub.s32 %v1824, %v1826
    %v1828 = vrot.slane %v1806, %v1827
    %v1830 = vunpack.c.l.s4 1966171168
    %v1831 = vunpack.c.0.s8 %v1830
    %v1832 = vlaneseq
    %v1833 = vshrl.u32 %v1832, 7
    %v1834 = vsub.s32 %v1831, %v1833
    %v1835 = vrot.slane %v1807, %v1834
    %v1836 = vcombine.high %v1814, %v1814
    %v1837 = vcombine.high %v1821, %v1821
    %v1838 = vcombine.high %v1828, %v1828
    %v1839 = vcombine.high %v1835, %v1835
    %v1848 = vmul.f32 %v1637, %v1814
    %v1849 = vmul.f32 %v1639, %v1828
    %v1850 = vmul.f32 %v1641, %v1836
    %v1851 = vmul.f32 %v1643, %v1838
    %v1852 = vmul.f32 %v1645, %v1821
    %v1853 = vmul.f32 %v1647, %v1835
    %v1854 = vmul.f32 %v1649, %v1837
    %v1855 = vmul.f32 %v1651, %v1839
    %v1856 = vrot.slane %v1324, 2
    %v1857 = vrot.slane %v1326, 2
    %v1858 = vrot.slane %v1328, 2
    %v1859 = vrot.slane %v1330, 2
    %v1860 = vrot.slane %v1332, 2
    %v1861 = vrot.slane %v1334, 2
    %v1862 = vrot.slane %v1336, 2
    %v1863 = vrot.slane %v1338, 2
    %v1872 = vadd.f32 %v1856, %v1848
    %v1873 = vadd.f32 %v1857, %v1849
    %v1874 = vadd.f32 %v1858, %v1850
    %v1875 = vadd.f32 %v1859, %v1851
    %v1876 = vadd.f32 %v1860, %v1852
    %v1877 = vadd.f32 %v1861, %v1853
    %v1878 = vadd.f32 %v1862, %v1854
    %v1879 = vadd.f32 %v1863, %v1855
    %v1880 = vtanh.pop %v1872
    %v1881 = vtanh.pop %v1873
    %v1882 = vtanh.pop %v1874
    %v1883 = vtanh.pop %v1875
    %v1884 = vtanh.pop %v1876
    %v1885 = vtanh.pop %v1877
    %v1886 = vtanh.pop %v1878
    %v1887 = vtanh.pop %v1879
    %v1888 = vsub.f32 1.0, %v1775
    %v1889 = vsub.f32 1.0, %v1777
    %v1890 = vsub.f32 1.0, %v1779
    %v1891 = vsub.f32 1.0, %v1781
    %v1892 = vsub.f32 1.0, %v1783
    %v1893 = vsub.f32 1.0, %v1785
    %v1894 = vsub.f32 1.0, %v1787
    %v1895 = vsub.f32 1.0, %v1789
    %v1896 = vmul.f32 %v1888, %v1880
    %v1897 = vmul.f32 %v1889, %v1881
    %v1898 = vmul.f32 %v1890, %v1882
    %v1899 = vmul.f32 %v1891, %v1883
    %v1900 = vmul.f32 %v1892, %v1884
    %v1901 = vmul.f32 %v1893, %v1885
    %v1902 = vmul.f32 %v1894, %v1886
    %v1903 = vmul.f32 %v1895, %v1887
    %v1904 = vmul.f32 %v1775, %v1307
    %v1905 = vmul.f32 %v1777, %v1308
    %v1906 = vmul.f32 %v1779, %v1309
    %v1907 = vmul.f32 %v1781, %v1310
    %v1908 = vmul.f32 %v1783, %v1311
    %v1909 = vmul.f32 %v1785, %v1312
    %v1910 = vmul.f32 %v1787, %v1313
    %v1911 = vmul.f32 %v1789, %v1314
    %v1912 = vadd.f32 %v1896, %v1904
    %v1913 = vadd.f32 %v1897, %v1905
    %v1914 = vadd.f32 %v1898, %v1906
    %v1915 = vadd.f32 %v1899, %v1907
    %v1916 = vadd.f32 %v1900, %v1908
    %v1917 = vadd.f32 %v1901, %v1909
    %v1918 = vadd.f32 %v1902, %v1910
    %v1919 = vadd.f32 %v1903, %v1911
    %1920 = vst [vmem:[#allocation8 + $0x2] sm:$0x1] %v1912
    %1921 = vst [vmem:[#allocation8 + $0xa] sm:$0x1] %v1913
    %1922 = vst [vmem:[#allocation8 + $0x12] sm:$0x1] %v1914
    %1923 = vst [vmem:[#allocation8 + $0x1a] sm:$0x1] %v1915
    %1924 = vst [vmem:[#allocation8 + $0x22] sm:$0x1] %v1916
    %1925 = vst [vmem:[#allocation8 + $0x2a] sm:$0x1] %v1917
    %1926 = vst [vmem:[#allocation8 + $0x32] sm:$0x1] %v1918
    %1927 = vst [vmem:[#allocation8 + $0x3a] sm:$0x1] %v1919
    %s1928 = scalar_lea.vmem [#allocation3], 3
    %v1929 = vld [vmem:[%s1928] ss:$8 sm:$0x7]
    %s1930 = scalar_lea.vmem [#allocation3], 27
    %v1931 = vld [vmem:[%s1930] ss:$8 sm:$0x7]
    %s1932 = scalar_lea.vmem [#allocation3], 51
    %v1933 = vld [vmem:[%s1932] ss:$8 sm:$0x7]
    %s1934 = scalar_lea.vmem [#allocation3], 75
    %v1935 = vld [vmem:[%s1934] ss:$8 sm:$0x7]
    %s1936 = scalar_lea.vmem [#allocation3], 99
    %v1937 = vld [vmem:[%s1936] ss:$8 sm:$0x7]
    %s1938 = scalar_lea.vmem [#allocation3], 123
    %v1939 = vld [vmem:[%s1938] ss:$8 sm:$0x7]
    %s1940 = scalar_lea.vmem [#allocation3], 147
    %v1941 = vld [vmem:[%s1940] ss:$8 sm:$0x7]
    %s1942 = scalar_lea.vmem [#allocation3], 171
    %v1943 = vld [vmem:[%s1942] ss:$8 sm:$0x7]
    %v1952 = vcombine.low %v1912, %v1913
    %v1953 = vcombine.low %v1914, %v1915
    %v1954 = vcombine.low %v1916, %v1917
    %v1955 = vcombine.low %v1918, %v1919
    %v1957 = vunpack.c.l.s4 1966171168
    %v1958 = vunpack.c.0.s8 %v1957
    %v1959 = vlaneseq
    %v1960 = vshrl.u32 %v1959, 7
    %v1961 = vsub.s32 %v1958, %v1960
    %v1962 = vrot.slane %v1952, %v1961
    %v1964 = vunpack.c.l.s4 1966171168
    %v1965 = vunpack.c.0.s8 %v1964
    %v1966 = vlaneseq
    %v1967 = vshrl.u32 %v1966, 7
    %v1968 = vsub.s32 %v1965, %v1967
    %v1969 = vrot.slane %v1953, %v1968
    %v1971 = vunpack.c.l.s4 1966171168
    %v1972 = vunpack.c.0.s8 %v1971
    %v1973 = vlaneseq
    %v1974 = vshrl.u32 %v1973, 7
    %v1975 = vsub.s32 %v1972, %v1974
    %v1976 = vrot.slane %v1954, %v1975
    %v1978 = vunpack.c.l.s4 1966171168
    %v1979 = vunpack.c.0.s8 %v1978
    %v1980 = vlaneseq
    %v1981 = vshrl.u32 %v1980, 7
    %v1982 = vsub.s32 %v1979, %v1981
    %v1983 = vrot.slane %v1955, %v1982
    %v1984 = vcombine.low %v1962, %v1969
    %v1985 = vcombine.low %v1976, %v1983
    %v1987 = vunpack.c.l.s4 1966171168
    %v1988 = vunpack.c.0.s8 %v1987
    %v1989 = vlaneseq
    %v1990 = vshrl.u32 %v1989, 7
    %v1991 = vsub.s32 %v1988, %v1990
    %v1992 = vrot.slane %v1984, %v1991
    %v1994 = vunpack.c.l.s4 1966171168
    %v1995 = vunpack.c.0.s8 %v1994
    %v1996 = vlaneseq
    %v1997 = vshrl.u32 %v1996, 7
    %v1998 = vsub.s32 %v1995, %v1997
    %v1999 = vrot.slane %v1985, %v1998
    %v2000 = vcombine.low %v1992, %v1999
    %2002 = vmatprep.subr.mxu0 %v94
    %2003 = vmatpush1.msra.mxu0 %v93
    %2004 = vmatprep.subr.mxu0 %v91
    %2005 = vmatpush1.msra.mxu0 %v90
    %2006 = vmatprep.subr.mxu0 %v88
    %2007 = vmatpush1.msra.mxu0 %v87
    %2008 = vmatprep.subr.mxu0 %v85
    %2009 = vmatpush1.msra.mxu0 %v84
    %2010 = vmatprep.subr.mxu0 %v82
    %2011 = vmatpush1.msra.mxu0 %v81
    %2012 = vmatprep.subr.mxu0 %v79
    %2013 = vmatpush1.msra.mxu0 %v78
    %2014 = vmatprep.subr.mxu0 %v76
    %2015 = vmatpush1.msra.mxu0 %v75
    %2016 = vmatprep.subr.mxu0 %v73
    %2017 = vmatpush1.msra.mxu0 %v72
    %2018 = vmatprep.subr.mxu0 %v70
    %2019 = vmatpush1.msra.mxu0 %v69
    %2020 = vmatprep.subr.mxu0 %v67
    %2021 = vmatpush1.msra.mxu0 %v66
    %2022 = vmatprep.subr.mxu0 %v64
    %2023 = vmatpush1.msra.mxu0 %v63
    %2024 = vmatprep.subr.mxu0 %v61
    %2025 = vmatpush1.msra.mxu0 %v60
    %2026 = vmatprep.subr.mxu0 %v58
    %2027 = vmatpush1.msra.mxu0 %v57
    %2028 = vmatprep.subr.mxu0 %v55
    %2029 = vmatpush1.msra.mxu0 %v54
    %2030 = vmatprep.subr.mxu0 %v52
    %2031 = vmatpush1.msra.mxu0 %v51
    %2032 = vmatprep.subr.mxu0 %v49
    %2033 = vmatpush1.msra.mxu0 %v48
    %2034 = vmatprep.subr.mxu0 0.0
    %2035 = vmatpush2.msra.mxu0 0.0
    %2036 = vmatprep.subr.mxu0 0.0
    %2037 = vmatpush2.msra.mxu0 0.0
    %2038 = vmatprep.subr.mxu0 0.0
    %2039 = vmatpush2.msra.mxu0 0.0
    %2040 = vmatprep.subr.mxu0 0.0
    %2041 = vmatpush2.msra.mxu0 0.0
    %2042 = vmatprep.subr.mxu0 0.0
    %2043 = vmatpush2.msra.mxu0 0.0
    %2044 = vmatprep.subr.mxu0 0.0
    %2045 = vmatpush2.msra.mxu0 0.0
    %2046 = vmatprep.subr.mxu0 0.0
    %2047 = vmatpush2.msra.mxu0 0.0
    %2048 = vmatprep.subr.mxu0 0.0
    %2049 = vmatpush2.msra.mxu0 0.0
    %2050 = vmatprep.subr.mxu0 0.0
    %2051 = vmatpush2.msra.mxu0 0.0
    %2052 = vmatprep.subr.mxu0 0.0
    %2053 = vmatpush2.msra.mxu0 0.0
    %2054 = vmatprep.subr.mxu0 0.0
    %2055 = vmatpush2.msra.mxu0 0.0
    %2056 = vmatprep.subr.mxu0 0.0
    %2057 = vmatpush2.msra.mxu0 0.0
    %2058 = vmatprep.subr.mxu0 0.0
    %2059 = vmatpush2.msra.mxu0 0.0
    %2060 = vmatprep.subr.mxu0 0.0
    %2061 = vmatpush2.msra.mxu0 0.0
    %2062 = vmatprep.subr.mxu0 0.0
    %2063 = vmatpush2.msra.mxu0 0.0
    %2064 = vmatprep.subr.mxu0 0.0
    %2065 = vmatpush2.msra.mxu0 0.0
    %2066 = vmatprep.mubr.f32.mxu0 0.0
    %2067 = vmatmul.mubr.f32.gmra.mxu0 %v2000
    %v2068 = vpop.f32.mrf.mxu0
    %v2069 = vadd.f32 %v101, %v2068
    %v2070 = vpop.f32.mrf.mxu0
    %v2071 = vadd.f32 %v105, %v2070
    %2072 = vdwg.mxu0
    %2073 = vmatprep.subr.mxu0 0.0
    %2074 = vmatpush1.msra.mxu0 %v95
    %2075 = vmatprep.subr.mxu0 0.0
    %2076 = vmatpush1.msra.mxu0 %v92
    %2077 = vmatprep.subr.mxu0 0.0
    %2078 = vmatpush1.msra.mxu0 %v89
    %2079 = vmatprep.subr.mxu0 0.0
    %2080 = vmatpush1.msra.mxu0 %v86
    %2081 = vmatprep.subr.mxu0 0.0
    %2082 = vmatpush1.msra.mxu0 %v83
    %2083 = vmatprep.subr.mxu0 0.0
    %2084 = vmatpush1.msra.mxu0 %v80
    %2085 = vmatprep.subr.mxu0 0.0
    %2086 = vmatpush1.msra.mxu0 %v77
    %2087 = vmatprep.subr.mxu0 0.0
    %2088 = vmatpush1.msra.mxu0 %v74
    %2089 = vmatprep.subr.mxu0 0.0
    %2090 = vmatpush1.msra.mxu0 %v71
    %2091 = vmatprep.subr.mxu0 0.0
    %2092 = vmatpush1.msra.mxu0 %v68
    %2093 = vmatprep.subr.mxu0 0.0
    %2094 = vmatpush1.msra.mxu0 %v65
    %2095 = vmatprep.subr.mxu0 0.0
    %2096 = vmatpush1.msra.mxu0 %v62
    %2097 = vmatprep.subr.mxu0 0.0
    %2098 = vmatpush1.msra.mxu0 %v59
    %2099 = vmatprep.subr.mxu0 0.0
    %2100 = vmatpush1.msra.mxu0 %v56
    %2101 = vmatprep.subr.mxu0 0.0
    %2102 = vmatpush1.msra.mxu0 %v53
    %2103 = vmatprep.subr.mxu0 0.0
    %2104 = vmatpush1.msra.mxu0 %v50
    %2105 = vmatprep.subr.mxu0 0.0
    %2106 = vmatpush2.msra.mxu0 0.0
    %2107 = vmatprep.subr.mxu0 0.0
    %2108 = vmatpush2.msra.mxu0 0.0
    %2109 = vmatprep.subr.mxu0 0.0
    %2110 = vmatpush2.msra.mxu0 0.0
    %2111 = vmatprep.subr.mxu0 0.0
    %2112 = vmatpush2.msra.mxu0 0.0
    %2113 = vmatprep.subr.mxu0 0.0
    %2114 = vmatpush2.msra.mxu0 0.0
    %2115 = vmatprep.subr.mxu0 0.0
    %2116 = vmatpush2.msra.mxu0 0.0
    %2117 = vmatprep.subr.mxu0 0.0
    %2118 = vmatpush2.msra.mxu0 0.0
    %2119 = vmatprep.subr.mxu0 0.0
    %2120 = vmatpush2.msra.mxu0 0.0
    %2121 = vmatprep.subr.mxu0 0.0
    %2122 = vmatpush2.msra.mxu0 0.0
    %2123 = vmatprep.subr.mxu0 0.0
    %2124 = vmatpush2.msra.mxu0 0.0
    %2125 = vmatprep.subr.mxu0 0.0
    %2126 = vmatpush2.msra.mxu0 0.0
    %2127 = vmatprep.subr.mxu0 0.0
    %2128 = vmatpush2.msra.mxu0 0.0
    %2129 = vmatprep.subr.mxu0 0.0
    %2130 = vmatpush2.msra.mxu0 0.0
    %2131 = vmatprep.subr.mxu0 0.0
    %2132 = vmatpush2.msra.mxu0 0.0
    %2133 = vmatprep.subr.mxu0 0.0
    %2134 = vmatpush2.msra.mxu0 0.0
    %2135 = vmatprep.subr.mxu0 0.0
    %2136 = vmatpush2.msra.mxu0 0.0
    %2137 = vmatprep.mubr.f32.mxu0 0.0
    %2138 = vmatmul.mubr.f32.gmra.mxu0 %v2000
    %v2139 = vpop.f32.mrf.mxu0
    %v2140 = vadd.f32 %v109, %v2139
    %v2141 = vpop.f32.mrf.mxu0
    %2142 = vdwg.mxu0
    %v2144 = vcombine.high %v2069, %v2069
    %v2146 = vunpack.c.l.s4 1966171168
    %v2147 = vunpack.c.0.s8 %v2146
    %v2148 = vlaneseq
    %v2149 = vshrl.u32 %v2148, 7
    %v2150 = vsub.s32 %v2147, %v2149
    %v2151 = vrot.slane %v2069, %v2150
    %v2153 = vunpack.c.l.s4 1966171168
    %v2154 = vunpack.c.0.s8 %v2153
    %v2155 = vlaneseq
    %v2156 = vshrl.u32 %v2155, 7
    %v2157 = vsub.s32 %v2154, %v2156
    %v2158 = vrot.slane %v2144, %v2157
    %v2159 = vcombine.high %v2151, %v2151
    %v2160 = vcombine.high %v2158, %v2158
    %v2162 = vunpack.c.l.s4 1966171168
    %v2163 = vunpack.c.0.s8 %v2162
    %v2164 = vlaneseq
    %v2165 = vshrl.u32 %v2164, 7
    %v2166 = vsub.s32 %v2163, %v2165
    %v2167 = vrot.slane %v2151, %v2166
    %v2169 = vunpack.c.l.s4 1966171168
    %v2170 = vunpack.c.0.s8 %v2169
    %v2171 = vlaneseq
    %v2172 = vshrl.u32 %v2171, 7
    %v2173 = vsub.s32 %v2170, %v2172
    %v2174 = vrot.slane %v2158, %v2173
    %v2176 = vunpack.c.l.s4 1966171168
    %v2177 = vunpack.c.0.s8 %v2176
    %v2178 = vlaneseq
    %v2179 = vshrl.u32 %v2178, 7
    %v2180 = vsub.s32 %v2177, %v2179
    %v2181 = vrot.slane %v2159, %v2180
    %v2183 = vunpack.c.l.s4 1966171168
    %v2184 = vunpack.c.0.s8 %v2183
    %v2185 = vlaneseq
    %v2186 = vshrl.u32 %v2185, 7
    %v2187 = vsub.s32 %v2184, %v2186
    %v2188 = vrot.slane %v2160, %v2187
    %v2189 = vcombine.high %v2167, %v2167
    %v2190 = vcombine.high %v2174, %v2174
    %v2191 = vcombine.high %v2181, %v2181
    %v2192 = vcombine.high %v2188, %v2188
    %v2201 = vadd.f32 %v1929, %v2167
    %v2202 = vadd.f32 %v1931, %v2181
    %v2203 = vadd.f32 %v1933, %v2189
    %v2204 = vadd.f32 %v1935, %v2191
    %v2205 = vadd.f32 %v1937, %v2174
    %v2206 = vadd.f32 %v1939, %v2188
    %v2207 = vadd.f32 %v1941, %v2190
    %v2208 = vadd.f32 %v1943, %v2192
    %v2209 = vxor.u32 %v2201, 2147483648
    %v2210 = vxor.u32 %v2202, 2147483648
    %v2211 = vxor.u32 %v2203, 2147483648
    %v2212 = vxor.u32 %v2204, 2147483648
    %v2213 = vxor.u32 %v2205, 2147483648
    %v2214 = vxor.u32 %v2206, 2147483648
    %v2215 = vxor.u32 %v2207, 2147483648
    %v2216 = vxor.u32 %v2208, 2147483648
    %v2217 = vmul.f32 %v2209, 1.442695
    %v2218 = vpow.pop %v2217
    %v2219 = vmul.f32 %v2210, 1.442695
    %v2220 = vpow.pop %v2219
    %v2221 = vmul.f32 %v2211, 1.442695
    %v2222 = vpow.pop %v2221
    %v2223 = vmul.f32 %v2212, 1.442695
    %v2224 = vpow.pop %v2223
    %v2225 = vmul.f32 %v2213, 1.442695
    %v2226 = vpow.pop %v2225
    %v2227 = vmul.f32 %v2214, 1.442695
    %v2228 = vpow.pop %v2227
    %v2229 = vmul.f32 %v2215, 1.442695
    %v2230 = vpow.pop %v2229
    %v2231 = vmul.f32 %v2216, 1.442695
    %v2232 = vpow.pop %v2231
    %v2233 = vadd.f32 %v2218, 1.0
    %v2234 = vadd.f32 %v2220, 1.0
    %v2235 = vadd.f32 %v2222, 1.0
    %v2236 = vadd.f32 %v2224, 1.0
    %v2237 = vadd.f32 %v2226, 1.0
    %v2238 = vadd.f32 %v2228, 1.0
    %v2239 = vadd.f32 %v2230, 1.0
    %v2240 = vadd.f32 %v2232, 1.0
    %v2241 = vrcp.pop %v2233
    %v2242 = vmul.f32 1.0, %v2241
    %v2243 = vrcp.pop %v2234
    %v2244 = vmul.f32 1.0, %v2243
    %v2245 = vrcp.pop %v2235
    %v2246 = vmul.f32 1.0, %v2245
    %v2247 = vrcp.pop %v2236
    %v2248 = vmul.f32 1.0, %v2247
    %v2249 = vrcp.pop %v2237
    %v2250 = vmul.f32 1.0, %v2249
    %v2251 = vrcp.pop %v2238
    %v2252 = vmul.f32 1.0, %v2251
    %v2253 = vrcp.pop %v2239
    %v2254 = vmul.f32 1.0, %v2253
    %v2255 = vrcp.pop %v2240
    %v2256 = vmul.f32 1.0, %v2255
    %v2265 = vrot.slane %v1929, 1
    %v2266 = vrot.slane %v1931, 1
    %v2267 = vrot.slane %v1933, 1
    %v2268 = vrot.slane %v1935, 1
    %v2269 = vrot.slane %v1937, 1
    %v2270 = vrot.slane %v1939, 1
    %v2271 = vrot.slane %v1941, 1
    %v2272 = vrot.slane %v1943, 1
    %v2282 = vcombine.high %v2071, %v2071
    %v2284 = vunpack.c.l.s4 1966171168
    %v2285 = vunpack.c.0.s8 %v2284
    %v2286 = vlaneseq
    %v2287 = vshrl.u32 %v2286, 7
    %v2288 = vsub.s32 %v2285, %v2287
    %v2289 = vrot.slane %v2071, %v2288
    %v2291 = vunpack.c.l.s4 1966171168
    %v2292 = vunpack.c.0.s8 %v2291
    %v2293 = vlaneseq
    %v2294 = vshrl.u32 %v2293, 7
    %v2295 = vsub.s32 %v2292, %v2294
    %v2296 = vrot.slane %v2282, %v2295
    %v2297 = vcombine.high %v2289, %v2289
    %v2298 = vcombine.high %v2296, %v2296
    %v2300 = vunpack.c.l.s4 1966171168
    %v2301 = vunpack.c.0.s8 %v2300
    %v2302 = vlaneseq
    %v2303 = vshrl.u32 %v2302, 7
    %v2304 = vsub.s32 %v2301, %v2303
    %v2305 = vrot.slane %v2289, %v2304
    %v2307 = vunpack.c.l.s4 1966171168
    %v2308 = vunpack.c.0.s8 %v2307
    %v2309 = vlaneseq
    %v2310 = vshrl.u32 %v2309, 7
    %v2311 = vsub.s32 %v2308, %v2310
    %v2312 = vrot.slane %v2296, %v2311
    %v2314 = vunpack.c.l.s4 1966171168
    %v2315 = vunpack.c.0.s8 %v2314
    %v2316 = vlaneseq
    %v2317 = vshrl.u32 %v2316, 7
    %v2318 = vsub.s32 %v2315, %v2317
    %v2319 = vrot.slane %v2297, %v2318
    %v2321 = vunpack.c.l.s4 1966171168
    %v2322 = vunpack.c.0.s8 %v2321
    %v2323 = vlaneseq
    %v2324 = vshrl.u32 %v2323, 7
    %v2325 = vsub.s32 %v2322, %v2324
    %v2326 = vrot.slane %v2298, %v2325
    %v2327 = vcombine.high %v2305, %v2305
    %v2328 = vcombine.high %v2312, %v2312
    %v2329 = vcombine.high %v2319, %v2319
    %v2330 = vcombine.high %v2326, %v2326
    %v2339 = vadd.f32 %v2265, %v2305
    %v2340 = vadd.f32 %v2266, %v2319
    %v2341 = vadd.f32 %v2267, %v2327
    %v2342 = vadd.f32 %v2268, %v2329
    %v2343 = vadd.f32 %v2269, %v2312
    %v2344 = vadd.f32 %v2270, %v2326
    %v2345 = vadd.f32 %v2271, %v2328
    %v2346 = vadd.f32 %v2272, %v2330
    %v2347 = vxor.u32 %v2339, 2147483648
    %v2348 = vxor.u32 %v2340, 2147483648
    %v2349 = vxor.u32 %v2341, 2147483648
    %v2350 = vxor.u32 %v2342, 2147483648
    %v2351 = vxor.u32 %v2343, 2147483648
    %v2352 = vxor.u32 %v2344, 2147483648
    %v2353 = vxor.u32 %v2345, 2147483648
    %v2354 = vxor.u32 %v2346, 2147483648
    %v2355 = vmul.f32 %v2347, 1.442695
    %v2356 = vpow.pop %v2355
    %v2357 = vmul.f32 %v2348, 1.442695
    %v2358 = vpow.pop %v2357
    %v2359 = vmul.f32 %v2349, 1.442695
    %v2360 = vpow.pop %v2359
    %v2361 = vmul.f32 %v2350, 1.442695
    %v2362 = vpow.pop %v2361
    %v2363 = vmul.f32 %v2351, 1.442695
    %v2364 = vpow.pop %v2363
    %v2365 = vmul.f32 %v2352, 1.442695
    %v2366 = vpow.pop %v2365
    %v2367 = vmul.f32 %v2353, 1.442695
    %v2368 = vpow.pop %v2367
    %v2369 = vmul.f32 %v2354, 1.442695
    %v2370 = vpow.pop %v2369
    %v2371 = vadd.f32 %v2356, 1.0
    %v2372 = vadd.f32 %v2358, 1.0
    %v2373 = vadd.f32 %v2360, 1.0
    %v2374 = vadd.f32 %v2362, 1.0
    %v2375 = vadd.f32 %v2364, 1.0
    %v2376 = vadd.f32 %v2366, 1.0
    %v2377 = vadd.f32 %v2368, 1.0
    %v2378 = vadd.f32 %v2370, 1.0
    %v2379 = vrcp.pop %v2371
    %v2380 = vmul.f32 1.0, %v2379
    %v2381 = vrcp.pop %v2372
    %v2382 = vmul.f32 1.0, %v2381
    %v2383 = vrcp.pop %v2373
    %v2384 = vmul.f32 1.0, %v2383
    %v2385 = vrcp.pop %v2374
    %v2386 = vmul.f32 1.0, %v2385
    %v2387 = vrcp.pop %v2375
    %v2388 = vmul.f32 1.0, %v2387
    %v2389 = vrcp.pop %v2376
    %v2390 = vmul.f32 1.0, %v2389
    %v2391 = vrcp.pop %v2377
    %v2392 = vmul.f32 1.0, %v2391
    %v2393 = vrcp.pop %v2378
    %v2394 = vmul.f32 1.0, %v2393
    %v2396 = vcombine.high %v2140, %v2140
    %v2398 = vunpack.c.l.s4 1966171168
    %v2399 = vunpack.c.0.s8 %v2398
    %v2400 = vlaneseq
    %v2401 = vshrl.u32 %v2400, 7
    %v2402 = vsub.s32 %v2399, %v2401
    %v2403 = vrot.slane %v2140, %v2402
    %v2405 = vunpack.c.l.s4 1966171168
    %v2406 = vunpack.c.0.s8 %v2405
    %v2407 = vlaneseq
    %v2408 = vshrl.u32 %v2407, 7
    %v2409 = vsub.s32 %v2406, %v2408
    %v2410 = vrot.slane %v2396, %v2409
    %v2411 = vcombine.high %v2403, %v2403
    %v2412 = vcombine.high %v2410, %v2410
    %v2414 = vunpack.c.l.s4 1966171168
    %v2415 = vunpack.c.0.s8 %v2414
    %v2416 = vlaneseq
    %v2417 = vshrl.u32 %v2416, 7
    %v2418 = vsub.s32 %v2415, %v2417
    %v2419 = vrot.slane %v2403, %v2418
    %v2421 = vunpack.c.l.s4 1966171168
    %v2422 = vunpack.c.0.s8 %v2421
    %v2423 = vlaneseq
    %v2424 = vshrl.u32 %v2423, 7
    %v2425 = vsub.s32 %v2422, %v2424
    %v2426 = vrot.slane %v2410, %v2425
    %v2428 = vunpack.c.l.s4 1966171168
    %v2429 = vunpack.c.0.s8 %v2428
    %v2430 = vlaneseq
    %v2431 = vshrl.u32 %v2430, 7
    %v2432 = vsub.s32 %v2429, %v2431
    %v2433 = vrot.slane %v2411, %v2432
    %v2435 = vunpack.c.l.s4 1966171168
    %v2436 = vunpack.c.0.s8 %v2435
    %v2437 = vlaneseq
    %v2438 = vshrl.u32 %v2437, 7
    %v2439 = vsub.s32 %v2436, %v2438
    %v2440 = vrot.slane %v2412, %v2439
    %v2441 = vcombine.high %v2419, %v2419
    %v2442 = vcombine.high %v2426, %v2426
    %v2443 = vcombine.high %v2433, %v2433
    %v2444 = vcombine.high %v2440, %v2440
    %v2453 = vmul.f32 %v2242, %v2419
    %v2454 = vmul.f32 %v2244, %v2433
    %v2455 = vmul.f32 %v2246, %v2441
    %v2456 = vmul.f32 %v2248, %v2443
    %v2457 = vmul.f32 %v2250, %v2426
    %v2458 = vmul.f32 %v2252, %v2440
    %v2459 = vmul.f32 %v2254, %v2442
    %v2460 = vmul.f32 %v2256, %v2444
    %v2461 = vrot.slane %v1929, 2
    %v2462 = vrot.slane %v1931, 2
    %v2463 = vrot.slane %v1933, 2
    %v2464 = vrot.slane %v1935, 2
    %v2465 = vrot.slane %v1937, 2
    %v2466 = vrot.slane %v1939, 2
    %v2467 = vrot.slane %v1941, 2
    %v2468 = vrot.slane %v1943, 2
    %v2477 = vadd.f32 %v2461, %v2453
    %v2478 = vadd.f32 %v2462, %v2454
    %v2479 = vadd.f32 %v2463, %v2455
    %v2480 = vadd.f32 %v2464, %v2456
    %v2481 = vadd.f32 %v2465, %v2457
    %v2482 = vadd.f32 %v2466, %v2458
    %v2483 = vadd.f32 %v2467, %v2459
    %v2484 = vadd.f32 %v2468, %v2460
    %v2485 = vtanh.pop %v2477
    %v2486 = vtanh.pop %v2478
    %v2487 = vtanh.pop %v2479
    %v2488 = vtanh.pop %v2480
    %v2489 = vtanh.pop %v2481
    %v2490 = vtanh.pop %v2482
    %v2491 = vtanh.pop %v2483
    %v2492 = vtanh.pop %v2484
    %v2493 = vsub.f32 1.0, %v2380
    %v2494 = vsub.f32 1.0, %v2382
    %v2495 = vsub.f32 1.0, %v2384
    %v2496 = vsub.f32 1.0, %v2386
    %v2497 = vsub.f32 1.0, %v2388
    %v2498 = vsub.f32 1.0, %v2390
    %v2499 = vsub.f32 1.0, %v2392
    %v2500 = vsub.f32 1.0, %v2394
    %v2501 = vmul.f32 %v2493, %v2485
    %v2502 = vmul.f32 %v2494, %v2486
    %v2503 = vmul.f32 %v2495, %v2487
    %v2504 = vmul.f32 %v2496, %v2488
    %v2505 = vmul.f32 %v2497, %v2489
    %v2506 = vmul.f32 %v2498, %v2490
    %v2507 = vmul.f32 %v2499, %v2491
    %v2508 = vmul.f32 %v2500, %v2492
    %v2509 = vmul.f32 %v2380, %v1912
    %v2510 = vmul.f32 %v2382, %v1913
    %v2511 = vmul.f32 %v2384, %v1914
    %v2512 = vmul.f32 %v2386, %v1915
    %v2513 = vmul.f32 %v2388, %v1916
    %v2514 = vmul.f32 %v2390, %v1917
    %v2515 = vmul.f32 %v2392, %v1918
    %v2516 = vmul.f32 %v2394, %v1919
    %v2517 = vadd.f32 %v2501, %v2509
    %v2518 = vadd.f32 %v2502, %v2510
    %v2519 = vadd.f32 %v2503, %v2511
    %v2520 = vadd.f32 %v2504, %v2512
    %v2521 = vadd.f32 %v2505, %v2513
    %v2522 = vadd.f32 %v2506, %v2514
    %v2523 = vadd.f32 %v2507, %v2515
    %v2524 = vadd.f32 %v2508, %v2516
    %2525 = vst [vmem:[#allocation8 + $0x3] sm:$0x1] %v2517
    %2526 = vst [vmem:[#allocation8 + $0xb] sm:$0x1] %v2518
    %2527 = vst [vmem:[#allocation8 + $0x13] sm:$0x1] %v2519
    %2528 = vst [vmem:[#allocation8 + $0x1b] sm:$0x1] %v2520
    %2529 = vst [vmem:[#allocation8 + $0x23] sm:$0x1] %v2521
    %2530 = vst [vmem:[#allocation8 + $0x2b] sm:$0x1] %v2522
    %2531 = vst [vmem:[#allocation8 + $0x33] sm:$0x1] %v2523
    %2532 = vst [vmem:[#allocation8 + $0x3b] sm:$0x1] %v2524
    %s2533 = scalar_lea.vmem [#allocation3], 4
    %v2534 = vld [vmem:[%s2533] ss:$8 sm:$0x7]
    %s2535 = scalar_lea.vmem [#allocation3], 28
    %v2536 = vld [vmem:[%s2535] ss:$8 sm:$0x7]
    %s2537 = scalar_lea.vmem [#allocation3], 52
    %v2538 = vld [vmem:[%s2537] ss:$8 sm:$0x7]
    %s2539 = scalar_lea.vmem [#allocation3], 76
    %v2540 = vld [vmem:[%s2539] ss:$8 sm:$0x7]
    %s2541 = scalar_lea.vmem [#allocation3], 100
    %v2542 = vld [vmem:[%s2541] ss:$8 sm:$0x7]
    %s2543 = scalar_lea.vmem [#allocation3], 124
    %v2544 = vld [vmem:[%s2543] ss:$8 sm:$0x7]
    %s2545 = scalar_lea.vmem [#allocation3], 148
    %v2546 = vld [vmem:[%s2545] ss:$8 sm:$0x7]
    %s2547 = scalar_lea.vmem [#allocation3], 172
    %v2548 = vld [vmem:[%s2547] ss:$8 sm:$0x7]
    %v2557 = vcombine.low %v2517, %v2518
    %v2558 = vcombine.low %v2519, %v2520
    %v2559 = vcombine.low %v2521, %v2522
    %v2560 = vcombine.low %v2523, %v2524
    %v2562 = vunpack.c.l.s4 1966171168
    %v2563 = vunpack.c.0.s8 %v2562
    %v2564 = vlaneseq
    %v2565 = vshrl.u32 %v2564, 7
    %v2566 = vsub.s32 %v2563, %v2565
    %v2567 = vrot.slane %v2557, %v2566
    %v2569 = vunpack.c.l.s4 1966171168
    %v2570 = vunpack.c.0.s8 %v2569
    %v2571 = vlaneseq
    %v2572 = vshrl.u32 %v2571, 7
    %v2573 = vsub.s32 %v2570, %v2572
    %v2574 = vrot.slane %v2558, %v2573
    %v2576 = vunpack.c.l.s4 1966171168
    %v2577 = vunpack.c.0.s8 %v2576
    %v2578 = vlaneseq
    %v2579 = vshrl.u32 %v2578, 7
    %v2580 = vsub.s32 %v2577, %v2579
    %v2581 = vrot.slane %v2559, %v2580
    %v2583 = vunpack.c.l.s4 1966171168
    %v2584 = vunpack.c.0.s8 %v2583
    %v2585 = vlaneseq
    %v2586 = vshrl.u32 %v2585, 7
    %v2587 = vsub.s32 %v2584, %v2586
    %v2588 = vrot.slane %v2560, %v2587
    %v2589 = vcombine.low %v2567, %v2574
    %v2590 = vcombine.low %v2581, %v2588
    %v2592 = vunpack.c.l.s4 1966171168
    %v2593 = vunpack.c.0.s8 %v2592
    %v2594 = vlaneseq
    %v2595 = vshrl.u32 %v2594, 7
    %v2596 = vsub.s32 %v2593, %v2595
    %v2597 = vrot.slane %v2589, %v2596
    %v2599 = vunpack.c.l.s4 1966171168
    %v2600 = vunpack.c.0.s8 %v2599
    %v2601 = vlaneseq
    %v2602 = vshrl.u32 %v2601, 7
    %v2603 = vsub.s32 %v2600, %v2602
    %v2604 = vrot.slane %v2590, %v2603
    %v2605 = vcombine.low %v2597, %v2604
    %2607 = vmatprep.subr.mxu0 %v94
    %2608 = vmatpush1.msra.mxu0 %v93
    %2609 = vmatprep.subr.mxu0 %v91
    %2610 = vmatpush1.msra.mxu0 %v90
    %2611 = vmatprep.subr.mxu0 %v88
    %2612 = vmatpush1.msra.mxu0 %v87
    %2613 = vmatprep.subr.mxu0 %v85
    %2614 = vmatpush1.msra.mxu0 %v84
    %2615 = vmatprep.subr.mxu0 %v82
    %2616 = vmatpush1.msra.mxu0 %v81
    %2617 = vmatprep.subr.mxu0 %v79
    %2618 = vmatpush1.msra.mxu0 %v78
    %2619 = vmatprep.subr.mxu0 %v76
    %2620 = vmatpush1.msra.mxu0 %v75
    %2621 = vmatprep.subr.mxu0 %v73
    %2622 = vmatpush1.msra.mxu0 %v72
    %2623 = vmatprep.subr.mxu0 %v70
    %2624 = vmatpush1.msra.mxu0 %v69
    %2625 = vmatprep.subr.mxu0 %v67
    %2626 = vmatpush1.msra.mxu0 %v66
    %2627 = vmatprep.subr.mxu0 %v64
    %2628 = vmatpush1.msra.mxu0 %v63
    %2629 = vmatprep.subr.mxu0 %v61
    %2630 = vmatpush1.msra.mxu0 %v60
    %2631 = vmatprep.subr.mxu0 %v58
    %2632 = vmatpush1.msra.mxu0 %v57
    %2633 = vmatprep.subr.mxu0 %v55
    %2634 = vmatpush1.msra.mxu0 %v54
    %2635 = vmatprep.subr.mxu0 %v52
    %2636 = vmatpush1.msra.mxu0 %v51
    %2637 = vmatprep.subr.mxu0 %v49
    %2638 = vmatpush1.msra.mxu0 %v48
    %2639 = vmatprep.subr.mxu0 0.0
    %2640 = vmatpush2.msra.mxu0 0.0
    %2641 = vmatprep.subr.mxu0 0.0
    %2642 = vmatpush2.msra.mxu0 0.0
    %2643 = vmatprep.subr.mxu0 0.0
    %2644 = vmatpush2.msra.mxu0 0.0
    %2645 = vmatprep.subr.mxu0 0.0
    %2646 = vmatpush2.msra.mxu0 0.0
    %2647 = vmatprep.subr.mxu0 0.0
    %2648 = vmatpush2.msra.mxu0 0.0
    %2649 = vmatprep.subr.mxu0 0.0
    %2650 = vmatpush2.msra.mxu0 0.0
    %2651 = vmatprep.subr.mxu0 0.0
    %2652 = vmatpush2.msra.mxu0 0.0
    %2653 = vmatprep.subr.mxu0 0.0
    %2654 = vmatpush2.msra.mxu0 0.0
    %2655 = vmatprep.subr.mxu0 0.0
    %2656 = vmatpush2.msra.mxu0 0.0
    %2657 = vmatprep.subr.mxu0 0.0
    %2658 = vmatpush2.msra.mxu0 0.0
    %2659 = vmatprep.subr.mxu0 0.0
    %2660 = vmatpush2.msra.mxu0 0.0
    %2661 = vmatprep.subr.mxu0 0.0
    %2662 = vmatpush2.msra.mxu0 0.0
    %2663 = vmatprep.subr.mxu0 0.0
    %2664 = vmatpush2.msra.mxu0 0.0
    %2665 = vmatprep.subr.mxu0 0.0
    %2666 = vmatpush2.msra.mxu0 0.0
    %2667 = vmatprep.subr.mxu0 0.0
    %2668 = vmatpush2.msra.mxu0 0.0
    %2669 = vmatprep.subr.mxu0 0.0
    %2670 = vmatpush2.msra.mxu0 0.0
    %2671 = vmatprep.mubr.f32.mxu0 0.0
    %2672 = vmatmul.mubr.f32.gmra.mxu0 %v2605
    %v2673 = vpop.f32.mrf.mxu0
    %v2674 = vadd.f32 %v101, %v2673
    %v2675 = vpop.f32.mrf.mxu0
    %v2676 = vadd.f32 %v105, %v2675
    %2677 = vdwg.mxu0
    %2678 = vmatprep.subr.mxu0 0.0
    %2679 = vmatpush1.msra.mxu0 %v95
    %2680 = vmatprep.subr.mxu0 0.0
    %2681 = vmatpush1.msra.mxu0 %v92
    %2682 = vmatprep.subr.mxu0 0.0
    %2683 = vmatpush1.msra.mxu0 %v89
    %2684 = vmatprep.subr.mxu0 0.0
    %2685 = vmatpush1.msra.mxu0 %v86
    %2686 = vmatprep.subr.mxu0 0.0
    %2687 = vmatpush1.msra.mxu0 %v83
    %2688 = vmatprep.subr.mxu0 0.0
    %2689 = vmatpush1.msra.mxu0 %v80
    %2690 = vmatprep.subr.mxu0 0.0
    %2691 = vmatpush1.msra.mxu0 %v77
    %2692 = vmatprep.subr.mxu0 0.0
    %2693 = vmatpush1.msra.mxu0 %v74
    %2694 = vmatprep.subr.mxu0 0.0
    %2695 = vmatpush1.msra.mxu0 %v71
    %2696 = vmatprep.subr.mxu0 0.0
    %2697 = vmatpush1.msra.mxu0 %v68
    %2698 = vmatprep.subr.mxu0 0.0
    %2699 = vmatpush1.msra.mxu0 %v65
    %2700 = vmatprep.subr.mxu0 0.0
    %2701 = vmatpush1.msra.mxu0 %v62
    %2702 = vmatprep.subr.mxu0 0.0
    %2703 = vmatpush1.msra.mxu0 %v59
    %2704 = vmatprep.subr.mxu0 0.0
    %2705 = vmatpush1.msra.mxu0 %v56
    %2706 = vmatprep.subr.mxu0 0.0
    %2707 = vmatpush1.msra.mxu0 %v53
    %2708 = vmatprep.subr.mxu0 0.0
    %2709 = vmatpush1.msra.mxu0 %v50
    %2710 = vmatprep.subr.mxu0 0.0
    %2711 = vmatpush2.msra.mxu0 0.0
    %2712 = vmatprep.subr.mxu0 0.0
    %2713 = vmatpush2.msra.mxu0 0.0
    %2714 = vmatprep.subr.mxu0 0.0
    %2715 = vmatpush2.msra.mxu0 0.0
    %2716 = vmatprep.subr.mxu0 0.0
    %2717 = vmatpush2.msra.mxu0 0.0
    %2718 = vmatprep.subr.mxu0 0.0
    %2719 = vmatpush2.msra.mxu0 0.0
    %2720 = vmatprep.subr.mxu0 0.0
    %2721 = vmatpush2.msra.mxu0 0.0
    %2722 = vmatprep.subr.mxu0 0.0
    %2723 = vmatpush2.msra.mxu0 0.0
    %2724 = vmatprep.subr.mxu0 0.0
    %2725 = vmatpush2.msra.mxu0 0.0
    %2726 = vmatprep.subr.mxu0 0.0
    %2727 = vmatpush2.msra.mxu0 0.0
    %2728 = vmatprep.subr.mxu0 0.0
    %2729 = vmatpush2.msra.mxu0 0.0
    %2730 = vmatprep.subr.mxu0 0.0
    %2731 = vmatpush2.msra.mxu0 0.0
    %2732 = vmatprep.subr.mxu0 0.0
    %2733 = vmatpush2.msra.mxu0 0.0
    %2734 = vmatprep.subr.mxu0 0.0
    %2735 = vmatpush2.msra.mxu0 0.0
    %2736 = vmatprep.subr.mxu0 0.0
    %2737 = vmatpush2.msra.mxu0 0.0
    %2738 = vmatprep.subr.mxu0 0.0
    %2739 = vmatpush2.msra.mxu0 0.0
    %2740 = vmatprep.subr.mxu0 0.0
    %2741 = vmatpush2.msra.mxu0 0.0
    %2742 = vmatprep.mubr.f32.mxu0 0.0
    %2743 = vmatmul.mubr.f32.gmra.mxu0 %v2605
    %v2744 = vpop.f32.mrf.mxu0
    %v2745 = vadd.f32 %v109, %v2744
    %v2746 = vpop.f32.mrf.mxu0
    %2747 = vdwg.mxu0
    %v2749 = vcombine.high %v2674, %v2674
    %v2751 = vunpack.c.l.s4 1966171168
    %v2752 = vunpack.c.0.s8 %v2751
    %v2753 = vlaneseq
    %v2754 = vshrl.u32 %v2753, 7
    %v2755 = vsub.s32 %v2752, %v2754
    %v2756 = vrot.slane %v2674, %v2755
    %v2758 = vunpack.c.l.s4 1966171168
    %v2759 = vunpack.c.0.s8 %v2758
    %v2760 = vlaneseq
    %v2761 = vshrl.u32 %v2760, 7
    %v2762 = vsub.s32 %v2759, %v2761
    %v2763 = vrot.slane %v2749, %v2762
    %v2764 = vcombine.high %v2756, %v2756
    %v2765 = vcombine.high %v2763, %v2763
    %v2767 = vunpack.c.l.s4 1966171168
    %v2768 = vunpack.c.0.s8 %v2767
    %v2769 = vlaneseq
    %v2770 = vshrl.u32 %v2769, 7
    %v2771 = vsub.s32 %v2768, %v2770
    %v2772 = vrot.slane %v2756, %v2771
    %v2774 = vunpack.c.l.s4 1966171168
    %v2775 = vunpack.c.0.s8 %v2774
    %v2776 = vlaneseq
    %v2777 = vshrl.u32 %v2776, 7
    %v2778 = vsub.s32 %v2775, %v2777
    %v2779 = vrot.slane %v2763, %v2778
    %v2781 = vunpack.c.l.s4 1966171168
    %v2782 = vunpack.c.0.s8 %v2781
    %v2783 = vlaneseq
    %v2784 = vshrl.u32 %v2783, 7
    %v2785 = vsub.s32 %v2782, %v2784
    %v2786 = vrot.slane %v2764, %v2785
    %v2788 = vunpack.c.l.s4 1966171168
    %v2789 = vunpack.c.0.s8 %v2788
    %v2790 = vlaneseq
    %v2791 = vshrl.u32 %v2790, 7
    %v2792 = vsub.s32 %v2789, %v2791
    %v2793 = vrot.slane %v2765, %v2792
    %v2794 = vcombine.high %v2772, %v2772
    %v2795 = vcombine.high %v2779, %v2779
    %v2796 = vcombine.high %v2786, %v2786
    %v2797 = vcombine.high %v2793, %v2793
    %v2806 = vadd.f32 %v2534, %v2772
    %v2807 = vadd.f32 %v2536, %v2786
    %v2808 = vadd.f32 %v2538, %v2794
    %v2809 = vadd.f32 %v2540, %v2796
    %v2810 = vadd.f32 %v2542, %v2779
    %v2811 = vadd.f32 %v2544, %v2793
    %v2812 = vadd.f32 %v2546, %v2795
    %v2813 = vadd.f32 %v2548, %v2797
    %v2814 = vxor.u32 %v2806, 2147483648
    %v2815 = vxor.u32 %v2807, 2147483648
    %v2816 = vxor.u32 %v2808, 2147483648
    %v2817 = vxor.u32 %v2809, 2147483648
    %v2818 = vxor.u32 %v2810, 2147483648
    %v2819 = vxor.u32 %v2811, 2147483648
    %v2820 = vxor.u32 %v2812, 2147483648
    %v2821 = vxor.u32 %v2813, 2147483648
    %v2822 = vmul.f32 %v2814, 1.442695
    %v2823 = vpow.pop %v2822
    %v2824 = vmul.f32 %v2815, 1.442695
    %v2825 = vpow.pop %v2824
    %v2826 = vmul.f32 %v2816, 1.442695
    %v2827 = vpow.pop %v2826
    %v2828 = vmul.f32 %v2817, 1.442695
    %v2829 = vpow.pop %v2828
    %v2830 = vmul.f32 %v2818, 1.442695
    %v2831 = vpow.pop %v2830
    %v2832 = vmul.f32 %v2819, 1.442695
    %v2833 = vpow.pop %v2832
    %v2834 = vmul.f32 %v2820, 1.442695
    %v2835 = vpow.pop %v2834
    %v2836 = vmul.f32 %v2821, 1.442695
    %v2837 = vpow.pop %v2836
    %v2838 = vadd.f32 %v2823, 1.0
    %v2839 = vadd.f32 %v2825, 1.0
    %v2840 = vadd.f32 %v2827, 1.0
    %v2841 = vadd.f32 %v2829, 1.0
    %v2842 = vadd.f32 %v2831, 1.0
    %v2843 = vadd.f32 %v2833, 1.0
    %v2844 = vadd.f32 %v2835, 1.0
    %v2845 = vadd.f32 %v2837, 1.0
    %v2846 = vrcp.pop %v2838
    %v2847 = vmul.f32 1.0, %v2846
    %v2848 = vrcp.pop %v2839
    %v2849 = vmul.f32 1.0, %v2848
    %v2850 = vrcp.pop %v2840
    %v2851 = vmul.f32 1.0, %v2850
    %v2852 = vrcp.pop %v2841
    %v2853 = vmul.f32 1.0, %v2852
    %v2854 = vrcp.pop %v2842
    %v2855 = vmul.f32 1.0, %v2854
    %v2856 = vrcp.pop %v2843
    %v2857 = vmul.f32 1.0, %v2856
    %v2858 = vrcp.pop %v2844
    %v2859 = vmul.f32 1.0, %v2858
    %v2860 = vrcp.pop %v2845
    %v2861 = vmul.f32 1.0, %v2860
    %v2870 = vrot.slane %v2534, 1
    %v2871 = vrot.slane %v2536, 1
    %v2872 = vrot.slane %v2538, 1
    %v2873 = vrot.slane %v2540, 1
    %v2874 = vrot.slane %v2542, 1
    %v2875 = vrot.slane %v2544, 1
    %v2876 = vrot.slane %v2546, 1
    %v2877 = vrot.slane %v2548, 1
    %v2887 = vcombine.high %v2676, %v2676
    %v2889 = vunpack.c.l.s4 1966171168
    %v2890 = vunpack.c.0.s8 %v2889
    %v2891 = vlaneseq
    %v2892 = vshrl.u32 %v2891, 7
    %v2893 = vsub.s32 %v2890, %v2892
    %v2894 = vrot.slane %v2676, %v2893
    %v2896 = vunpack.c.l.s4 1966171168
    %v2897 = vunpack.c.0.s8 %v2896
    %v2898 = vlaneseq
    %v2899 = vshrl.u32 %v2898, 7
    %v2900 = vsub.s32 %v2897, %v2899
    %v2901 = vrot.slane %v2887, %v2900
    %v2902 = vcombine.high %v2894, %v2894
    %v2903 = vcombine.high %v2901, %v2901
    %v2905 = vunpack.c.l.s4 1966171168
    %v2906 = vunpack.c.0.s8 %v2905
    %v2907 = vlaneseq
    %v2908 = vshrl.u32 %v2907, 7
    %v2909 = vsub.s32 %v2906, %v2908
    %v2910 = vrot.slane %v2894, %v2909
    %v2912 = vunpack.c.l.s4 1966171168
    %v2913 = vunpack.c.0.s8 %v2912
    %v2914 = vlaneseq
    %v2915 = vshrl.u32 %v2914, 7
    %v2916 = vsub.s32 %v2913, %v2915
    %v2917 = vrot.slane %v2901, %v2916
    %v2919 = vunpack.c.l.s4 1966171168
    %v2920 = vunpack.c.0.s8 %v2919
    %v2921 = vlaneseq
    %v2922 = vshrl.u32 %v2921, 7
    %v2923 = vsub.s32 %v2920, %v2922
    %v2924 = vrot.slane %v2902, %v2923
    %v2926 = vunpack.c.l.s4 1966171168
    %v2927 = vunpack.c.0.s8 %v2926
    %v2928 = vlaneseq
    %v2929 = vshrl.u32 %v2928, 7
    %v2930 = vsub.s32 %v2927, %v2929
    %v2931 = vrot.slane %v2903, %v2930
    %v2932 = vcombine.high %v2910, %v2910
    %v2933 = vcombine.high %v2917, %v2917
    %v2934 = vcombine.high %v2924, %v2924
    %v2935 = vcombine.high %v2931, %v2931
    %v2944 = vadd.f32 %v2870, %v2910
    %v2945 = vadd.f32 %v2871, %v2924
    %v2946 = vadd.f32 %v2872, %v2932
    %v2947 = vadd.f32 %v2873, %v2934
    %v2948 = vadd.f32 %v2874, %v2917
    %v2949 = vadd.f32 %v2875, %v2931
    %v2950 = vadd.f32 %v2876, %v2933
    %v2951 = vadd.f32 %v2877, %v2935
    %v2952 = vxor.u32 %v2944, 2147483648
    %v2953 = vxor.u32 %v2945, 2147483648
    %v2954 = vxor.u32 %v2946, 2147483648
    %v2955 = vxor.u32 %v2947, 2147483648
    %v2956 = vxor.u32 %v2948, 2147483648
    %v2957 = vxor.u32 %v2949, 2147483648
    %v2958 = vxor.u32 %v2950, 2147483648
    %v2959 = vxor.u32 %v2951, 2147483648
    %v2960 = vmul.f32 %v2952, 1.442695
    %v2961 = vpow.pop %v2960
    %v2962 = vmul.f32 %v2953, 1.442695
    %v2963 = vpow.pop %v2962
    %v2964 = vmul.f32 %v2954, 1.442695
    %v2965 = vpow.pop %v2964
    %v2966 = vmul.f32 %v2955, 1.442695
    %v2967 = vpow.pop %v2966
    %v2968 = vmul.f32 %v2956, 1.442695
    %v2969 = vpow.pop %v2968
    %v2970 = vmul.f32 %v2957, 1.442695
    %v2971 = vpow.pop %v2970
    %v2972 = vmul.f32 %v2958, 1.442695
    %v2973 = vpow.pop %v2972
    %v2974 = vmul.f32 %v2959, 1.442695
    %v2975 = vpow.pop %v2974
    %v2976 = vadd.f32 %v2961, 1.0
    %v2977 = vadd.f32 %v2963, 1.0
    %v2978 = vadd.f32 %v2965, 1.0
    %v2979 = vadd.f32 %v2967, 1.0
    %v2980 = vadd.f32 %v2969, 1.0
    %v2981 = vadd.f32 %v2971, 1.0
    %v2982 = vadd.f32 %v2973, 1.0
    %v2983 = vadd.f32 %v2975, 1.0
    %v2984 = vrcp.pop %v2976
    %v2985 = vmul.f32 1.0, %v2984
    %v2986 = vrcp.pop %v2977
    %v2987 = vmul.f32 1.0, %v2986
    %v2988 = vrcp.pop %v2978
    %v2989 = vmul.f32 1.0, %v2988
    %v2990 = vrcp.pop %v2979
    %v2991 = vmul.f32 1.0, %v2990
    %v2992 = vrcp.pop %v2980
    %v2993 = vmul.f32 1.0, %v2992
    %v2994 = vrcp.pop %v2981
    %v2995 = vmul.f32 1.0, %v2994
    %v2996 = vrcp.pop %v2982
    %v2997 = vmul.f32 1.0, %v2996
    %v2998 = vrcp.pop %v2983
    %v2999 = vmul.f32 1.0, %v2998
    %v3001 = vcombine.high %v2745, %v2745
    %v3003 = vunpack.c.l.s4 1966171168
    %v3004 = vunpack.c.0.s8 %v3003
    %v3005 = vlaneseq
    %v3006 = vshrl.u32 %v3005, 7
    %v3007 = vsub.s32 %v3004, %v3006
    %v3008 = vrot.slane %v2745, %v3007
    %v3010 = vunpack.c.l.s4 1966171168
    %v3011 = vunpack.c.0.s8 %v3010
    %v3012 = vlaneseq
    %v3013 = vshrl.u32 %v3012, 7
    %v3014 = vsub.s32 %v3011, %v3013
    %v3015 = vrot.slane %v3001, %v3014
    %v3016 = vcombine.high %v3008, %v3008
    %v3017 = vcombine.high %v3015, %v3015
    %v3019 = vunpack.c.l.s4 1966171168
    %v3020 = vunpack.c.0.s8 %v3019
    %v3021 = vlaneseq
    %v3022 = vshrl.u32 %v3021, 7
    %v3023 = vsub.s32 %v3020, %v3022
    %v3024 = vrot.slane %v3008, %v3023
    %v3026 = vunpack.c.l.s4 1966171168
    %v3027 = vunpack.c.0.s8 %v3026
    %v3028 = vlaneseq
    %v3029 = vshrl.u32 %v3028, 7
    %v3030 = vsub.s32 %v3027, %v3029
    %v3031 = vrot.slane %v3015, %v3030
    %v3033 = vunpack.c.l.s4 1966171168
    %v3034 = vunpack.c.0.s8 %v3033
    %v3035 = vlaneseq
    %v3036 = vshrl.u32 %v3035, 7
    %v3037 = vsub.s32 %v3034, %v3036
    %v3038 = vrot.slane %v3016, %v3037
    %v3040 = vunpack.c.l.s4 1966171168
    %v3041 = vunpack.c.0.s8 %v3040
    %v3042 = vlaneseq
    %v3043 = vshrl.u32 %v3042, 7
    %v3044 = vsub.s32 %v3041, %v3043
    %v3045 = vrot.slane %v3017, %v3044
    %v3046 = vcombine.high %v3024, %v3024
    %v3047 = vcombine.high %v3031, %v3031
    %v3048 = vcombine.high %v3038, %v3038
    %v3049 = vcombine.high %v3045, %v3045
    %v3058 = vmul.f32 %v2847, %v3024
    %v3059 = vmul.f32 %v2849, %v3038
    %v3060 = vmul.f32 %v2851, %v3046
    %v3061 = vmul.f32 %v2853, %v3048
    %v3062 = vmul.f32 %v2855, %v3031
    %v3063 = vmul.f32 %v2857, %v3045
    %v3064 = vmul.f32 %v2859, %v3047
    %v3065 = vmul.f32 %v2861, %v3049
    %v3066 = vrot.slane %v2534, 2
    %v3067 = vrot.slane %v2536, 2
    %v3068 = vrot.slane %v2538, 2
    %v3069 = vrot.slane %v2540, 2
    %v3070 = vrot.slane %v2542, 2
    %v3071 = vrot.slane %v2544, 2
    %v3072 = vrot.slane %v2546, 2
    %v3073 = vrot.slane %v2548, 2
    %v3082 = vadd.f32 %v3066, %v3058
    %v3083 = vadd.f32 %v3067, %v3059
    %v3084 = vadd.f32 %v3068, %v3060
    %v3085 = vadd.f32 %v3069, %v3061
    %v3086 = vadd.f32 %v3070, %v3062
    %v3087 = vadd.f32 %v3071, %v3063
    %v3088 = vadd.f32 %v3072, %v3064
    %v3089 = vadd.f32 %v3073, %v3065
    %v3090 = vtanh.pop %v3082
    %v3091 = vtanh.pop %v3083
    %v3092 = vtanh.pop %v3084
    %v3093 = vtanh.pop %v3085
    %v3094 = vtanh.pop %v3086
    %v3095 = vtanh.pop %v3087
    %v3096 = vtanh.pop %v3088
    %v3097 = vtanh.pop %v3089
    %v3098 = vsub.f32 1.0, %v2985
    %v3099 = vsub.f32 1.0, %v2987
    %v3100 = vsub.f32 1.0, %v2989
    %v3101 = vsub.f32 1.0, %v2991
    %v3102 = vsub.f32 1.0, %v2993
    %v3103 = vsub.f32 1.0, %v2995
    %v3104 = vsub.f32 1.0, %v2997
    %v3105 = vsub.f32 1.0, %v2999
    %v3106 = vmul.f32 %v3098, %v3090
    %v3107 = vmul.f32 %v3099, %v3091
    %v3108 = vmul.f32 %v3100, %v3092
    %v3109 = vmul.f32 %v3101, %v3093
    %v3110 = vmul.f32 %v3102, %v3094
    %v3111 = vmul.f32 %v3103, %v3095
    %v3112 = vmul.f32 %v3104, %v3096
    %v3113 = vmul.f32 %v3105, %v3097
    %v3114 = vmul.f32 %v2985, %v2517
    %v3115 = vmul.f32 %v2987, %v2518
    %v3116 = vmul.f32 %v2989, %v2519
    %v3117 = vmul.f32 %v2991, %v2520
    %v3118 = vmul.f32 %v2993, %v2521
    %v3119 = vmul.f32 %v2995, %v2522
    %v3120 = vmul.f32 %v2997, %v2523
    %v3121 = vmul.f32 %v2999, %v2524
    %v3122 = vadd.f32 %v3106, %v3114
    %v3123 = vadd.f32 %v3107, %v3115
    %v3124 = vadd.f32 %v3108, %v3116
    %v3125 = vadd.f32 %v3109, %v3117
    %v3126 = vadd.f32 %v3110, %v3118
    %v3127 = vadd.f32 %v3111, %v3119
    %v3128 = vadd.f32 %v3112, %v3120
    %v3129 = vadd.f32 %v3113, %v3121
    %3130 = vst [vmem:[#allocation8 + $0x4] sm:$0x1] %v3122
    %3131 = vst [vmem:[#allocation8 + $0xc] sm:$0x1] %v3123
    %3132 = vst [vmem:[#allocation8 + $0x14] sm:$0x1] %v3124
    %3133 = vst [vmem:[#allocation8 + $0x1c] sm:$0x1] %v3125
    %3134 = vst [vmem:[#allocation8 + $0x24] sm:$0x1] %v3126
    %3135 = vst [vmem:[#allocation8 + $0x2c] sm:$0x1] %v3127
    %3136 = vst [vmem:[#allocation8 + $0x34] sm:$0x1] %v3128
    %3137 = vst [vmem:[#allocation8 + $0x3c] sm:$0x1] %v3129
    %s3138 = scalar_lea.vmem [#allocation3], 5
    %v3139 = vld [vmem:[%s3138] ss:$8 sm:$0x7]
    %s3140 = scalar_lea.vmem [#allocation3], 29
    %v3141 = vld [vmem:[%s3140] ss:$8 sm:$0x7]
    %s3142 = scalar_lea.vmem [#allocation3], 53
    %v3143 = vld [vmem:[%s3142] ss:$8 sm:$0x7]
    %s3144 = scalar_lea.vmem [#allocation3], 77
    %v3145 = vld [vmem:[%s3144] ss:$8 sm:$0x7]
    %s3146 = scalar_lea.vmem [#allocation3], 101
    %v3147 = vld [vmem:[%s3146] ss:$8 sm:$0x7]
    %s3148 = scalar_lea.vmem [#allocation3], 125
    %v3149 = vld [vmem:[%s3148] ss:$8 sm:$0x7]
    %s3150 = scalar_lea.vmem [#allocation3], 149
    %v3151 = vld [vmem:[%s3150] ss:$8 sm:$0x7]
    %s3152 = scalar_lea.vmem [#allocation3], 173
    %v3153 = vld [vmem:[%s3152] ss:$8 sm:$0x7]
    %v3162 = vcombine.low %v3122, %v3123
    %v3163 = vcombine.low %v3124, %v3125
    %v3164 = vcombine.low %v3126, %v3127
    %v3165 = vcombine.low %v3128, %v3129
    %v3167 = vunpack.c.l.s4 1966171168
    %v3168 = vunpack.c.0.s8 %v3167
    %v3169 = vlaneseq
    %v3170 = vshrl.u32 %v3169, 7
    %v3171 = vsub.s32 %v3168, %v3170
    %v3172 = vrot.slane %v3162, %v3171
    %v3174 = vunpack.c.l.s4 1966171168
    %v3175 = vunpack.c.0.s8 %v3174
    %v3176 = vlaneseq
    %v3177 = vshrl.u32 %v3176, 7
    %v3178 = vsub.s32 %v3175, %v3177
    %v3179 = vrot.slane %v3163, %v3178
    %v3181 = vunpack.c.l.s4 1966171168
    %v3182 = vunpack.c.0.s8 %v3181
    %v3183 = vlaneseq
    %v3184 = vshrl.u32 %v3183, 7
    %v3185 = vsub.s32 %v3182, %v3184
    %v3186 = vrot.slane %v3164, %v3185
    %v3188 = vunpack.c.l.s4 1966171168
    %v3189 = vunpack.c.0.s8 %v3188
    %v3190 = vlaneseq
    %v3191 = vshrl.u32 %v3190, 7
    %v3192 = vsub.s32 %v3189, %v3191
    %v3193 = vrot.slane %v3165, %v3192
    %v3194 = vcombine.low %v3172, %v3179
    %v3195 = vcombine.low %v3186, %v3193
    %v3197 = vunpack.c.l.s4 1966171168
    %v3198 = vunpack.c.0.s8 %v3197
    %v3199 = vlaneseq
    %v3200 = vshrl.u32 %v3199, 7
    %v3201 = vsub.s32 %v3198, %v3200
    %v3202 = vrot.slane %v3194, %v3201
    %v3204 = vunpack.c.l.s4 1966171168
    %v3205 = vunpack.c.0.s8 %v3204
    %v3206 = vlaneseq
    %v3207 = vshrl.u32 %v3206, 7
    %v3208 = vsub.s32 %v3205, %v3207
    %v3209 = vrot.slane %v3195, %v3208
    %v3210 = vcombine.low %v3202, %v3209
    %3212 = vmatprep.subr.mxu0 %v94
    %3213 = vmatpush1.msra.mxu0 %v93
    %3214 = vmatprep.subr.mxu0 %v91
    %3215 = vmatpush1.msra.mxu0 %v90
    %3216 = vmatprep.subr.mxu0 %v88
    %3217 = vmatpush1.msra.mxu0 %v87
    %3218 = vmatprep.subr.mxu0 %v85
    %3219 = vmatpush1.msra.mxu0 %v84
    %3220 = vmatprep.subr.mxu0 %v82
    %3221 = vmatpush1.msra.mxu0 %v81
    %3222 = vmatprep.subr.mxu0 %v79
    %3223 = vmatpush1.msra.mxu0 %v78
    %3224 = vmatprep.subr.mxu0 %v76
    %3225 = vmatpush1.msra.mxu0 %v75
    %3226 = vmatprep.subr.mxu0 %v73
    %3227 = vmatpush1.msra.mxu0 %v72
    %3228 = vmatprep.subr.mxu0 %v70
    %3229 = vmatpush1.msra.mxu0 %v69
    %3230 = vmatprep.subr.mxu0 %v67
    %3231 = vmatpush1.msra.mxu0 %v66
    %3232 = vmatprep.subr.mxu0 %v64
    %3233 = vmatpush1.msra.mxu0 %v63
    %3234 = vmatprep.subr.mxu0 %v61
    %3235 = vmatpush1.msra.mxu0 %v60
    %3236 = vmatprep.subr.mxu0 %v58
    %3237 = vmatpush1.msra.mxu0 %v57
    %3238 = vmatprep.subr.mxu0 %v55
    %3239 = vmatpush1.msra.mxu0 %v54
    %3240 = vmatprep.subr.mxu0 %v52
    %3241 = vmatpush1.msra.mxu0 %v51
    %3242 = vmatprep.subr.mxu0 %v49
    %3243 = vmatpush1.msra.mxu0 %v48
    %3244 = vmatprep.subr.mxu0 0.0
    %3245 = vmatpush2.msra.mxu0 0.0
    %3246 = vmatprep.subr.mxu0 0.0
    %3247 = vmatpush2.msra.mxu0 0.0
    %3248 = vmatprep.subr.mxu0 0.0
    %3249 = vmatpush2.msra.mxu0 0.0
    %3250 = vmatprep.subr.mxu0 0.0
    %3251 = vmatpush2.msra.mxu0 0.0
    %3252 = vmatprep.subr.mxu0 0.0
    %3253 = vmatpush2.msra.mxu0 0.0
    %3254 = vmatprep.subr.mxu0 0.0
    %3255 = vmatpush2.msra.mxu0 0.0
    %3256 = vmatprep.subr.mxu0 0.0
    %3257 = vmatpush2.msra.mxu0 0.0
    %3258 = vmatprep.subr.mxu0 0.0
    %3259 = vmatpush2.msra.mxu0 0.0
    %3260 = vmatprep.subr.mxu0 0.0
    %3261 = vmatpush2.msra.mxu0 0.0
    %3262 = vmatprep.subr.mxu0 0.0
    %3263 = vmatpush2.msra.mxu0 0.0
    %3264 = vmatprep.subr.mxu0 0.0
    %3265 = vmatpush2.msra.mxu0 0.0
    %3266 = vmatprep.subr.mxu0 0.0
    %3267 = vmatpush2.msra.mxu0 0.0
    %3268 = vmatprep.subr.mxu0 0.0
    %3269 = vmatpush2.msra.mxu0 0.0
    %3270 = vmatprep.subr.mxu0 0.0
    %3271 = vmatpush2.msra.mxu0 0.0
    %3272 = vmatprep.subr.mxu0 0.0
    %3273 = vmatpush2.msra.mxu0 0.0
    %3274 = vmatprep.subr.mxu0 0.0
    %3275 = vmatpush2.msra.mxu0 0.0
    %3276 = vmatprep.mubr.f32.mxu0 0.0
    %3277 = vmatmul.mubr.f32.gmra.mxu0 %v3210
    %v3278 = vpop.f32.mrf.mxu0
    %v3279 = vadd.f32 %v101, %v3278
    %v3280 = vpop.f32.mrf.mxu0
    %v3281 = vadd.f32 %v105, %v3280
    %3282 = vdwg.mxu0
    %3283 = vmatprep.subr.mxu0 0.0
    %3284 = vmatpush1.msra.mxu0 %v95
    %3285 = vmatprep.subr.mxu0 0.0
    %3286 = vmatpush1.msra.mxu0 %v92
    %3287 = vmatprep.subr.mxu0 0.0
    %3288 = vmatpush1.msra.mxu0 %v89
    %3289 = vmatprep.subr.mxu0 0.0
    %3290 = vmatpush1.msra.mxu0 %v86
    %3291 = vmatprep.subr.mxu0 0.0
    %3292 = vmatpush1.msra.mxu0 %v83
    %3293 = vmatprep.subr.mxu0 0.0
    %3294 = vmatpush1.msra.mxu0 %v80
    %3295 = vmatprep.subr.mxu0 0.0
    %3296 = vmatpush1.msra.mxu0 %v77
    %3297 = vmatprep.subr.mxu0 0.0
    %3298 = vmatpush1.msra.mxu0 %v74
    %3299 = vmatprep.subr.mxu0 0.0
    %3300 = vmatpush1.msra.mxu0 %v71
    %3301 = vmatprep.subr.mxu0 0.0
    %3302 = vmatpush1.msra.mxu0 %v68
    %3303 = vmatprep.subr.mxu0 0.0
    %3304 = vmatpush1.msra.mxu0 %v65
    %3305 = vmatprep.subr.mxu0 0.0
    %3306 = vmatpush1.msra.mxu0 %v62
    %3307 = vmatprep.subr.mxu0 0.0
    %3308 = vmatpush1.msra.mxu0 %v59
    %3309 = vmatprep.subr.mxu0 0.0
    %3310 = vmatpush1.msra.mxu0 %v56
    %3311 = vmatprep.subr.mxu0 0.0
    %3312 = vmatpush1.msra.mxu0 %v53
    %3313 = vmatprep.subr.mxu0 0.0
    %3314 = vmatpush1.msra.mxu0 %v50
    %3315 = vmatprep.subr.mxu0 0.0
    %3316 = vmatpush2.msra.mxu0 0.0
    %3317 = vmatprep.subr.mxu0 0.0
    %3318 = vmatpush2.msra.mxu0 0.0
    %3319 = vmatprep.subr.mxu0 0.0
    %3320 = vmatpush2.msra.mxu0 0.0
    %3321 = vmatprep.subr.mxu0 0.0
    %3322 = vmatpush2.msra.mxu0 0.0
    %3323 = vmatprep.subr.mxu0 0.0
    %3324 = vmatpush2.msra.mxu0 0.0
    %3325 = vmatprep.subr.mxu0 0.0
    %3326 = vmatpush2.msra.mxu0 0.0
    %3327 = vmatprep.subr.mxu0 0.0
    %3328 = vmatpush2.msra.mxu0 0.0
    %3329 = vmatprep.subr.mxu0 0.0
    %3330 = vmatpush2.msra.mxu0 0.0
    %3331 = vmatprep.subr.mxu0 0.0
    %3332 = vmatpush2.msra.mxu0 0.0
    %3333 = vmatprep.subr.mxu0 0.0
    %3334 = vmatpush2.msra.mxu0 0.0
    %3335 = vmatprep.subr.mxu0 0.0
    %3336 = vmatpush2.msra.mxu0 0.0
    %3337 = vmatprep.subr.mxu0 0.0
    %3338 = vmatpush2.msra.mxu0 0.0
    %3339 = vmatprep.subr.mxu0 0.0
    %3340 = vmatpush2.msra.mxu0 0.0
    %3341 = vmatprep.subr.mxu0 0.0
    %3342 = vmatpush2.msra.mxu0 0.0
    %3343 = vmatprep.subr.mxu0 0.0
    %3344 = vmatpush2.msra.mxu0 0.0
    %3345 = vmatprep.subr.mxu0 0.0
    %3346 = vmatpush2.msra.mxu0 0.0
    %3347 = vmatprep.mubr.f32.mxu0 0.0
    %3348 = vmatmul.mubr.f32.gmra.mxu0 %v3210
    %v3349 = vpop.f32.mrf.mxu0
    %v3350 = vadd.f32 %v109, %v3349
    %v3351 = vpop.f32.mrf.mxu0
    %3352 = vdwg.mxu0
    %v3354 = vcombine.high %v3279, %v3279
    %v3356 = vunpack.c.l.s4 1966171168
    %v3357 = vunpack.c.0.s8 %v3356
    %v3358 = vlaneseq
    %v3359 = vshrl.u32 %v3358, 7
    %v3360 = vsub.s32 %v3357, %v3359
    %v3361 = vrot.slane %v3279, %v3360
    %v3363 = vunpack.c.l.s4 1966171168
    %v3364 = vunpack.c.0.s8 %v3363
    %v3365 = vlaneseq
    %v3366 = vshrl.u32 %v3365, 7
    %v3367 = vsub.s32 %v3364, %v3366
    %v3368 = vrot.slane %v3354, %v3367
    %v3369 = vcombine.high %v3361, %v3361
    %v3370 = vcombine.high %v3368, %v3368
    %v3372 = vunpack.c.l.s4 1966171168
    %v3373 = vunpack.c.0.s8 %v3372
    %v3374 = vlaneseq
    %v3375 = vshrl.u32 %v3374, 7
    %v3376 = vsub.s32 %v3373, %v3375
    %v3377 = vrot.slane %v3361, %v3376
    %v3379 = vunpack.c.l.s4 1966171168
    %v3380 = vunpack.c.0.s8 %v3379
    %v3381 = vlaneseq
    %v3382 = vshrl.u32 %v3381, 7
    %v3383 = vsub.s32 %v3380, %v3382
    %v3384 = vrot.slane %v3368, %v3383
    %v3386 = vunpack.c.l.s4 1966171168
    %v3387 = vunpack.c.0.s8 %v3386
    %v3388 = vlaneseq
    %v3389 = vshrl.u32 %v3388, 7
    %v3390 = vsub.s32 %v3387, %v3389
    %v3391 = vrot.slane %v3369, %v3390
    %v3393 = vunpack.c.l.s4 1966171168
    %v3394 = vunpack.c.0.s8 %v3393
    %v3395 = vlaneseq
    %v3396 = vshrl.u32 %v3395, 7
    %v3397 = vsub.s32 %v3394, %v3396
    %v3398 = vrot.slane %v3370, %v3397
    %v3399 = vcombine.high %v3377, %v3377
    %v3400 = vcombine.high %v3384, %v3384
    %v3401 = vcombine.high %v3391, %v3391
    %v3402 = vcombine.high %v3398, %v3398
    %v3411 = vadd.f32 %v3139, %v3377
    %v3412 = vadd.f32 %v3141, %v3391
    %v3413 = vadd.f32 %v3143, %v3399
    %v3414 = vadd.f32 %v3145, %v3401
    %v3415 = vadd.f32 %v3147, %v3384
    %v3416 = vadd.f32 %v3149, %v3398
    %v3417 = vadd.f32 %v3151, %v3400
    %v3418 = vadd.f32 %v3153, %v3402
    %v3419 = vxor.u32 %v3411, 2147483648
    %v3420 = vxor.u32 %v3412, 2147483648
    %v3421 = vxor.u32 %v3413, 2147483648
    %v3422 = vxor.u32 %v3414, 2147483648
    %v3423 = vxor.u32 %v3415, 2147483648
    %v3424 = vxor.u32 %v3416, 2147483648
    %v3425 = vxor.u32 %v3417, 2147483648
    %v3426 = vxor.u32 %v3418, 2147483648
    %v3427 = vmul.f32 %v3419, 1.442695
    %v3428 = vpow.pop %v3427
    %v3429 = vmul.f32 %v3420, 1.442695
    %v3430 = vpow.pop %v3429
    %v3431 = vmul.f32 %v3421, 1.442695
    %v3432 = vpow.pop %v3431
    %v3433 = vmul.f32 %v3422, 1.442695
    %v3434 = vpow.pop %v3433
    %v3435 = vmul.f32 %v3423, 1.442695
    %v3436 = vpow.pop %v3435
    %v3437 = vmul.f32 %v3424, 1.442695
    %v3438 = vpow.pop %v3437
    %v3439 = vmul.f32 %v3425, 1.442695
    %v3440 = vpow.pop %v3439
    %v3441 = vmul.f32 %v3426, 1.442695
    %v3442 = vpow.pop %v3441
    %v3443 = vadd.f32 %v3428, 1.0
    %v3444 = vadd.f32 %v3430, 1.0
    %v3445 = vadd.f32 %v3432, 1.0
    %v3446 = vadd.f32 %v3434, 1.0
    %v3447 = vadd.f32 %v3436, 1.0
    %v3448 = vadd.f32 %v3438, 1.0
    %v3449 = vadd.f32 %v3440, 1.0
    %v3450 = vadd.f32 %v3442, 1.0
    %v3451 = vrcp.pop %v3443
    %v3452 = vmul.f32 1.0, %v3451
    %v3453 = vrcp.pop %v3444
    %v3454 = vmul.f32 1.0, %v3453
    %v3455 = vrcp.pop %v3445
    %v3456 = vmul.f32 1.0, %v3455
    %v3457 = vrcp.pop %v3446
    %v3458 = vmul.f32 1.0, %v3457
    %v3459 = vrcp.pop %v3447
    %v3460 = vmul.f32 1.0, %v3459
    %v3461 = vrcp.pop %v3448
    %v3462 = vmul.f32 1.0, %v3461
    %v3463 = vrcp.pop %v3449
    %v3464 = vmul.f32 1.0, %v3463
    %v3465 = vrcp.pop %v3450
    %v3466 = vmul.f32 1.0, %v3465
    %v3475 = vrot.slane %v3139, 1
    %v3476 = vrot.slane %v3141, 1
    %v3477 = vrot.slane %v3143, 1
    %v3478 = vrot.slane %v3145, 1
    %v3479 = vrot.slane %v3147, 1
    %v3480 = vrot.slane %v3149, 1
    %v3481 = vrot.slane %v3151, 1
    %v3482 = vrot.slane %v3153, 1
    %v3492 = vcombine.high %v3281, %v3281
    %v3494 = vunpack.c.l.s4 1966171168
    %v3495 = vunpack.c.0.s8 %v3494
    %v3496 = vlaneseq
    %v3497 = vshrl.u32 %v3496, 7
    %v3498 = vsub.s32 %v3495, %v3497
    %v3499 = vrot.slane %v3281, %v3498
    %v3501 = vunpack.c.l.s4 1966171168
    %v3502 = vunpack.c.0.s8 %v3501
    %v3503 = vlaneseq
    %v3504 = vshrl.u32 %v3503, 7
    %v3505 = vsub.s32 %v3502, %v3504
    %v3506 = vrot.slane %v3492, %v3505
    %v3507 = vcombine.high %v3499, %v3499
    %v3508 = vcombine.high %v3506, %v3506
    %v3510 = vunpack.c.l.s4 1966171168
    %v3511 = vunpack.c.0.s8 %v3510
    %v3512 = vlaneseq
    %v3513 = vshrl.u32 %v3512, 7
    %v3514 = vsub.s32 %v3511, %v3513
    %v3515 = vrot.slane %v3499, %v3514
    %v3517 = vunpack.c.l.s4 1966171168
    %v3518 = vunpack.c.0.s8 %v3517
    %v3519 = vlaneseq
    %v3520 = vshrl.u32 %v3519, 7
    %v3521 = vsub.s32 %v3518, %v3520
    %v3522 = vrot.slane %v3506, %v3521
    %v3524 = vunpack.c.l.s4 1966171168
    %v3525 = vunpack.c.0.s8 %v3524
    %v3526 = vlaneseq
    %v3527 = vshrl.u32 %v3526, 7
    %v3528 = vsub.s32 %v3525, %v3527
    %v3529 = vrot.slane %v3507, %v3528
    %v3531 = vunpack.c.l.s4 1966171168
    %v3532 = vunpack.c.0.s8 %v3531
    %v3533 = vlaneseq
    %v3534 = vshrl.u32 %v3533, 7
    %v3535 = vsub.s32 %v3532, %v3534
    %v3536 = vrot.slane %v3508, %v3535
    %v3537 = vcombine.high %v3515, %v3515
    %v3538 = vcombine.high %v3522, %v3522
    %v3539 = vcombine.high %v3529, %v3529
    %v3540 = vcombine.high %v3536, %v3536
    %v3549 = vadd.f32 %v3475, %v3515
    %v3550 = vadd.f32 %v3476, %v3529
    %v3551 = vadd.f32 %v3477, %v3537
    %v3552 = vadd.f32 %v3478, %v3539
    %v3553 = vadd.f32 %v3479, %v3522
    %v3554 = vadd.f32 %v3480, %v3536
    %v3555 = vadd.f32 %v3481, %v3538
    %v3556 = vadd.f32 %v3482, %v3540
    %v3557 = vxor.u32 %v3549, 2147483648
    %v3558 = vxor.u32 %v3550, 2147483648
    %v3559 = vxor.u32 %v3551, 2147483648
    %v3560 = vxor.u32 %v3552, 2147483648
    %v3561 = vxor.u32 %v3553, 2147483648
    %v3562 = vxor.u32 %v3554, 2147483648
    %v3563 = vxor.u32 %v3555, 2147483648
    %v3564 = vxor.u32 %v3556, 2147483648
    %v3565 = vmul.f32 %v3557, 1.442695
    %v3566 = vpow.pop %v3565
    %v3567 = vmul.f32 %v3558, 1.442695
    %v3568 = vpow.pop %v3567
    %v3569 = vmul.f32 %v3559, 1.442695
    %v3570 = vpow.pop %v3569
    %v3571 = vmul.f32 %v3560, 1.442695
    %v3572 = vpow.pop %v3571
    %v3573 = vmul.f32 %v3561, 1.442695
    %v3574 = vpow.pop %v3573
    %v3575 = vmul.f32 %v3562, 1.442695
    %v3576 = vpow.pop %v3575
    %v3577 = vmul.f32 %v3563, 1.442695
    %v3578 = vpow.pop %v3577
    %v3579 = vmul.f32 %v3564, 1.442695
    %v3580 = vpow.pop %v3579
    %v3581 = vadd.f32 %v3566, 1.0
    %v3582 = vadd.f32 %v3568, 1.0
    %v3583 = vadd.f32 %v3570, 1.0
    %v3584 = vadd.f32 %v3572, 1.0
    %v3585 = vadd.f32 %v3574, 1.0
    %v3586 = vadd.f32 %v3576, 1.0
    %v3587 = vadd.f32 %v3578, 1.0
    %v3588 = vadd.f32 %v3580, 1.0
    %v3589 = vrcp.pop %v3581
    %v3590 = vmul.f32 1.0, %v3589
    %v3591 = vrcp.pop %v3582
    %v3592 = vmul.f32 1.0, %v3591
    %v3593 = vrcp.pop %v3583
    %v3594 = vmul.f32 1.0, %v3593
    %v3595 = vrcp.pop %v3584
    %v3596 = vmul.f32 1.0, %v3595
    %v3597 = vrcp.pop %v3585
    %v3598 = vmul.f32 1.0, %v3597
    %v3599 = vrcp.pop %v3586
    %v3600 = vmul.f32 1.0, %v3599
    %v3601 = vrcp.pop %v3587
    %v3602 = vmul.f32 1.0, %v3601
    %v3603 = vrcp.pop %v3588
    %v3604 = vmul.f32 1.0, %v3603
    %v3606 = vcombine.high %v3350, %v3350
    %v3608 = vunpack.c.l.s4 1966171168
    %v3609 = vunpack.c.0.s8 %v3608
    %v3610 = vlaneseq
    %v3611 = vshrl.u32 %v3610, 7
    %v3612 = vsub.s32 %v3609, %v3611
    %v3613 = vrot.slane %v3350, %v3612
    %v3615 = vunpack.c.l.s4 1966171168
    %v3616 = vunpack.c.0.s8 %v3615
    %v3617 = vlaneseq
    %v3618 = vshrl.u32 %v3617, 7
    %v3619 = vsub.s32 %v3616, %v3618
    %v3620 = vrot.slane %v3606, %v3619
    %v3621 = vcombine.high %v3613, %v3613
    %v3622 = vcombine.high %v3620, %v3620
    %v3624 = vunpack.c.l.s4 1966171168
    %v3625 = vunpack.c.0.s8 %v3624
    %v3626 = vlaneseq
    %v3627 = vshrl.u32 %v3626, 7
    %v3628 = vsub.s32 %v3625, %v3627
    %v3629 = vrot.slane %v3613, %v3628
    %v3631 = vunpack.c.l.s4 1966171168
    %v3632 = vunpack.c.0.s8 %v3631
    %v3633 = vlaneseq
    %v3634 = vshrl.u32 %v3633, 7
    %v3635 = vsub.s32 %v3632, %v3634
    %v3636 = vrot.slane %v3620, %v3635
    %v3638 = vunpack.c.l.s4 1966171168
    %v3639 = vunpack.c.0.s8 %v3638
    %v3640 = vlaneseq
    %v3641 = vshrl.u32 %v3640, 7
    %v3642 = vsub.s32 %v3639, %v3641
    %v3643 = vrot.slane %v3621, %v3642
    %v3645 = vunpack.c.l.s4 1966171168
    %v3646 = vunpack.c.0.s8 %v3645
    %v3647 = vlaneseq
    %v3648 = vshrl.u32 %v3647, 7
    %v3649 = vsub.s32 %v3646, %v3648
    %v3650 = vrot.slane %v3622, %v3649
    %v3651 = vcombine.high %v3629, %v3629
    %v3652 = vcombine.high %v3636, %v3636
    %v3653 = vcombine.high %v3643, %v3643
    %v3654 = vcombine.high %v3650, %v3650
    %v3663 = vmul.f32 %v3452, %v3629
    %v3664 = vmul.f32 %v3454, %v3643
    %v3665 = vmul.f32 %v3456, %v3651
    %v3666 = vmul.f32 %v3458, %v3653
    %v3667 = vmul.f32 %v3460, %v3636
    %v3668 = vmul.f32 %v3462, %v3650
    %v3669 = vmul.f32 %v3464, %v3652
    %v3670 = vmul.f32 %v3466, %v3654
    %v3671 = vrot.slane %v3139, 2
    %v3672 = vrot.slane %v3141, 2
    %v3673 = vrot.slane %v3143, 2
    %v3674 = vrot.slane %v3145, 2
    %v3675 = vrot.slane %v3147, 2
    %v3676 = vrot.slane %v3149, 2
    %v3677 = vrot.slane %v3151, 2
    %v3678 = vrot.slane %v3153, 2
    %v3687 = vadd.f32 %v3671, %v3663
    %v3688 = vadd.f32 %v3672, %v3664
    %v3689 = vadd.f32 %v3673, %v3665
    %v3690 = vadd.f32 %v3674, %v3666
    %v3691 = vadd.f32 %v3675, %v3667
    %v3692 = vadd.f32 %v3676, %v3668
    %v3693 = vadd.f32 %v3677, %v3669
    %v3694 = vadd.f32 %v3678, %v3670
    %v3695 = vtanh.pop %v3687
    %v3696 = vtanh.pop %v3688
    %v3697 = vtanh.pop %v3689
    %v3698 = vtanh.pop %v3690
    %v3699 = vtanh.pop %v3691
    %v3700 = vtanh.pop %v3692
    %v3701 = vtanh.pop %v3693
    %v3702 = vtanh.pop %v3694
    %v3703 = vsub.f32 1.0, %v3590
    %v3704 = vsub.f32 1.0, %v3592
    %v3705 = vsub.f32 1.0, %v3594
    %v3706 = vsub.f32 1.0, %v3596
    %v3707 = vsub.f32 1.0, %v3598
    %v3708 = vsub.f32 1.0, %v3600
    %v3709 = vsub.f32 1.0, %v3602
    %v3710 = vsub.f32 1.0, %v3604
    %v3711 = vmul.f32 %v3703, %v3695
    %v3712 = vmul.f32 %v3704, %v3696
    %v3713 = vmul.f32 %v3705, %v3697
    %v3714 = vmul.f32 %v3706, %v3698
    %v3715 = vmul.f32 %v3707, %v3699
    %v3716 = vmul.f32 %v3708, %v3700
    %v3717 = vmul.f32 %v3709, %v3701
    %v3718 = vmul.f32 %v3710, %v3702
    %v3719 = vmul.f32 %v3590, %v3122
    %v3720 = vmul.f32 %v3592, %v3123
    %v3721 = vmul.f32 %v3594, %v3124
    %v3722 = vmul.f32 %v3596, %v3125
    %v3723 = vmul.f32 %v3598, %v3126
    %v3724 = vmul.f32 %v3600, %v3127
    %v3725 = vmul.f32 %v3602, %v3128
    %v3726 = vmul.f32 %v3604, %v3129
    %v3727 = vadd.f32 %v3711, %v3719
    %v3728 = vadd.f32 %v3712, %v3720
    %v3729 = vadd.f32 %v3713, %v3721
    %v3730 = vadd.f32 %v3714, %v3722
    %v3731 = vadd.f32 %v3715, %v3723
    %v3732 = vadd.f32 %v3716, %v3724
    %v3733 = vadd.f32 %v3717, %v3725
    %v3734 = vadd.f32 %v3718, %v3726
    %3735 = vst [vmem:[#allocation8 + $0x5] sm:$0x1] %v3727
    %3736 = vst [vmem:[#allocation8 + $0xd] sm:$0x1] %v3728
    %3737 = vst [vmem:[#allocation8 + $0x15] sm:$0x1] %v3729
    %3738 = vst [vmem:[#allocation8 + $0x1d] sm:$0x1] %v3730
    %3739 = vst [vmem:[#allocation8 + $0x25] sm:$0x1] %v3731
    %3740 = vst [vmem:[#allocation8 + $0x2d] sm:$0x1] %v3732
    %3741 = vst [vmem:[#allocation8 + $0x35] sm:$0x1] %v3733
    %3742 = vst [vmem:[#allocation8 + $0x3d] sm:$0x1] %v3734
    %s3743 = scalar_lea.vmem [#allocation3], 6
    %v3744 = vld [vmem:[%s3743] ss:$8 sm:$0x7]
    %s3745 = scalar_lea.vmem [#allocation3], 30
    %v3746 = vld [vmem:[%s3745] ss:$8 sm:$0x7]
    %s3747 = scalar_lea.vmem [#allocation3], 54
    %v3748 = vld [vmem:[%s3747] ss:$8 sm:$0x7]
    %s3749 = scalar_lea.vmem [#allocation3], 78
    %v3750 = vld [vmem:[%s3749] ss:$8 sm:$0x7]
    %s3751 = scalar_lea.vmem [#allocation3], 102
    %v3752 = vld [vmem:[%s3751] ss:$8 sm:$0x7]
    %s3753 = scalar_lea.vmem [#allocation3], 126
    %v3754 = vld [vmem:[%s3753] ss:$8 sm:$0x7]
    %s3755 = scalar_lea.vmem [#allocation3], 150
    %v3756 = vld [vmem:[%s3755] ss:$8 sm:$0x7]
    %s3757 = scalar_lea.vmem [#allocation3], 174
    %v3758 = vld [vmem:[%s3757] ss:$8 sm:$0x7]
    %v3767 = vcombine.low %v3727, %v3728
    %v3768 = vcombine.low %v3729, %v3730
    %v3769 = vcombine.low %v3731, %v3732
    %v3770 = vcombine.low %v3733, %v3734
    %v3772 = vunpack.c.l.s4 1966171168
    %v3773 = vunpack.c.0.s8 %v3772
    %v3774 = vlaneseq
    %v3775 = vshrl.u32 %v3774, 7
    %v3776 = vsub.s32 %v3773, %v3775
    %v3777 = vrot.slane %v3767, %v3776
    %v3779 = vunpack.c.l.s4 1966171168
    %v3780 = vunpack.c.0.s8 %v3779
    %v3781 = vlaneseq
    %v3782 = vshrl.u32 %v3781, 7
    %v3783 = vsub.s32 %v3780, %v3782
    %v3784 = vrot.slane %v3768, %v3783
    %v3786 = vunpack.c.l.s4 1966171168
    %v3787 = vunpack.c.0.s8 %v3786
    %v3788 = vlaneseq
    %v3789 = vshrl.u32 %v3788, 7
    %v3790 = vsub.s32 %v3787, %v3789
    %v3791 = vrot.slane %v3769, %v3790
    %v3793 = vunpack.c.l.s4 1966171168
    %v3794 = vunpack.c.0.s8 %v3793
    %v3795 = vlaneseq
    %v3796 = vshrl.u32 %v3795, 7
    %v3797 = vsub.s32 %v3794, %v3796
    %v3798 = vrot.slane %v3770, %v3797
    %v3799 = vcombine.low %v3777, %v3784
    %v3800 = vcombine.low %v3791, %v3798
    %v3802 = vunpack.c.l.s4 1966171168
    %v3803 = vunpack.c.0.s8 %v3802
    %v3804 = vlaneseq
    %v3805 = vshrl.u32 %v3804, 7
    %v3806 = vsub.s32 %v3803, %v3805
    %v3807 = vrot.slane %v3799, %v3806
    %v3809 = vunpack.c.l.s4 1966171168
    %v3810 = vunpack.c.0.s8 %v3809
    %v3811 = vlaneseq
    %v3812 = vshrl.u32 %v3811, 7
    %v3813 = vsub.s32 %v3810, %v3812
    %v3814 = vrot.slane %v3800, %v3813
    %v3815 = vcombine.low %v3807, %v3814
    %3817 = vmatprep.subr.mxu0 %v94
    %3818 = vmatpush1.msra.mxu0 %v93
    %3819 = vmatprep.subr.mxu0 %v91
    %3820 = vmatpush1.msra.mxu0 %v90
    %3821 = vmatprep.subr.mxu0 %v88
    %3822 = vmatpush1.msra.mxu0 %v87
    %3823 = vmatprep.subr.mxu0 %v85
    %3824 = vmatpush1.msra.mxu0 %v84
    %3825 = vmatprep.subr.mxu0 %v82
    %3826 = vmatpush1.msra.mxu0 %v81
    %3827 = vmatprep.subr.mxu0 %v79
    %3828 = vmatpush1.msra.mxu0 %v78
    %3829 = vmatprep.subr.mxu0 %v76
    %3830 = vmatpush1.msra.mxu0 %v75
    %3831 = vmatprep.subr.mxu0 %v73
    %3832 = vmatpush1.msra.mxu0 %v72
    %3833 = vmatprep.subr.mxu0 %v70
    %3834 = vmatpush1.msra.mxu0 %v69
    %3835 = vmatprep.subr.mxu0 %v67
    %3836 = vmatpush1.msra.mxu0 %v66
    %3837 = vmatprep.subr.mxu0 %v64
    %3838 = vmatpush1.msra.mxu0 %v63
    %3839 = vmatprep.subr.mxu0 %v61
    %3840 = vmatpush1.msra.mxu0 %v60
    %3841 = vmatprep.subr.mxu0 %v58
    %3842 = vmatpush1.msra.mxu0 %v57
    %3843 = vmatprep.subr.mxu0 %v55
    %3844 = vmatpush1.msra.mxu0 %v54
    %3845 = vmatprep.subr.mxu0 %v52
    %3846 = vmatpush1.msra.mxu0 %v51
    %3847 = vmatprep.subr.mxu0 %v49
    %3848 = vmatpush1.msra.mxu0 %v48
    %3849 = vmatprep.subr.mxu0 0.0
    %3850 = vmatpush2.msra.mxu0 0.0
    %3851 = vmatprep.subr.mxu0 0.0
    %3852 = vmatpush2.msra.mxu0 0.0
    %3853 = vmatprep.subr.mxu0 0.0
    %3854 = vmatpush2.msra.mxu0 0.0
    %3855 = vmatprep.subr.mxu0 0.0
    %3856 = vmatpush2.msra.mxu0 0.0
    %3857 = vmatprep.subr.mxu0 0.0
    %3858 = vmatpush2.msra.mxu0 0.0
    %3859 = vmatprep.subr.mxu0 0.0
    %3860 = vmatpush2.msra.mxu0 0.0
    %3861 = vmatprep.subr.mxu0 0.0
    %3862 = vmatpush2.msra.mxu0 0.0
    %3863 = vmatprep.subr.mxu0 0.0
    %3864 = vmatpush2.msra.mxu0 0.0
    %3865 = vmatprep.subr.mxu0 0.0
    %3866 = vmatpush2.msra.mxu0 0.0
    %3867 = vmatprep.subr.mxu0 0.0
    %3868 = vmatpush2.msra.mxu0 0.0
    %3869 = vmatprep.subr.mxu0 0.0
    %3870 = vmatpush2.msra.mxu0 0.0
    %3871 = vmatprep.subr.mxu0 0.0
    %3872 = vmatpush2.msra.mxu0 0.0
    %3873 = vmatprep.subr.mxu0 0.0
    %3874 = vmatpush2.msra.mxu0 0.0
    %3875 = vmatprep.subr.mxu0 0.0
    %3876 = vmatpush2.msra.mxu0 0.0
    %3877 = vmatprep.subr.mxu0 0.0
    %3878 = vmatpush2.msra.mxu0 0.0
    %3879 = vmatprep.subr.mxu0 0.0
    %3880 = vmatpush2.msra.mxu0 0.0
    %3881 = vmatprep.mubr.f32.mxu0 0.0
    %3882 = vmatmul.mubr.f32.gmra.mxu0 %v3815
    %v3883 = vpop.f32.mrf.mxu0
    %v3884 = vadd.f32 %v101, %v3883
    %v3885 = vpop.f32.mrf.mxu0
    %v3886 = vadd.f32 %v105, %v3885
    %3887 = vdwg.mxu0
    %3888 = vmatprep.subr.mxu0 0.0
    %3889 = vmatpush1.msra.mxu0 %v95
    %3890 = vmatprep.subr.mxu0 0.0
    %3891 = vmatpush1.msra.mxu0 %v92
    %3892 = vmatprep.subr.mxu0 0.0
    %3893 = vmatpush1.msra.mxu0 %v89
    %3894 = vmatprep.subr.mxu0 0.0
    %3895 = vmatpush1.msra.mxu0 %v86
    %3896 = vmatprep.subr.mxu0 0.0
    %3897 = vmatpush1.msra.mxu0 %v83
    %3898 = vmatprep.subr.mxu0 0.0
    %3899 = vmatpush1.msra.mxu0 %v80
    %3900 = vmatprep.subr.mxu0 0.0
    %3901 = vmatpush1.msra.mxu0 %v77
    %3902 = vmatprep.subr.mxu0 0.0
    %3903 = vmatpush1.msra.mxu0 %v74
    %3904 = vmatprep.subr.mxu0 0.0
    %3905 = vmatpush1.msra.mxu0 %v71
    %3906 = vmatprep.subr.mxu0 0.0
    %3907 = vmatpush1.msra.mxu0 %v68
    %3908 = vmatprep.subr.mxu0 0.0
    %3909 = vmatpush1.msra.mxu0 %v65
    %3910 = vmatprep.subr.mxu0 0.0
    %3911 = vmatpush1.msra.mxu0 %v62
    %3912 = vmatprep.subr.mxu0 0.0
    %3913 = vmatpush1.msra.mxu0 %v59
    %3914 = vmatprep.subr.mxu0 0.0
    %3915 = vmatpush1.msra.mxu0 %v56
    %3916 = vmatprep.subr.mxu0 0.0
    %3917 = vmatpush1.msra.mxu0 %v53
    %3918 = vmatprep.subr.mxu0 0.0
    %3919 = vmatpush1.msra.mxu0 %v50
    %3920 = vmatprep.subr.mxu0 0.0
    %3921 = vmatpush2.msra.mxu0 0.0
    %3922 = vmatprep.subr.mxu0 0.0
    %3923 = vmatpush2.msra.mxu0 0.0
    %3924 = vmatprep.subr.mxu0 0.0
    %3925 = vmatpush2.msra.mxu0 0.0
    %3926 = vmatprep.subr.mxu0 0.0
    %3927 = vmatpush2.msra.mxu0 0.0
    %3928 = vmatprep.subr.mxu0 0.0
    %3929 = vmatpush2.msra.mxu0 0.0
    %3930 = vmatprep.subr.mxu0 0.0
    %3931 = vmatpush2.msra.mxu0 0.0
    %3932 = vmatprep.subr.mxu0 0.0
    %3933 = vmatpush2.msra.mxu0 0.0
    %3934 = vmatprep.subr.mxu0 0.0
    %3935 = vmatpush2.msra.mxu0 0.0
    %3936 = vmatprep.subr.mxu0 0.0
    %3937 = vmatpush2.msra.mxu0 0.0
    %3938 = vmatprep.subr.mxu0 0.0
    %3939 = vmatpush2.msra.mxu0 0.0
    %3940 = vmatprep.subr.mxu0 0.0
    %3941 = vmatpush2.msra.mxu0 0.0
    %3942 = vmatprep.subr.mxu0 0.0
    %3943 = vmatpush2.msra.mxu0 0.0
    %3944 = vmatprep.subr.mxu0 0.0
    %3945 = vmatpush2.msra.mxu0 0.0
    %3946 = vmatprep.subr.mxu0 0.0
    %3947 = vmatpush2.msra.mxu0 0.0
    %3948 = vmatprep.subr.mxu0 0.0
    %3949 = vmatpush2.msra.mxu0 0.0
    %3950 = vmatprep.subr.mxu0 0.0
    %3951 = vmatpush2.msra.mxu0 0.0
    %3952 = vmatprep.mubr.f32.mxu0 0.0
    %3953 = vmatmul.mubr.f32.gmra.mxu0 %v3815
    %v3954 = vpop.f32.mrf.mxu0
    %v3955 = vadd.f32 %v109, %v3954
    %v3956 = vpop.f32.mrf.mxu0
    %3957 = vdwg.mxu0
    %v3959 = vcombine.high %v3884, %v3884
    %v3961 = vunpack.c.l.s4 1966171168
    %v3962 = vunpack.c.0.s8 %v3961
    %v3963 = vlaneseq
    %v3964 = vshrl.u32 %v3963, 7
    %v3965 = vsub.s32 %v3962, %v3964
    %v3966 = vrot.slane %v3884, %v3965
    %v3968 = vunpack.c.l.s4 1966171168
    %v3969 = vunpack.c.0.s8 %v3968
    %v3970 = vlaneseq
    %v3971 = vshrl.u32 %v3970, 7
    %v3972 = vsub.s32 %v3969, %v3971
    %v3973 = vrot.slane %v3959, %v3972
    %v3974 = vcombine.high %v3966, %v3966
    %v3975 = vcombine.high %v3973, %v3973
    %v3977 = vunpack.c.l.s4 1966171168
    %v3978 = vunpack.c.0.s8 %v3977
    %v3979 = vlaneseq
    %v3980 = vshrl.u32 %v3979, 7
    %v3981 = vsub.s32 %v3978, %v3980
    %v3982 = vrot.slane %v3966, %v3981
    %v3984 = vunpack.c.l.s4 1966171168
    %v3985 = vunpack.c.0.s8 %v3984
    %v3986 = vlaneseq
    %v3987 = vshrl.u32 %v3986, 7
    %v3988 = vsub.s32 %v3985, %v3987
    %v3989 = vrot.slane %v3973, %v3988
    %v3991 = vunpack.c.l.s4 1966171168
    %v3992 = vunpack.c.0.s8 %v3991
    %v3993 = vlaneseq
    %v3994 = vshrl.u32 %v3993, 7
    %v3995 = vsub.s32 %v3992, %v3994
    %v3996 = vrot.slane %v3974, %v3995
    %v3998 = vunpack.c.l.s4 1966171168
    %v3999 = vunpack.c.0.s8 %v3998
    %v4000 = vlaneseq
    %v4001 = vshrl.u32 %v4000, 7
    %v4002 = vsub.s32 %v3999, %v4001
    %v4003 = vrot.slane %v3975, %v4002
    %v4004 = vcombine.high %v3982, %v3982
    %v4005 = vcombine.high %v3989, %v3989
    %v4006 = vcombine.high %v3996, %v3996
    %v4007 = vcombine.high %v4003, %v4003
    %v4016 = vadd.f32 %v3744, %v3982
    %v4017 = vadd.f32 %v3746, %v3996
    %v4018 = vadd.f32 %v3748, %v4004
    %v4019 = vadd.f32 %v3750, %v4006
    %v4020 = vadd.f32 %v3752, %v3989
    %v4021 = vadd.f32 %v3754, %v4003
    %v4022 = vadd.f32 %v3756, %v4005
    %v4023 = vadd.f32 %v3758, %v4007
    %v4024 = vxor.u32 %v4016, 2147483648
    %v4025 = vxor.u32 %v4017, 2147483648
    %v4026 = vxor.u32 %v4018, 2147483648
    %v4027 = vxor.u32 %v4019, 2147483648
    %v4028 = vxor.u32 %v4020, 2147483648
    %v4029 = vxor.u32 %v4021, 2147483648
    %v4030 = vxor.u32 %v4022, 2147483648
    %v4031 = vxor.u32 %v4023, 2147483648
    %v4032 = vmul.f32 %v4024, 1.442695
    %v4033 = vpow.pop %v4032
    %v4034 = vmul.f32 %v4025, 1.442695
    %v4035 = vpow.pop %v4034
    %v4036 = vmul.f32 %v4026, 1.442695
    %v4037 = vpow.pop %v4036
    %v4038 = vmul.f32 %v4027, 1.442695
    %v4039 = vpow.pop %v4038
    %v4040 = vmul.f32 %v4028, 1.442695
    %v4041 = vpow.pop %v4040
    %v4042 = vmul.f32 %v4029, 1.442695
    %v4043 = vpow.pop %v4042
    %v4044 = vmul.f32 %v4030, 1.442695
    %v4045 = vpow.pop %v4044
    %v4046 = vmul.f32 %v4031, 1.442695
    %v4047 = vpow.pop %v4046
    %v4048 = vadd.f32 %v4033, 1.0
    %v4049 = vadd.f32 %v4035, 1.0
    %v4050 = vadd.f32 %v4037, 1.0
    %v4051 = vadd.f32 %v4039, 1.0
    %v4052 = vadd.f32 %v4041, 1.0
    %v4053 = vadd.f32 %v4043, 1.0
    %v4054 = vadd.f32 %v4045, 1.0
    %v4055 = vadd.f32 %v4047, 1.0
    %v4056 = vrcp.pop %v4048
    %v4057 = vmul.f32 1.0, %v4056
    %v4058 = vrcp.pop %v4049
    %v4059 = vmul.f32 1.0, %v4058
    %v4060 = vrcp.pop %v4050
    %v4061 = vmul.f32 1.0, %v4060
    %v4062 = vrcp.pop %v4051
    %v4063 = vmul.f32 1.0, %v4062
    %v4064 = vrcp.pop %v4052
    %v4065 = vmul.f32 1.0, %v4064
    %v4066 = vrcp.pop %v4053
    %v4067 = vmul.f32 1.0, %v4066
    %v4068 = vrcp.pop %v4054
    %v4069 = vmul.f32 1.0, %v4068
    %v4070 = vrcp.pop %v4055
    %v4071 = vmul.f32 1.0, %v4070
    %v4080 = vrot.slane %v3744, 1
    %v4081 = vrot.slane %v3746, 1
    %v4082 = vrot.slane %v3748, 1
    %v4083 = vrot.slane %v3750, 1
    %v4084 = vrot.slane %v3752, 1
    %v4085 = vrot.slane %v3754, 1
    %v4086 = vrot.slane %v3756, 1
    %v4087 = vrot.slane %v3758, 1
    %v4097 = vcombine.high %v3886, %v3886
    %v4099 = vunpack.c.l.s4 1966171168
    %v4100 = vunpack.c.0.s8 %v4099
    %v4101 = vlaneseq
    %v4102 = vshrl.u32 %v4101, 7
    %v4103 = vsub.s32 %v4100, %v4102
    %v4104 = vrot.slane %v3886, %v4103
    %v4106 = vunpack.c.l.s4 1966171168
    %v4107 = vunpack.c.0.s8 %v4106
    %v4108 = vlaneseq
    %v4109 = vshrl.u32 %v4108, 7
    %v4110 = vsub.s32 %v4107, %v4109
    %v4111 = vrot.slane %v4097, %v4110
    %v4112 = vcombine.high %v4104, %v4104
    %v4113 = vcombine.high %v4111, %v4111
    %v4115 = vunpack.c.l.s4 1966171168
    %v4116 = vunpack.c.0.s8 %v4115
    %v4117 = vlaneseq
    %v4118 = vshrl.u32 %v4117, 7
    %v4119 = vsub.s32 %v4116, %v4118
    %v4120 = vrot.slane %v4104, %v4119
    %v4122 = vunpack.c.l.s4 1966171168
    %v4123 = vunpack.c.0.s8 %v4122
    %v4124 = vlaneseq
    %v4125 = vshrl.u32 %v4124, 7
    %v4126 = vsub.s32 %v4123, %v4125
    %v4127 = vrot.slane %v4111, %v4126
    %v4129 = vunpack.c.l.s4 1966171168
    %v4130 = vunpack.c.0.s8 %v4129
    %v4131 = vlaneseq
    %v4132 = vshrl.u32 %v4131, 7
    %v4133 = vsub.s32 %v4130, %v4132
    %v4134 = vrot.slane %v4112, %v4133
    %v4136 = vunpack.c.l.s4 1966171168
    %v4137 = vunpack.c.0.s8 %v4136
    %v4138 = vlaneseq
    %v4139 = vshrl.u32 %v4138, 7
    %v4140 = vsub.s32 %v4137, %v4139
    %v4141 = vrot.slane %v4113, %v4140
    %v4142 = vcombine.high %v4120, %v4120
    %v4143 = vcombine.high %v4127, %v4127
    %v4144 = vcombine.high %v4134, %v4134
    %v4145 = vcombine.high %v4141, %v4141
    %v4154 = vadd.f32 %v4080, %v4120
    %v4155 = vadd.f32 %v4081, %v4134
    %v4156 = vadd.f32 %v4082, %v4142
    %v4157 = vadd.f32 %v4083, %v4144
    %v4158 = vadd.f32 %v4084, %v4127
    %v4159 = vadd.f32 %v4085, %v4141
    %v4160 = vadd.f32 %v4086, %v4143
    %v4161 = vadd.f32 %v4087, %v4145
    %v4162 = vxor.u32 %v4154, 2147483648
    %v4163 = vxor.u32 %v4155, 2147483648
    %v4164 = vxor.u32 %v4156, 2147483648
    %v4165 = vxor.u32 %v4157, 2147483648
    %v4166 = vxor.u32 %v4158, 2147483648
    %v4167 = vxor.u32 %v4159, 2147483648
    %v4168 = vxor.u32 %v4160, 2147483648
    %v4169 = vxor.u32 %v4161, 2147483648
    %v4170 = vmul.f32 %v4162, 1.442695
    %v4171 = vpow.pop %v4170
    %v4172 = vmul.f32 %v4163, 1.442695
    %v4173 = vpow.pop %v4172
    %v4174 = vmul.f32 %v4164, 1.442695
    %v4175 = vpow.pop %v4174
    %v4176 = vmul.f32 %v4165, 1.442695
    %v4177 = vpow.pop %v4176
    %v4178 = vmul.f32 %v4166, 1.442695
    %v4179 = vpow.pop %v4178
    %v4180 = vmul.f32 %v4167, 1.442695
    %v4181 = vpow.pop %v4180
    %v4182 = vmul.f32 %v4168, 1.442695
    %v4183 = vpow.pop %v4182
    %v4184 = vmul.f32 %v4169, 1.442695
    %v4185 = vpow.pop %v4184
    %v4186 = vadd.f32 %v4171, 1.0
    %v4187 = vadd.f32 %v4173, 1.0
    %v4188 = vadd.f32 %v4175, 1.0
    %v4189 = vadd.f32 %v4177, 1.0
    %v4190 = vadd.f32 %v4179, 1.0
    %v4191 = vadd.f32 %v4181, 1.0
    %v4192 = vadd.f32 %v4183, 1.0
    %v4193 = vadd.f32 %v4185, 1.0
    %v4194 = vrcp.pop %v4186
    %v4195 = vmul.f32 1.0, %v4194
    %v4196 = vrcp.pop %v4187
    %v4197 = vmul.f32 1.0, %v4196
    %v4198 = vrcp.pop %v4188
    %v4199 = vmul.f32 1.0, %v4198
    %v4200 = vrcp.pop %v4189
    %v4201 = vmul.f32 1.0, %v4200
    %v4202 = vrcp.pop %v4190
    %v4203 = vmul.f32 1.0, %v4202
    %v4204 = vrcp.pop %v4191
    %v4205 = vmul.f32 1.0, %v4204
    %v4206 = vrcp.pop %v4192
    %v4207 = vmul.f32 1.0, %v4206
    %v4208 = vrcp.pop %v4193
    %v4209 = vmul.f32 1.0, %v4208
    %v4211 = vcombine.high %v3955, %v3955
    %v4213 = vunpack.c.l.s4 1966171168
    %v4214 = vunpack.c.0.s8 %v4213
    %v4215 = vlaneseq
    %v4216 = vshrl.u32 %v4215, 7
    %v4217 = vsub.s32 %v4214, %v4216
    %v4218 = vrot.slane %v3955, %v4217
    %v4220 = vunpack.c.l.s4 1966171168
    %v4221 = vunpack.c.0.s8 %v4220
    %v4222 = vlaneseq
    %v4223 = vshrl.u32 %v4222, 7
    %v4224 = vsub.s32 %v4221, %v4223
    %v4225 = vrot.slane %v4211, %v4224
    %v4226 = vcombine.high %v4218, %v4218
    %v4227 = vcombine.high %v4225, %v4225
    %v4229 = vunpack.c.l.s4 1966171168
    %v4230 = vunpack.c.0.s8 %v4229
    %v4231 = vlaneseq
    %v4232 = vshrl.u32 %v4231, 7
    %v4233 = vsub.s32 %v4230, %v4232
    %v4234 = vrot.slane %v4218, %v4233
    %v4236 = vunpack.c.l.s4 1966171168
    %v4237 = vunpack.c.0.s8 %v4236
    %v4238 = vlaneseq
    %v4239 = vshrl.u32 %v4238, 7
    %v4240 = vsub.s32 %v4237, %v4239
    %v4241 = vrot.slane %v4225, %v4240
    %v4243 = vunpack.c.l.s4 1966171168
    %v4244 = vunpack.c.0.s8 %v4243
    %v4245 = vlaneseq
    %v4246 = vshrl.u32 %v4245, 7
    %v4247 = vsub.s32 %v4244, %v4246
    %v4248 = vrot.slane %v4226, %v4247
    %v4250 = vunpack.c.l.s4 1966171168
    %v4251 = vunpack.c.0.s8 %v4250
    %v4252 = vlaneseq
    %v4253 = vshrl.u32 %v4252, 7
    %v4254 = vsub.s32 %v4251, %v4253
    %v4255 = vrot.slane %v4227, %v4254
    %v4256 = vcombine.high %v4234, %v4234
    %v4257 = vcombine.high %v4241, %v4241
    %v4258 = vcombine.high %v4248, %v4248
    %v4259 = vcombine.high %v4255, %v4255
    %v4268 = vmul.f32 %v4057, %v4234
    %v4269 = vmul.f32 %v4059, %v4248
    %v4270 = vmul.f32 %v4061, %v4256
    %v4271 = vmul.f32 %v4063, %v4258
    %v4272 = vmul.f32 %v4065, %v4241
    %v4273 = vmul.f32 %v4067, %v4255
    %v4274 = vmul.f32 %v4069, %v4257
    %v4275 = vmul.f32 %v4071, %v4259
    %v4276 = vrot.slane %v3744, 2
    %v4277 = vrot.slane %v3746, 2
    %v4278 = vrot.slane %v3748, 2
    %v4279 = vrot.slane %v3750, 2
    %v4280 = vrot.slane %v3752, 2
    %v4281 = vrot.slane %v3754, 2
    %v4282 = vrot.slane %v3756, 2
    %v4283 = vrot.slane %v3758, 2
    %v4292 = vadd.f32 %v4276, %v4268
    %v4293 = vadd.f32 %v4277, %v4269
    %v4294 = vadd.f32 %v4278, %v4270
    %v4295 = vadd.f32 %v4279, %v4271
    %v4296 = vadd.f32 %v4280, %v4272
    %v4297 = vadd.f32 %v4281, %v4273
    %v4298 = vadd.f32 %v4282, %v4274
    %v4299 = vadd.f32 %v4283, %v4275
    %v4300 = vtanh.pop %v4292
    %v4301 = vtanh.pop %v4293
    %v4302 = vtanh.pop %v4294
    %v4303 = vtanh.pop %v4295
    %v4304 = vtanh.pop %v4296
    %v4305 = vtanh.pop %v4297
    %v4306 = vtanh.pop %v4298
    %v4307 = vtanh.pop %v4299
    %v4308 = vsub.f32 1.0, %v4195
    %v4309 = vsub.f32 1.0, %v4197
    %v4310 = vsub.f32 1.0, %v4199
    %v4311 = vsub.f32 1.0, %v4201
    %v4312 = vsub.f32 1.0, %v4203
    %v4313 = vsub.f32 1.0, %v4205
    %v4314 = vsub.f32 1.0, %v4207
    %v4315 = vsub.f32 1.0, %v4209
    %v4316 = vmul.f32 %v4308, %v4300
    %v4317 = vmul.f32 %v4309, %v4301
    %v4318 = vmul.f32 %v4310, %v4302
    %v4319 = vmul.f32 %v4311, %v4303
    %v4320 = vmul.f32 %v4312, %v4304
    %v4321 = vmul.f32 %v4313, %v4305
    %v4322 = vmul.f32 %v4314, %v4306
    %v4323 = vmul.f32 %v4315, %v4307
    %v4324 = vmul.f32 %v4195, %v3727
    %v4325 = vmul.f32 %v4197, %v3728
    %v4326 = vmul.f32 %v4199, %v3729
    %v4327 = vmul.f32 %v4201, %v3730
    %v4328 = vmul.f32 %v4203, %v3731
    %v4329 = vmul.f32 %v4205, %v3732
    %v4330 = vmul.f32 %v4207, %v3733
    %v4331 = vmul.f32 %v4209, %v3734
    %v4332 = vadd.f32 %v4316, %v4324
    %v4333 = vadd.f32 %v4317, %v4325
    %v4334 = vadd.f32 %v4318, %v4326
    %v4335 = vadd.f32 %v4319, %v4327
    %v4336 = vadd.f32 %v4320, %v4328
    %v4337 = vadd.f32 %v4321, %v4329
    %v4338 = vadd.f32 %v4322, %v4330
    %v4339 = vadd.f32 %v4323, %v4331
    %4340 = vst [vmem:[#allocation8 + $0x6] sm:$0x1] %v4332
    %4341 = vst [vmem:[#allocation8 + $0xe] sm:$0x1] %v4333
    %4342 = vst [vmem:[#allocation8 + $0x16] sm:$0x1] %v4334
    %4343 = vst [vmem:[#allocation8 + $0x1e] sm:$0x1] %v4335
    %4344 = vst [vmem:[#allocation8 + $0x26] sm:$0x1] %v4336
    %4345 = vst [vmem:[#allocation8 + $0x2e] sm:$0x1] %v4337
    %4346 = vst [vmem:[#allocation8 + $0x36] sm:$0x1] %v4338
    %4347 = vst [vmem:[#allocation8 + $0x3e] sm:$0x1] %v4339
    %s4348 = scalar_lea.vmem [#allocation3], 7
    %v4349 = vld [vmem:[%s4348] ss:$8 sm:$0x7]
    %s4350 = scalar_lea.vmem [#allocation3], 31
    %v4351 = vld [vmem:[%s4350] ss:$8 sm:$0x7]
    %s4352 = scalar_lea.vmem [#allocation3], 55
    %v4353 = vld [vmem:[%s4352] ss:$8 sm:$0x7]
    %s4354 = scalar_lea.vmem [#allocation3], 79
    %v4355 = vld [vmem:[%s4354] ss:$8 sm:$0x7]
    %s4356 = scalar_lea.vmem [#allocation3], 103
    %v4357 = vld [vmem:[%s4356] ss:$8 sm:$0x7]
    %s4358 = scalar_lea.vmem [#allocation3], 127
    %v4359 = vld [vmem:[%s4358] ss:$8 sm:$0x7]
    %s4360 = scalar_lea.vmem [#allocation3], 151
    %v4361 = vld [vmem:[%s4360] ss:$8 sm:$0x7]
    %s4362 = scalar_lea.vmem [#allocation3], 175
    %v4363 = vld [vmem:[%s4362] ss:$8 sm:$0x7]
    %v4372 = vcombine.low %v4332, %v4333
    %v4373 = vcombine.low %v4334, %v4335
    %v4374 = vcombine.low %v4336, %v4337
    %v4375 = vcombine.low %v4338, %v4339
    %v4377 = vunpack.c.l.s4 1966171168
    %v4378 = vunpack.c.0.s8 %v4377
    %v4379 = vlaneseq
    %v4380 = vshrl.u32 %v4379, 7
    %v4381 = vsub.s32 %v4378, %v4380
    %v4382 = vrot.slane %v4372, %v4381
    %v4384 = vunpack.c.l.s4 1966171168
    %v4385 = vunpack.c.0.s8 %v4384
    %v4386 = vlaneseq
    %v4387 = vshrl.u32 %v4386, 7
    %v4388 = vsub.s32 %v4385, %v4387
    %v4389 = vrot.slane %v4373, %v4388
    %v4391 = vunpack.c.l.s4 1966171168
    %v4392 = vunpack.c.0.s8 %v4391
    %v4393 = vlaneseq
    %v4394 = vshrl.u32 %v4393, 7
    %v4395 = vsub.s32 %v4392, %v4394
    %v4396 = vrot.slane %v4374, %v4395
    %v4398 = vunpack.c.l.s4 1966171168
    %v4399 = vunpack.c.0.s8 %v4398
    %v4400 = vlaneseq
    %v4401 = vshrl.u32 %v4400, 7
    %v4402 = vsub.s32 %v4399, %v4401
    %v4403 = vrot.slane %v4375, %v4402
    %v4404 = vcombine.low %v4382, %v4389
    %v4405 = vcombine.low %v4396, %v4403
    %v4407 = vunpack.c.l.s4 1966171168
    %v4408 = vunpack.c.0.s8 %v4407
    %v4409 = vlaneseq
    %v4410 = vshrl.u32 %v4409, 7
    %v4411 = vsub.s32 %v4408, %v4410
    %v4412 = vrot.slane %v4404, %v4411
    %v4414 = vunpack.c.l.s4 1966171168
    %v4415 = vunpack.c.0.s8 %v4414
    %v4416 = vlaneseq
    %v4417 = vshrl.u32 %v4416, 7
    %v4418 = vsub.s32 %v4415, %v4417
    %v4419 = vrot.slane %v4405, %v4418
    %v4420 = vcombine.low %v4412, %v4419
    %4422 = vmatprep.subr.mxu0 %v94
    %4423 = vmatpush1.msra.mxu0 %v93
    %4424 = vmatprep.subr.mxu0 %v91
    %4425 = vmatpush1.msra.mxu0 %v90
    %4426 = vmatprep.subr.mxu0 %v88
    %4427 = vmatpush1.msra.mxu0 %v87
    %4428 = vmatprep.subr.mxu0 %v85
    %4429 = vmatpush1.msra.mxu0 %v84
    %4430 = vmatprep.subr.mxu0 %v82
    %4431 = vmatpush1.msra.mxu0 %v81
    %4432 = vmatprep.subr.mxu0 %v79
    %4433 = vmatpush1.msra.mxu0 %v78
    %4434 = vmatprep.subr.mxu0 %v76
    %4435 = vmatpush1.msra.mxu0 %v75
    %4436 = vmatprep.subr.mxu0 %v73
    %4437 = vmatpush1.msra.mxu0 %v72
    %4438 = vmatprep.subr.mxu0 %v70
    %4439 = vmatpush1.msra.mxu0 %v69
    %4440 = vmatprep.subr.mxu0 %v67
    %4441 = vmatpush1.msra.mxu0 %v66
    %4442 = vmatprep.subr.mxu0 %v64
    %4443 = vmatpush1.msra.mxu0 %v63
    %4444 = vmatprep.subr.mxu0 %v61
    %4445 = vmatpush1.msra.mxu0 %v60
    %4446 = vmatprep.subr.mxu0 %v58
    %4447 = vmatpush1.msra.mxu0 %v57
    %4448 = vmatprep.subr.mxu0 %v55
    %4449 = vmatpush1.msra.mxu0 %v54
    %4450 = vmatprep.subr.mxu0 %v52
    %4451 = vmatpush1.msra.mxu0 %v51
    %4452 = vmatprep.subr.mxu0 %v49
    %4453 = vmatpush1.msra.mxu0 %v48
    %4454 = vmatprep.subr.mxu0 0.0
    %4455 = vmatpush2.msra.mxu0 0.0
    %4456 = vmatprep.subr.mxu0 0.0
    %4457 = vmatpush2.msra.mxu0 0.0
    %4458 = vmatprep.subr.mxu0 0.0
    %4459 = vmatpush2.msra.mxu0 0.0
    %4460 = vmatprep.subr.mxu0 0.0
    %4461 = vmatpush2.msra.mxu0 0.0
    %4462 = vmatprep.subr.mxu0 0.0
    %4463 = vmatpush2.msra.mxu0 0.0
    %4464 = vmatprep.subr.mxu0 0.0
    %4465 = vmatpush2.msra.mxu0 0.0
    %4466 = vmatprep.subr.mxu0 0.0
    %4467 = vmatpush2.msra.mxu0 0.0
    %4468 = vmatprep.subr.mxu0 0.0
    %4469 = vmatpush2.msra.mxu0 0.0
    %4470 = vmatprep.subr.mxu0 0.0
    %4471 = vmatpush2.msra.mxu0 0.0
    %4472 = vmatprep.subr.mxu0 0.0
    %4473 = vmatpush2.msra.mxu0 0.0
    %4474 = vmatprep.subr.mxu0 0.0
    %4475 = vmatpush2.msra.mxu0 0.0
    %4476 = vmatprep.subr.mxu0 0.0
    %4477 = vmatpush2.msra.mxu0 0.0
    %4478 = vmatprep.subr.mxu0 0.0
    %4479 = vmatpush2.msra.mxu0 0.0
    %4480 = vmatprep.subr.mxu0 0.0
    %4481 = vmatpush2.msra.mxu0 0.0
    %4482 = vmatprep.subr.mxu0 0.0
    %4483 = vmatpush2.msra.mxu0 0.0
    %4484 = vmatprep.subr.mxu0 0.0
    %4485 = vmatpush2.msra.mxu0 0.0
    %4486 = vmatprep.mubr.f32.mxu0 0.0
    %4487 = vmatmul.mubr.f32.gmra.mxu0 %v4420
    %v4488 = vpop.f32.mrf.mxu0
    %v4489 = vadd.f32 %v101, %v4488
    %v4490 = vpop.f32.mrf.mxu0
    %v4491 = vadd.f32 %v105, %v4490
    %4492 = vdwg.mxu0
    %4493 = vmatprep.subr.mxu0 0.0
    %4494 = vmatpush1.msra.mxu0 %v95
    %4495 = vmatprep.subr.mxu0 0.0
    %4496 = vmatpush1.msra.mxu0 %v92
    %4497 = vmatprep.subr.mxu0 0.0
    %4498 = vmatpush1.msra.mxu0 %v89
    %4499 = vmatprep.subr.mxu0 0.0
    %4500 = vmatpush1.msra.mxu0 %v86
    %4501 = vmatprep.subr.mxu0 0.0
    %4502 = vmatpush1.msra.mxu0 %v83
    %4503 = vmatprep.subr.mxu0 0.0
    %4504 = vmatpush1.msra.mxu0 %v80
    %4505 = vmatprep.subr.mxu0 0.0
    %4506 = vmatpush1.msra.mxu0 %v77
    %4507 = vmatprep.subr.mxu0 0.0
    %4508 = vmatpush1.msra.mxu0 %v74
    %4509 = vmatprep.subr.mxu0 0.0
    %4510 = vmatpush1.msra.mxu0 %v71
    %4511 = vmatprep.subr.mxu0 0.0
    %4512 = vmatpush1.msra.mxu0 %v68
    %4513 = vmatprep.subr.mxu0 0.0
    %4514 = vmatpush1.msra.mxu0 %v65
    %4515 = vmatprep.subr.mxu0 0.0
    %4516 = vmatpush1.msra.mxu0 %v62
    %4517 = vmatprep.subr.mxu0 0.0
    %4518 = vmatpush1.msra.mxu0 %v59
    %4519 = vmatprep.subr.mxu0 0.0
    %4520 = vmatpush1.msra.mxu0 %v56
    %4521 = vmatprep.subr.mxu0 0.0
    %4522 = vmatpush1.msra.mxu0 %v53
    %4523 = vmatprep.subr.mxu0 0.0
    %4524 = vmatpush1.msra.mxu0 %v50
    %4525 = vmatprep.subr.mxu0 0.0
    %4526 = vmatpush2.msra.mxu0 0.0
    %4527 = vmatprep.subr.mxu0 0.0
    %4528 = vmatpush2.msra.mxu0 0.0
    %4529 = vmatprep.subr.mxu0 0.0
    %4530 = vmatpush2.msra.mxu0 0.0
    %4531 = vmatprep.subr.mxu0 0.0
    %4532 = vmatpush2.msra.mxu0 0.0
    %4533 = vmatprep.subr.mxu0 0.0
    %4534 = vmatpush2.msra.mxu0 0.0
    %4535 = vmatprep.subr.mxu0 0.0
    %4536 = vmatpush2.msra.mxu0 0.0
    %4537 = vmatprep.subr.mxu0 0.0
    %4538 = vmatpush2.msra.mxu0 0.0
    %4539 = vmatprep.subr.mxu0 0.0
    %4540 = vmatpush2.msra.mxu0 0.0
    %4541 = vmatprep.subr.mxu0 0.0
    %4542 = vmatpush2.msra.mxu0 0.0
    %4543 = vmatprep.subr.mxu0 0.0
    %4544 = vmatpush2.msra.mxu0 0.0
    %4545 = vmatprep.subr.mxu0 0.0
    %4546 = vmatpush2.msra.mxu0 0.0
    %4547 = vmatprep.subr.mxu0 0.0
    %4548 = vmatpush2.msra.mxu0 0.0
    %4549 = vmatprep.subr.mxu0 0.0
    %4550 = vmatpush2.msra.mxu0 0.0
    %4551 = vmatprep.subr.mxu0 0.0
    %4552 = vmatpush2.msra.mxu0 0.0
    %4553 = vmatprep.subr.mxu0 0.0
    %4554 = vmatpush2.msra.mxu0 0.0
    %4555 = vmatprep.subr.mxu0 0.0
    %4556 = vmatpush2.msra.mxu0 0.0
    %4557 = vmatprep.mubr.f32.mxu0 0.0
    %4558 = vmatmul.mubr.f32.gmra.mxu0 %v4420
    %v4559 = vpop.f32.mrf.mxu0
    %v4560 = vadd.f32 %v109, %v4559
    %v4561 = vpop.f32.mrf.mxu0
    %4562 = vdwg.mxu0
    %v4564 = vcombine.high %v4489, %v4489
    %v4566 = vunpack.c.l.s4 1966171168
    %v4567 = vunpack.c.0.s8 %v4566
    %v4568 = vlaneseq
    %v4569 = vshrl.u32 %v4568, 7
    %v4570 = vsub.s32 %v4567, %v4569
    %v4571 = vrot.slane %v4489, %v4570
    %v4573 = vunpack.c.l.s4 1966171168
    %v4574 = vunpack.c.0.s8 %v4573
    %v4575 = vlaneseq
    %v4576 = vshrl.u32 %v4575, 7
    %v4577 = vsub.s32 %v4574, %v4576
    %v4578 = vrot.slane %v4564, %v4577
    %v4579 = vcombine.high %v4571, %v4571
    %v4580 = vcombine.high %v4578, %v4578
    %v4582 = vunpack.c.l.s4 1966171168
    %v4583 = vunpack.c.0.s8 %v4582
    %v4584 = vlaneseq
    %v4585 = vshrl.u32 %v4584, 7
    %v4586 = vsub.s32 %v4583, %v4585
    %v4587 = vrot.slane %v4571, %v4586
    %v4589 = vunpack.c.l.s4 1966171168
    %v4590 = vunpack.c.0.s8 %v4589
    %v4591 = vlaneseq
    %v4592 = vshrl.u32 %v4591, 7
    %v4593 = vsub.s32 %v4590, %v4592
    %v4594 = vrot.slane %v4578, %v4593
    %v4596 = vunpack.c.l.s4 1966171168
    %v4597 = vunpack.c.0.s8 %v4596
    %v4598 = vlaneseq
    %v4599 = vshrl.u32 %v4598, 7
    %v4600 = vsub.s32 %v4597, %v4599
    %v4601 = vrot.slane %v4579, %v4600
    %v4603 = vunpack.c.l.s4 1966171168
    %v4604 = vunpack.c.0.s8 %v4603
    %v4605 = vlaneseq
    %v4606 = vshrl.u32 %v4605, 7
    %v4607 = vsub.s32 %v4604, %v4606
    %v4608 = vrot.slane %v4580, %v4607
    %v4609 = vcombine.high %v4587, %v4587
    %v4610 = vcombine.high %v4594, %v4594
    %v4611 = vcombine.high %v4601, %v4601
    %v4612 = vcombine.high %v4608, %v4608
    %v4621 = vadd.f32 %v4349, %v4587
    %v4622 = vadd.f32 %v4351, %v4601
    %v4623 = vadd.f32 %v4353, %v4609
    %v4624 = vadd.f32 %v4355, %v4611
    %v4625 = vadd.f32 %v4357, %v4594
    %v4626 = vadd.f32 %v4359, %v4608
    %v4627 = vadd.f32 %v4361, %v4610
    %v4628 = vadd.f32 %v4363, %v4612
    %v4629 = vxor.u32 %v4621, 2147483648
    %v4630 = vxor.u32 %v4622, 2147483648
    %v4631 = vxor.u32 %v4623, 2147483648
    %v4632 = vxor.u32 %v4624, 2147483648
    %v4633 = vxor.u32 %v4625, 2147483648
    %v4634 = vxor.u32 %v4626, 2147483648
    %v4635 = vxor.u32 %v4627, 2147483648
    %v4636 = vxor.u32 %v4628, 2147483648
    %v4637 = vmul.f32 %v4629, 1.442695
    %v4638 = vpow.pop %v4637
    %v4639 = vmul.f32 %v4630, 1.442695
    %v4640 = vpow.pop %v4639
    %v4641 = vmul.f32 %v4631, 1.442695
    %v4642 = vpow.pop %v4641
    %v4643 = vmul.f32 %v4632, 1.442695
    %v4644 = vpow.pop %v4643
    %v4645 = vmul.f32 %v4633, 1.442695
    %v4646 = vpow.pop %v4645
    %v4647 = vmul.f32 %v4634, 1.442695
    %v4648 = vpow.pop %v4647
    %v4649 = vmul.f32 %v4635, 1.442695
    %v4650 = vpow.pop %v4649
    %v4651 = vmul.f32 %v4636, 1.442695
    %v4652 = vpow.pop %v4651
    %v4653 = vadd.f32 %v4638, 1.0
    %v4654 = vadd.f32 %v4640, 1.0
    %v4655 = vadd.f32 %v4642, 1.0
    %v4656 = vadd.f32 %v4644, 1.0
    %v4657 = vadd.f32 %v4646, 1.0
    %v4658 = vadd.f32 %v4648, 1.0
    %v4659 = vadd.f32 %v4650, 1.0
    %v4660 = vadd.f32 %v4652, 1.0
    %v4661 = vrcp.pop %v4653
    %v4662 = vmul.f32 1.0, %v4661
    %v4663 = vrcp.pop %v4654
    %v4664 = vmul.f32 1.0, %v4663
    %v4665 = vrcp.pop %v4655
    %v4666 = vmul.f32 1.0, %v4665
    %v4667 = vrcp.pop %v4656
    %v4668 = vmul.f32 1.0, %v4667
    %v4669 = vrcp.pop %v4657
    %v4670 = vmul.f32 1.0, %v4669
    %v4671 = vrcp.pop %v4658
    %v4672 = vmul.f32 1.0, %v4671
    %v4673 = vrcp.pop %v4659
    %v4674 = vmul.f32 1.0, %v4673
    %v4675 = vrcp.pop %v4660
    %v4676 = vmul.f32 1.0, %v4675
    %v4685 = vrot.slane %v4349, 1
    %v4686 = vrot.slane %v4351, 1
    %v4687 = vrot.slane %v4353, 1
    %v4688 = vrot.slane %v4355, 1
    %v4689 = vrot.slane %v4357, 1
    %v4690 = vrot.slane %v4359, 1
    %v4691 = vrot.slane %v4361, 1
    %v4692 = vrot.slane %v4363, 1
    %v4702 = vcombine.high %v4491, %v4491
    %v4704 = vunpack.c.l.s4 1966171168
    %v4705 = vunpack.c.0.s8 %v4704
    %v4706 = vlaneseq
    %v4707 = vshrl.u32 %v4706, 7
    %v4708 = vsub.s32 %v4705, %v4707
    %v4709 = vrot.slane %v4491, %v4708
    %v4711 = vunpack.c.l.s4 1966171168
    %v4712 = vunpack.c.0.s8 %v4711
    %v4713 = vlaneseq
    %v4714 = vshrl.u32 %v4713, 7
    %v4715 = vsub.s32 %v4712, %v4714
    %v4716 = vrot.slane %v4702, %v4715
    %v4717 = vcombine.high %v4709, %v4709
    %v4718 = vcombine.high %v4716, %v4716
    %v4720 = vunpack.c.l.s4 1966171168
    %v4721 = vunpack.c.0.s8 %v4720
    %v4722 = vlaneseq
    %v4723 = vshrl.u32 %v4722, 7
    %v4724 = vsub.s32 %v4721, %v4723
    %v4725 = vrot.slane %v4709, %v4724
    %v4727 = vunpack.c.l.s4 1966171168
    %v4728 = vunpack.c.0.s8 %v4727
    %v4729 = vlaneseq
    %v4730 = vshrl.u32 %v4729, 7
    %v4731 = vsub.s32 %v4728, %v4730
    %v4732 = vrot.slane %v4716, %v4731
    %v4734 = vunpack.c.l.s4 1966171168
    %v4735 = vunpack.c.0.s8 %v4734
    %v4736 = vlaneseq
    %v4737 = vshrl.u32 %v4736, 7
    %v4738 = vsub.s32 %v4735, %v4737
    %v4739 = vrot.slane %v4717, %v4738
    %v4741 = vunpack.c.l.s4 1966171168
    %v4742 = vunpack.c.0.s8 %v4741
    %v4743 = vlaneseq
    %v4744 = vshrl.u32 %v4743, 7
    %v4745 = vsub.s32 %v4742, %v4744
    %v4746 = vrot.slane %v4718, %v4745
    %v4747 = vcombine.high %v4725, %v4725
    %v4748 = vcombine.high %v4732, %v4732
    %v4749 = vcombine.high %v4739, %v4739
    %v4750 = vcombine.high %v4746, %v4746
    %v4759 = vadd.f32 %v4685, %v4725
    %v4760 = vadd.f32 %v4686, %v4739
    %v4761 = vadd.f32 %v4687, %v4747
    %v4762 = vadd.f32 %v4688, %v4749
    %v4763 = vadd.f32 %v4689, %v4732
    %v4764 = vadd.f32 %v4690, %v4746
    %v4765 = vadd.f32 %v4691, %v4748
    %v4766 = vadd.f32 %v4692, %v4750
    %v4767 = vxor.u32 %v4759, 2147483648
    %v4768 = vxor.u32 %v4760, 2147483648
    %v4769 = vxor.u32 %v4761, 2147483648
    %v4770 = vxor.u32 %v4762, 2147483648
    %v4771 = vxor.u32 %v4763, 2147483648
    %v4772 = vxor.u32 %v4764, 2147483648
    %v4773 = vxor.u32 %v4765, 2147483648
    %v4774 = vxor.u32 %v4766, 2147483648
    %v4775 = vmul.f32 %v4767, 1.442695
    %v4776 = vpow.pop %v4775
    %v4777 = vmul.f32 %v4768, 1.442695
    %v4778 = vpow.pop %v4777
    %v4779 = vmul.f32 %v4769, 1.442695
    %v4780 = vpow.pop %v4779
    %v4781 = vmul.f32 %v4770, 1.442695
    %v4782 = vpow.pop %v4781
    %v4783 = vmul.f32 %v4771, 1.442695
    %v4784 = vpow.pop %v4783
    %v4785 = vmul.f32 %v4772, 1.442695
    %v4786 = vpow.pop %v4785
    %v4787 = vmul.f32 %v4773, 1.442695
    %v4788 = vpow.pop %v4787
    %v4789 = vmul.f32 %v4774, 1.442695
    %v4790 = vpow.pop %v4789
    %v4791 = vadd.f32 %v4776, 1.0
    %v4792 = vadd.f32 %v4778, 1.0
    %v4793 = vadd.f32 %v4780, 1.0
    %v4794 = vadd.f32 %v4782, 1.0
    %v4795 = vadd.f32 %v4784, 1.0
    %v4796 = vadd.f32 %v4786, 1.0
    %v4797 = vadd.f32 %v4788, 1.0
    %v4798 = vadd.f32 %v4790, 1.0
    %v4799 = vrcp.pop %v4791
    %v4800 = vmul.f32 1.0, %v4799
    %v4801 = vrcp.pop %v4792
    %v4802 = vmul.f32 1.0, %v4801
    %v4803 = vrcp.pop %v4793
    %v4804 = vmul.f32 1.0, %v4803
    %v4805 = vrcp.pop %v4794
    %v4806 = vmul.f32 1.0, %v4805
    %v4807 = vrcp.pop %v4795
    %v4808 = vmul.f32 1.0, %v4807
    %v4809 = vrcp.pop %v4796
    %v4810 = vmul.f32 1.0, %v4809
    %v4811 = vrcp.pop %v4797
    %v4812 = vmul.f32 1.0, %v4811
    %v4813 = vrcp.pop %v4798
    %v4814 = vmul.f32 1.0, %v4813
    %v4816 = vcombine.high %v4560, %v4560
    %v4818 = vunpack.c.l.s4 1966171168
    %v4819 = vunpack.c.0.s8 %v4818
    %v4820 = vlaneseq
    %v4821 = vshrl.u32 %v4820, 7
    %v4822 = vsub.s32 %v4819, %v4821
    %v4823 = vrot.slane %v4560, %v4822
    %v4825 = vunpack.c.l.s4 1966171168
    %v4826 = vunpack.c.0.s8 %v4825
    %v4827 = vlaneseq
    %v4828 = vshrl.u32 %v4827, 7
    %v4829 = vsub.s32 %v4826, %v4828
    %v4830 = vrot.slane %v4816, %v4829
    %v4831 = vcombine.high %v4823, %v4823
    %v4832 = vcombine.high %v4830, %v4830
    %v4834 = vunpack.c.l.s4 1966171168
    %v4835 = vunpack.c.0.s8 %v4834
    %v4836 = vlaneseq
    %v4837 = vshrl.u32 %v4836, 7
    %v4838 = vsub.s32 %v4835, %v4837
    %v4839 = vrot.slane %v4823, %v4838
    %v4841 = vunpack.c.l.s4 1966171168
    %v4842 = vunpack.c.0.s8 %v4841
    %v4843 = vlaneseq
    %v4844 = vshrl.u32 %v4843, 7
    %v4845 = vsub.s32 %v4842, %v4844
    %v4846 = vrot.slane %v4830, %v4845
    %v4848 = vunpack.c.l.s4 1966171168
    %v4849 = vunpack.c.0.s8 %v4848
    %v4850 = vlaneseq
    %v4851 = vshrl.u32 %v4850, 7
    %v4852 = vsub.s32 %v4849, %v4851
    %v4853 = vrot.slane %v4831, %v4852
    %v4855 = vunpack.c.l.s4 1966171168
    %v4856 = vunpack.c.0.s8 %v4855
    %v4857 = vlaneseq
    %v4858 = vshrl.u32 %v4857, 7
    %v4859 = vsub.s32 %v4856, %v4858
    %v4860 = vrot.slane %v4832, %v4859
    %v4861 = vcombine.high %v4839, %v4839
    %v4862 = vcombine.high %v4846, %v4846
    %v4863 = vcombine.high %v4853, %v4853
    %v4864 = vcombine.high %v4860, %v4860
    %v4873 = vmul.f32 %v4662, %v4839
    %v4874 = vmul.f32 %v4664, %v4853
    %v4875 = vmul.f32 %v4666, %v4861
    %v4876 = vmul.f32 %v4668, %v4863
    %v4877 = vmul.f32 %v4670, %v4846
    %v4878 = vmul.f32 %v4672, %v4860
    %v4879 = vmul.f32 %v4674, %v4862
    %v4880 = vmul.f32 %v4676, %v4864
    %v4881 = vrot.slane %v4349, 2
    %v4882 = vrot.slane %v4351, 2
    %v4883 = vrot.slane %v4353, 2
    %v4884 = vrot.slane %v4355, 2
    %v4885 = vrot.slane %v4357, 2
    %v4886 = vrot.slane %v4359, 2
    %v4887 = vrot.slane %v4361, 2
    %v4888 = vrot.slane %v4363, 2
    %v4897 = vadd.f32 %v4881, %v4873
    %v4898 = vadd.f32 %v4882, %v4874
    %v4899 = vadd.f32 %v4883, %v4875
    %v4900 = vadd.f32 %v4884, %v4876
    %v4901 = vadd.f32 %v4885, %v4877
    %v4902 = vadd.f32 %v4886, %v4878
    %v4903 = vadd.f32 %v4887, %v4879
    %v4904 = vadd.f32 %v4888, %v4880
    %v4905 = vtanh.pop %v4897
    %v4906 = vtanh.pop %v4898
    %v4907 = vtanh.pop %v4899
    %v4908 = vtanh.pop %v4900
    %v4909 = vtanh.pop %v4901
    %v4910 = vtanh.pop %v4902
    %v4911 = vtanh.pop %v4903
    %v4912 = vtanh.pop %v4904
    %v4913 = vsub.f32 1.0, %v4800
    %v4914 = vsub.f32 1.0, %v4802
    %v4915 = vsub.f32 1.0, %v4804
    %v4916 = vsub.f32 1.0, %v4806
    %v4917 = vsub.f32 1.0, %v4808
    %v4918 = vsub.f32 1.0, %v4810
    %v4919 = vsub.f32 1.0, %v4812
    %v4920 = vsub.f32 1.0, %v4814
    %v4921 = vmul.f32 %v4913, %v4905
    %v4922 = vmul.f32 %v4914, %v4906
    %v4923 = vmul.f32 %v4915, %v4907
    %v4924 = vmul.f32 %v4916, %v4908
    %v4925 = vmul.f32 %v4917, %v4909
    %v4926 = vmul.f32 %v4918, %v4910
    %v4927 = vmul.f32 %v4919, %v4911
    %v4928 = vmul.f32 %v4920, %v4912
    %v4929 = vmul.f32 %v4800, %v4332
    %v4930 = vmul.f32 %v4802, %v4333
    %v4931 = vmul.f32 %v4804, %v4334
    %v4932 = vmul.f32 %v4806, %v4335
    %v4933 = vmul.f32 %v4808, %v4336
    %v4934 = vmul.f32 %v4810, %v4337
    %v4935 = vmul.f32 %v4812, %v4338
    %v4936 = vmul.f32 %v4814, %v4339
    %v4937 = vadd.f32 %v4921, %v4929
    %v4938 = vadd.f32 %v4922, %v4930
    %v4939 = vadd.f32 %v4923, %v4931
    %v4940 = vadd.f32 %v4924, %v4932
    %v4941 = vadd.f32 %v4925, %v4933
    %v4942 = vadd.f32 %v4926, %v4934
    %v4943 = vadd.f32 %v4927, %v4935
    %v4944 = vadd.f32 %v4928, %v4936
    %4945 = vst [vmem:[#allocation8 + $0x7] sm:$0x1] %v4937
    %4946 = vst [vmem:[#allocation8 + $0xf] sm:$0x1] %v4938
    %4947 = vst [vmem:[#allocation8 + $0x17] sm:$0x1] %v4939
    %4948 = vst [vmem:[#allocation8 + $0x1f] sm:$0x1] %v4940
    %4949 = vst [vmem:[#allocation8 + $0x27] sm:$0x1] %v4941
    %4950 = vst [vmem:[#allocation8 + $0x2f] sm:$0x1] %v4942
    %4951 = vst [vmem:[#allocation8 + $0x37] sm:$0x1] %v4943
    %4952 = vst [vmem:[#allocation8 + $0x3f] sm:$0x1] %v4944
    %v4961 = vcombine.low %v4937, %v4938
    %v4962 = vcombine.low %v4939, %v4940
    %v4963 = vcombine.low %v4941, %v4942
    %v4964 = vcombine.low %v4943, %v4944
    %v4966 = vunpack.c.l.s4 1966171168
    %v4967 = vunpack.c.0.s8 %v4966
    %v4968 = vlaneseq
    %v4969 = vshrl.u32 %v4968, 7
    %v4970 = vsub.s32 %v4967, %v4969
    %v4971 = vrot.slane %v4961, %v4970
    %v4973 = vunpack.c.l.s4 1966171168
    %v4974 = vunpack.c.0.s8 %v4973
    %v4975 = vlaneseq
    %v4976 = vshrl.u32 %v4975, 7
    %v4977 = vsub.s32 %v4974, %v4976
    %v4978 = vrot.slane %v4962, %v4977
    %v4980 = vunpack.c.l.s4 1966171168
    %v4981 = vunpack.c.0.s8 %v4980
    %v4982 = vlaneseq
    %v4983 = vshrl.u32 %v4982, 7
    %v4984 = vsub.s32 %v4981, %v4983
    %v4985 = vrot.slane %v4963, %v4984
    %v4987 = vunpack.c.l.s4 1966171168
    %v4988 = vunpack.c.0.s8 %v4987
    %v4989 = vlaneseq
    %v4990 = vshrl.u32 %v4989, 7
    %v4991 = vsub.s32 %v4988, %v4990
    %v4992 = vrot.slane %v4964, %v4991
    %v4993 = vcombine.low %v4971, %v4978
    %v4994 = vcombine.low %v4985, %v4992
    %v4996 = vunpack.c.l.s4 1966171168
    %v4997 = vunpack.c.0.s8 %v4996
    %v4998 = vlaneseq
    %v4999 = vshrl.u32 %v4998, 7
    %v5000 = vsub.s32 %v4997, %v4999
    %v5001 = vrot.slane %v4993, %v5000
    %v5003 = vunpack.c.l.s4 1966171168
    %v5004 = vunpack.c.0.s8 %v5003
    %v5005 = vlaneseq
    %v5006 = vshrl.u32 %v5005, 7
    %v5007 = vsub.s32 %v5004, %v5006
    %v5008 = vrot.slane %v4994, %v5007
    %v5009 = vcombine.low %v5001, %v5008
    %5011 = vst [vmem:[#allocation2] sm:$0xff] %v5009
    // Predicated region
    $region26: #{tpu_custom_call.1} parent=1 // pred_check
      _
    $region27: #{tpu_custom_call.1} parent=1 // pred_check_branch
      %5013 = sbr.rel (0) target = $region29
    $region28: #{tpu_custom_call.1} parent=1 // pred_region
      %s5015 = ssub.s32 1024, 1024
      %5016 = vsyncadd [#allocation5], %s5015
      %s5017 = sshll.u32 [#allocation8], 4
      %s5018 = int_to_ptr.vmem [resolvable:$true] %s5017
      %5023 = dma.vmem_to_hbm [thread:$0]  %s5018, 1024, %s3, [#allocation5], 128, 128, 8
    $region29: #{tpu_custom_call.1} parent=1 // pred_fallthru
      _
    // Predicated region
    $region30: #{tpu_custom_call.1} parent=1 // pred_check
      _
    $region31: #{tpu_custom_call.1} parent=1 // pred_check_branch
      %5025 = sbr.rel (0) target = $region33
    $region32: #{tpu_custom_call.1} parent=1 // pred_region
      %5026 = dma.done [#allocation5], 1024
    $region33: #{tpu_custom_call.1} parent=1 // pred_fallthru
      _
    %5027 = vsyncpa [#allocation4], 1
    %5028 = vsyncpa [#allocation7], 1
    %5029 = vsyncpa [#allocation5], 1

</llo_original>
